<compile_context>
chip_gen: v6e
topology: v6e:2x2x1
jax: 0.10.0
libtpu: 0.0.40
codegen_flags: <defaults>
</compile_context>

<pallas_src>
import jax
import jax.numpy as jnp
from jax import lax
from jax.experimental import pallas as pl
from jax.experimental.pallas import tpu as pltpu


# ----------------------------- Pallas kernel -------------------------------

def _bilstm_layer_kernel(x_ref, wih_ref, whh_ref, b_ref, hseq_ref,
                         xg_scr, h_scr, c_scr):
    """One LSTM direction over the full sequence (direction = grid axis 0).

    x_ref:    (T, Bp, Din)  bf16  layer input, time-major (shared by both directions)
    wih_ref:  (Din, 4H)     bf16  W_ih^T for this direction
    whh_ref:  (H, 4H)       bf16  W_hh^T for this direction
    b_ref:    (1, 4H)       f32   b_ih + b_hh for this direction
    hseq_ref: (T, Bp, H)    f32   per-step hidden states, stored in original time order
    xg_scr:   (T, Bp, 4H)   f32   hoisted input projection (+ bias)
    h_scr, c_scr: (Bp, H)   f32   recurrent state
    """
    T, Bp, Din = x_ref.shape
    H = whh_ref.shape[0]

    # ---- Hoisted input projection: one big MXU matmul + one bias add for all T steps.
    x_all = x_ref[...].reshape(T * Bp, Din)
    xg = jnp.dot(x_all, wih_ref[...], preferred_element_type=jnp.float32)
    xg_scr[...] = (xg + b_ref[...]).reshape(T, Bp, 4 * H)

    h_scr[...] = jnp.zeros((Bp, H), jnp.float32)
    c_scr[...] = jnp.zeros((Bp, H), jnp.float32)

    backward = pl.program_id(0) == 1  # direction 1 walks the sequence in reverse

    def step(i, carry):
        t = jnp.where(backward, T - 1 - i, i)
        # Single MXU push per step: recurrent projection only (input proj. prehoisted).
        gates = xg_scr[t] + jnp.dot(h_scr[...].astype(whh_ref.dtype), whh_ref[...],
                                    preferred_element_type=jnp.float32)
        # PyTorch gate order: i, f, g, o
        i_g = jax.nn.sigmoid(gates[:, 0 * H:1 * H])
        f_g = jax.nn.sigmoid(gates[:, 1 * H:2 * H])
        g_g = jnp.tanh(gates[:, 2 * H:3 * H])
        o_g = jax.nn.sigmoid(gates[:, 3 * H:4 * H])
        c = f_g * c_scr[...] + i_g * g_g
        h = o_g * jnp.tanh(c)
        c_scr[...] = c
        h_scr[...] = h
        hseq_ref[t] = h   # backward dir writes at T-1-i -> already in forward time order
        return carry

    # T is static -> fully unroll so the LLO scheduler can overlap adjacent steps.
    lax.fori_loop(0, T, step, 0, unroll=True)


# ------------------------------ JAX wrappers -------------------------------

def bilstm_layer(x, wih, whh, b):
    """One bidirectional LSTM layer.

    x:   (T, Bp, Din) bf16 time-major input (batch already sublane-padded)
    wih: (2, Din, 4H) bf16   stacked W_ih^T   (dir 0 = fwd, 1 = bwd)
    whh: (2, H,   4H) bf16   stacked W_hh^T
    b:   (2, 1,   4H) f32    stacked (b_ih + b_hh)
    returns (2, T, Bp, H) f32 hidden sequences.
    """
    T, Bp, Din = x.shape
    H = whh.shape[1]
    return pl.pallas_call(
        _bilstm_layer_kernel,
        out_shape=jax.ShapeDtypeStruct((2, T, Bp, H), jnp.float32),
        grid=(2,),
        in_specs=[
            pl.BlockSpec((T, Bp, Din), lambda d: (0, 0, 0)),        # shared input
            pl.BlockSpec((None, Din, 4 * H), lambda d: (d, 0, 0)),  # per-dir weights
            pl.BlockSpec((None, H, 4 * H), lambda d: (d, 0, 0)),
            pl.BlockSpec((None, 1, 4 * H), lambda d: (d, 0, 0)),
        ],
        out_specs=pl.BlockSpec((None, T, Bp, H), lambda d: (d, 0, 0, 0)),
        scratch_shapes=[
            pltpu.VMEM((T, Bp, 4 * H), jnp.float32),   # hoisted input projection
            pltpu.VMEM((Bp, H), jnp.float32),          # h state
            pltpu.VMEM((Bp, H), jnp.float32),          # c state
        ],
        compiler_params=pltpu.CompilerParams(
            dimension_semantics=("parallel",),          # 2 dirs -> 2 TCs on v7x
            vmem_limit_bytes=32 * 1024 * 1024,
        ),
    )(x, wih, whh, b)


def birnn_forward(params, tokens):
    """tokens: (batch, seq) int32 -> logits (batch, 2)."""
    B, _ = tokens.shape
    # embedding(inputs.T) -> (seq, batch, embed), time-major
    emb = jnp.take(params["embedding"], tokens.T, axis=0)           # (T, B, D) f32
    T, _, D = emb.shape
    Bp = ((B + 7) // 8) * 8                                         # sublane-pad batch

    x = jnp.zeros((T, Bp, D), jnp.bfloat16).at[:, :B, :].set(emb.astype(jnp.bfloat16))
    hseq = None
    for (wih, whh, b) in params["lstm"]:
        hseq = bilstm_layer(x, wih, whh, b)                         # (2, T, Bp, H) f32
        # next-layer input: [h_fwd, h_bwd] along features, still time-major
        x = jnp.concatenate([hseq[0], hseq[1]], axis=-1).astype(jnp.bfloat16)

    # encoding = cat(outputs[0], outputs[-1]) = [fwd_0, bwd_0, fwd_{T-1}, bwd_{T-1}]
    enc = jnp.concatenate([hseq[0, 0, :B], hseq[1, 0, :B],
                           hseq[0, -1, :B], hseq[1, -1, :B]], axis=-1)  # (B, 4H) f32
    # Tiny (B, 4H) @ (4H, 2) decoder: plain XLA (2-lane output not worth a kernel).
    return enc @ params["dec_w_t"] + params["dec_b"]


# ----------------------------- Parameter init ------------------------------

def init_params(key, vocab_size, embed_size, num_hiddens, num_layers):
    n_keys = 1 + num_layers * 2 * 4 + 2
    keys = iter(jax.random.split(key, n_keys))

    def uni(k, shape, scale):
        return jax.random.uniform(k, shape, jnp.float32, -scale, scale)

    params = {}
    params["embedding"] = jax.random.normal(
        next(keys), (vocab_size, embed_size), jnp.float32)

    H = num_hiddens
    scale = 1.0 / float(H) ** 0.5
    layers = []
    for layer in range(num_layers):
        in_dim = embed_size if layer == 0 else 2 * H
        wih_l, whh_l, b_l = [], [], []
        for _direction in range(2):
            w_ih = uni(next(keys), (4 * H, in_dim), scale)
            w_hh = uni(next(keys), (4 * H, H), scale)
            b_ih = uni(next(keys), (4 * H,), scale)
            b_hh = uni(next(keys), (4 * H,), scale)
            wih_l.append(w_ih.T)                               # (in_dim, 4H) MXU-ready
            whh_l.append(w_hh.T)                               # (H, 4H)
            b_l.append((b_ih + b_hh).reshape(1, 4 * H))        # bias pre-combined
        layers.append((jnp.stack(wih_l).astype(jnp.bfloat16),  # (2, in_dim, 4H)
                       jnp.stack(whh_l).astype(jnp.bfloat16),  # (2, H, 4H)
                       jnp.stack(b_l).astype(jnp.float32)))    # (2, 1, 4H)
    params["lstm"] = layers

    dec_scale = 1.0 / float(4 * H) ** 0.5
    params["dec_w_t"] = uni(next(keys), (2, 4 * H), dec_scale).T   # (4H, 2), pre-T
    params["dec_b"] = uni(next(keys), (2,), dec_scale)
    return params


# ---------------------------------- main -----------------------------------

if __name__ == "__main__":
    vocab_size, embed_size, num_hiddens, num_layers = 50, 32, 32, 2
    batch, seq = 2, 8

    key = jax.random.PRNGKey(0)
    pkey, tkey = jax.random.split(key)
    params = init_params(pkey, vocab_size, embed_size, num_hiddens, num_layers)
    tokens = jax.random.randint(tkey, (batch, seq), 0, vocab_size, jnp.int32)

    out = jax.jit(birnn_forward)(params, tokens)
    out = jax.block_until_ready(out)
    assert out.shape == (batch, 2) and out.dtype == jnp.float32
    print("KERNEL_OK")
</pallas_src>

<mosaic_0001>
module attributes {stable_mosaic.version = 11 : i64} {
  func.func @_bilstm_layer_kernel(%arg0: i32, %arg1: memref<8x8x32xbf16, #tpu.memory_space<vmem>>, %arg2: memref<1x32x128xbf16, #tpu.memory_space<vmem>>, %arg3: memref<1x32x128xbf16, #tpu.memory_space<vmem>>, %arg4: memref<1x1x128xf32, #tpu.memory_space<vmem>>, %arg5: memref<1x8x8x32xf32, #tpu.memory_space<vmem>>, %arg6: memref<8x8x128xf32, #tpu.memory_space<vmem>>, %arg7: memref<8x32xf32, #tpu.memory_space<vmem>>, %arg8: memref<8x32xf32, #tpu.memory_space<vmem>>) attributes {dimension_semantics = [#tpu.dimension_semantics<parallel>], iteration_bounds = array<i64: 2>, scalar_prefetch = 0 : i64, scratch_operands = 3 : i64, tpu.core_type = #tpu.core_type<tc>, window_params = [{pipeline_mode = #tpu.pipeline_mode<synchronous>, transform_indices = @transform_0, window_bounds = array<i64: 8, 8, 32>}, {transform_indices = @transform_1, window_bounds = array<i64: 1, 32, 128>}, {transform_indices = @transform_2, window_bounds = array<i64: 1, 32, 128>}, {transform_indices = @transform_3, window_bounds = array<i64: 1, 1, 128>}, {transform_indices = @transform_4, window_bounds = array<i64: 1, 8, 8, 32>}]} {
    %c0 = arith.constant 0 : index
    %c0_0 = arith.constant 0 : index
    %c0_1 = arith.constant 0 : index
    %0 = vector.load %arg1[%c0, %c0_0, %c0_1] : memref<8x8x32xbf16, #tpu.memory_space<vmem>>, vector<8x8x32xbf16>
    %1 = vector.shape_cast %0 : vector<8x8x32xbf16> to vector<64x32xbf16>
    %c0_2 = arith.constant 0 : index
    %c0_3 = arith.constant 0 : index
    %c0_4 = arith.constant 0 : index
    %2 = vector.load %arg2[%c0_2, %c0_3, %c0_4] : memref<1x32x128xbf16, #tpu.memory_space<vmem>>, vector<1x32x128xbf16>
    %3 = vector.shape_cast %2 : vector<1x32x128xbf16> to vector<32x128xbf16>
    %cst = arith.constant dense<0.000000e+00> : vector<64x128xf32>
    %4 = tpu.matmul %1, %3, %cst {dimension_numbers = #tpu.dot_dimension_numbers<[1], [0], [0], [1], [0, 0, 1, 1], [], []>} : vector<64x32xbf16>, vector<32x128xbf16>, vector<64x128xf32> -> vector<64x128xf32>
    %c0_5 = arith.constant 0 : index
    %c0_6 = arith.constant 0 : index
    %c0_7 = arith.constant 0 : index
    %5 = vector.load %arg4[%c0_5, %c0_6, %c0_7] : memref<1x1x128xf32, #tpu.memory_space<vmem>>, vector<1x1x128xf32>
    %6 = vector.shape_cast %5 : vector<1x1x128xf32> to vector<1x128xf32>
    %7 = vector.broadcast %6 : vector<1x128xf32> to vector<64x128xf32>
    %8 = arith.addf %4, %7 : vector<64x128xf32>
    %9 = vector.shape_cast %8 : vector<64x128xf32> to vector<8x8x128xf32>
    %c0_8 = arith.constant 0 : index
    %c0_9 = arith.constant 0 : index
    %c0_10 = arith.constant 0 : index
    %10 = vector.load %arg6[%c0_8, %c0_9, %c0_10] : memref<8x8x128xf32, #tpu.memory_space<vmem>>, vector<8x8x128xf32>
    tpu.vector_store %arg6[%c0_8, %c0_9, %c0_10], %9 {strides = array<i32>} : memref<8x8x128xf32, #tpu.memory_space<vmem>>, vector<8x8x128xf32>,
    %cst_11 = arith.constant 0.000000e+00 : f32
    %11 = vector.broadcast %cst_11 : f32 to vector<8x32xf32>
    %c0_12 = arith.constant 0 : index
    %c0_13 = arith.constant 0 : index
    %12 = vector.load %arg7[%c0_12, %c0_13] : memref<8x32xf32, #tpu.memory_space<vmem>>, vector<8x32xf32>
    tpu.vector_store %arg7[%c0_12, %c0_13], %11 {strides = array<i32>} : memref<8x32xf32, #tpu.memory_space<vmem>>, vector<8x32xf32>,
    %cst_14 = arith.constant 0.000000e+00 : f32
    %13 = vector.broadcast %cst_14 : f32 to vector<8x32xf32>
    %c0_15 = arith.constant 0 : index
    %c0_16 = arith.constant 0 : index
    %14 = vector.load %arg8[%c0_15, %c0_16] : memref<8x32xf32, #tpu.memory_space<vmem>>, vector<8x32xf32>
    tpu.vector_store %arg8[%c0_15, %c0_16], %13 {strides = array<i32>} : memref<8x32xf32, #tpu.memory_space<vmem>>, vector<8x32xf32>,
    %c1_i32 = arith.constant 1 : i32
    %15 = arith.cmpi eq, %arg0, %c1_i32 : i32
    %c0_i32 = arith.constant 0 : i32
    %c7_i32 = arith.constant 7 : i32
    %16 = arith.subi %c7_i32, %c0_i32 : i32
    %17 = arith.select %15, %16, %c0_i32 : i32
    %18 = arith.index_cast %17 : i32 to index
    %c0_17 = arith.constant 0 : index
    %c0_18 = arith.constant 0 : index
    %19 = vector.load %arg6[%18, %c0_17, %c0_18] : memref<8x8x128xf32, #tpu.memory_space<vmem>>, vector<1x8x128xf32>
    %20 = vector.shape_cast %19 : vector<1x8x128xf32> to vector<8x128xf32>
    %c0_19 = arith.constant 0 : index
    %c0_20 = arith.constant 0 : index
    %21 = vector.load %arg7[%c0_19, %c0_20] : memref<8x32xf32, #tpu.memory_space<vmem>>, vector<8x32xf32>
    %22 = arith.truncf %21 : vector<8x32xf32> to vector<8x32xbf16>
    %c0_21 = arith.constant 0 : index
    %c0_22 = arith.constant 0 : index
    %c0_23 = arith.constant 0 : index
    %23 = vector.load %arg3[%c0_21, %c0_22, %c0_23] : memref<1x32x128xbf16, #tpu.memory_space<vmem>>, vector<1x32x128xbf16>
    %24 = vector.shape_cast %23 : vector<1x32x128xbf16> to vector<32x128xbf16>
    %cst_24 = arith.constant dense<0.000000e+00> : vector<8x128xf32>
    %25 = tpu.matmul %22, %24, %cst_24 {dimension_numbers = #tpu.dot_dimension_numbers<[1], [0], [0], [1], [0, 0, 1, 1], [], []>} : vector<8x32xbf16>, vector<32x128xbf16>, vector<8x128xf32> -> vector<8x128xf32>
    %26 = arith.addf %20, %25 : vector<8x128xf32>
    %27 = vector.extract_strided_slice %26 {offsets = [0, 0], sizes = [8, 32], strides = [1, 1]} : vector<8x128xf32> to vector<8x32xf32>
    %28 = arith.negf %27 : vector<8x32xf32>
    %29 = math.exp %28 : vector<8x32xf32>
    %cst_25 = arith.constant 1.000000e+00 : f32
    %30 = vector.broadcast %cst_25 : f32 to vector<8x32xf32>
    %31 = arith.addf %30, %29 : vector<8x32xf32>
    %32 = arith.divf %30, %31 : vector<8x32xf32>
    %33 = vector.extract_strided_slice %26 {offsets = [0, 32], sizes = [8, 32], strides = [1, 1]} : vector<8x128xf32> to vector<8x32xf32>
    %34 = arith.negf %33 : vector<8x32xf32>
    %35 = math.exp %34 : vector<8x32xf32>
    %cst_26 = arith.constant 1.000000e+00 : f32
    %36 = vector.broadcast %cst_26 : f32 to vector<8x32xf32>
    %37 = arith.addf %36, %35 : vector<8x32xf32>
    %38 = arith.divf %36, %37 : vector<8x32xf32>
    %39 = vector.extract_strided_slice %26 {offsets = [0, 64], sizes = [8, 32], strides = [1, 1]} : vector<8x128xf32> to vector<8x32xf32>
    %40 = math.tanh %39 : vector<8x32xf32>
    %41 = vector.extract_strided_slice %26 {offsets = [0, 96], sizes = [8, 32], strides = [1, 1]} : vector<8x128xf32> to vector<8x32xf32>
    %42 = arith.negf %41 : vector<8x32xf32>
    %43 = math.exp %42 : vector<8x32xf32>
    %cst_27 = arith.constant 1.000000e+00 : f32
    %44 = vector.broadcast %cst_27 : f32 to vector<8x32xf32>
    %45 = arith.addf %44, %43 : vector<8x32xf32>
    %46 = arith.divf %44, %45 : vector<8x32xf32>
    %c0_28 = arith.constant 0 : index
    %c0_29 = arith.constant 0 : index
    %47 = vector.load %arg8[%c0_28, %c0_29] : memref<8x32xf32, #tpu.memory_space<vmem>>, vector<8x32xf32>
    %48 = arith.mulf %38, %47 : vector<8x32xf32>
    %49 = arith.mulf %32, %40 : vector<8x32xf32>
    %50 = arith.addf %48, %49 : vector<8x32xf32>
    %51 = math.tanh %50 : vector<8x32xf32>
    %52 = arith.mulf %46, %51 : vector<8x32xf32>
    %c0_30 = arith.constant 0 : index
    %c0_31 = arith.constant 0 : index
    %53 = vector.load %arg8[%c0_30, %c0_31] : memref<8x32xf32, #tpu.memory_space<vmem>>, vector<8x32xf32>
    tpu.vector_store %arg8[%c0_30, %c0_31], %50 {strides = array<i32>} : memref<8x32xf32, #tpu.memory_space<vmem>>, vector<8x32xf32>,
    %c0_32 = arith.constant 0 : index
    %c0_33 = arith.constant 0 : index
    %54 = vector.load %arg7[%c0_32, %c0_33] : memref<8x32xf32, #tpu.memory_space<vmem>>, vector<8x32xf32>
    tpu.vector_store %arg7[%c0_32, %c0_33], %52 {strides = array<i32>} : memref<8x32xf32, #tpu.memory_space<vmem>>, vector<8x32xf32>,
    %c0_34 = arith.constant 0 : index
    %55 = arith.index_cast %17 : i32 to index
    %c0_35 = arith.constant 0 : index
    %c0_36 = arith.constant 0 : index
    %56 = vector.load %arg5[%c0_34, %55, %c0_35, %c0_36] : memref<1x8x8x32xf32, #tpu.memory_space<vmem>>, vector<1x1x8x32xf32>
    %57 = vector.shape_cast %56 : vector<1x1x8x32xf32> to vector<8x32xf32>
    %58 = vector.shape_cast %52 : vector<8x32xf32> to vector<1x1x8x32xf32>
    tpu.vector_store %arg5[%c0_34, %55, %c0_35, %c0_36], %58 {strides = array<i32>} : memref<1x8x8x32xf32, #tpu.memory_space<vmem>>, vector<1x1x8x32xf32>,
    %c1_i32_37 = arith.constant 1 : i32
    %c7_i32_38 = arith.constant 7 : i32
    %59 = arith.subi %c7_i32_38, %c1_i32_37 : i32
    %60 = arith.select %15, %59, %c1_i32_37 : i32
    %61 = arith.index_cast %60 : i32 to index
    %c0_39 = arith.constant 0 : index
    %c0_40 = arith.constant 0 : index
    %62 = vector.load %arg6[%61, %c0_39, %c0_40] : memref<8x8x128xf32, #tpu.memory_space<vmem>>, vector<1x8x128xf32>
    %63 = vector.shape_cast %62 : vector<1x8x128xf32> to vector<8x128xf32>
    %c0_41 = arith.constant 0 : index
    %c0_42 = arith.constant 0 : index
    %64 = vector.load %arg7[%c0_41, %c0_42] : memref<8x32xf32, #tpu.memory_space<vmem>>, vector<8x32xf32>
    %65 = arith.truncf %64 : vector<8x32xf32> to vector<8x32xbf16>
    %c0_43 = arith.constant 0 : index
    %c0_44 = arith.constant 0 : index
    %c0_45 = arith.constant 0 : index
    %66 = vector.load %arg3[%c0_43, %c0_44, %c0_45] : memref<1x32x128xbf16, #tpu.memory_space<vmem>>, vector<1x32x128xbf16>
    %67 = vector.shape_cast %66 : vector<1x32x128xbf16> to vector<32x128xbf16>
    %cst_46 = arith.constant dense<0.000000e+00> : vector<8x128xf32>
    %68 = tpu.matmul %65, %67, %cst_46 {dimension_numbers = #tpu.dot_dimension_numbers<[1], [0], [0], [1], [0, 0, 1, 1], [], []>} : vector<8x32xbf16>, vector<32x128xbf16>, vector<8x128xf32> -> vector<8x128xf32>
    %69 = arith.addf %63, %68 : vector<8x128xf32>
    %70 = vector.extract_strided_slice %69 {offsets = [0, 0], sizes = [8, 32], strides = [1, 1]} : vector<8x128xf32> to vector<8x32xf32>
    %71 = arith.negf %70 : vector<8x32xf32>
    %72 = math.exp %71 : vector<8x32xf32>
    %cst_47 = arith.constant 1.000000e+00 : f32
    %73 = vector.broadcast %cst_47 : f32 to vector<8x32xf32>
    %74 = arith.addf %73, %72 : vector<8x32xf32>
    %75 = arith.divf %73, %74 : vector<8x32xf32>
    %76 = vector.extract_strided_slice %69 {offsets = [0, 32], sizes = [8, 32], strides = [1, 1]} : vector<8x128xf32> to vector<8x32xf32>
    %77 = arith.negf %76 : vector<8x32xf32>
    %78 = math.exp %77 : vector<8x32xf32>
    %cst_48 = arith.constant 1.000000e+00 : f32
    %79 = vector.broadcast %cst_48 : f32 to vector<8x32xf32>
    %80 = arith.addf %79, %78 : vector<8x32xf32>
    %81 = arith.divf %79, %80 : vector<8x32xf32>
    %82 = vector.extract_strided_slice %69 {offsets = [0, 64], sizes = [8, 32], strides = [1, 1]} : vector<8x128xf32> to vector<8x32xf32>
    %83 = math.tanh %82 : vector<8x32xf32>
    %84 = vector.extract_strided_slice %69 {offsets = [0, 96], sizes = [8, 32], strides = [1, 1]} : vector<8x128xf32> to vector<8x32xf32>
    %85 = arith.negf %84 : vector<8x32xf32>
    %86 = math.exp %85 : vector<8x32xf32>
    %cst_49 = arith.constant 1.000000e+00 : f32
    %87 = vector.broadcast %cst_49 : f32 to vector<8x32xf32>
    %88 = arith.addf %87, %86 : vector<8x32xf32>
    %89 = arith.divf %87, %88 : vector<8x32xf32>
    %c0_50 = arith.constant 0 : index
    %c0_51 = arith.constant 0 : index
    %90 = vector.load %arg8[%c0_50, %c0_51] : memref<8x32xf32, #tpu.memory_space<vmem>>, vector<8x32xf32>
    %91 = arith.mulf %81, %90 : vector<8x32xf32>
    %92 = arith.mulf %75, %83 : vector<8x32xf32>
    %93 = arith.addf %91, %92 : vector<8x32xf32>
    %94 = math.tanh %93 : vector<8x32xf32>
    %95 = arith.mulf %89, %94 : vector<8x32xf32>
    %c0_52 = arith.constant 0 : index
    %c0_53 = arith.constant 0 : index
    %96 = vector.load %arg8[%c0_52, %c0_53] : memref<8x32xf32, #tpu.memory_space<vmem>>, vector<8x32xf32>
    tpu.vector_store %arg8[%c0_52, %c0_53], %93 {strides = array<i32>} : memref<8x32xf32, #tpu.memory_space<vmem>>, vector<8x32xf32>,
    %c0_54 = arith.constant 0 : index
    %c0_55 = arith.constant 0 : index
    %97 = vector.load %arg7[%c0_54, %c0_55] : memref<8x32xf32, #tpu.memory_space<vmem>>, vector<8x32xf32>
    tpu.vector_store %arg7[%c0_54, %c0_55], %95 {strides = array<i32>} : memref<8x32xf32, #tpu.memory_space<vmem>>, vector<8x32xf32>,
    %c0_56 = arith.constant 0 : index
    %98 = arith.index_cast %60 : i32 to index
    %c0_57 = arith.constant 0 : index
    %c0_58 = arith.constant 0 : index
    %99 = vector.load %arg5[%c0_56, %98, %c0_57, %c0_58] : memref<1x8x8x32xf32, #tpu.memory_space<vmem>>, vector<1x1x8x32xf32>
    %100 = vector.shape_cast %99 : vector<1x1x8x32xf32> to vector<8x32xf32>
    %101 = vector.shape_cast %95 : vector<8x32xf32> to vector<1x1x8x32xf32>
    tpu.vector_store %arg5[%c0_56, %98, %c0_57, %c0_58], %101 {strides = array<i32>} : memref<1x8x8x32xf32, #tpu.memory_space<vmem>>, vector<1x1x8x32xf32>,
    %c2_i32 = arith.constant 2 : i32
    %c7_i32_59 = arith.constant 7 : i32
    %102 = arith.subi %c7_i32_59, %c2_i32 : i32
    %103 = arith.select %15, %102, %c2_i32 : i32
    %104 = arith.index_cast %103 : i32 to index
    %c0_60 = arith.constant 0 : index
    %c0_61 = arith.constant 0 : index
    %105 = vector.load %arg6[%104, %c0_60, %c0_61] : memref<8x8x128xf32, #tpu.memory_space<vmem>>, vector<1x8x128xf32>
    %106 = vector.shape_cast %105 : vector<1x8x128xf32> to vector<8x128xf32>
    %c0_62 = arith.constant 0 : index
    %c0_63 = arith.constant 0 : index
    %107 = vector.load %arg7[%c0_62, %c0_63] : memref<8x32xf32, #tpu.memory_space<vmem>>, vector<8x32xf32>
    %108 = arith.truncf %107 : vector<8x32xf32> to vector<8x32xbf16>
    %c0_64 = arith.constant 0 : index
    %c0_65 = arith.constant 0 : index
    %c0_66 = arith.constant 0 : index
    %109 = vector.load %arg3[%c0_64, %c0_65, %c0_66] : memref<1x32x128xbf16, #tpu.memory_space<vmem>>, vector<1x32x128xbf16>
    %110 = vector.shape_cast %109 : vector<1x32x128xbf16> to vector<32x128xbf16>
    %cst_67 = arith.constant dense<0.000000e+00> : vector<8x128xf32>
    %111 = tpu.matmul %108, %110, %cst_67 {dimension_numbers = #tpu.dot_dimension_numbers<[1], [0], [0], [1], [0, 0, 1, 1], [], []>} : vector<8x32xbf16>, vector<32x128xbf16>, vector<8x128xf32> -> vector<8x128xf32>
    %112 = arith.addf %106, %111 : vector<8x128xf32>
    %113 = vector.extract_strided_slice %112 {offsets = [0, 0], sizes = [8, 32], strides = [1, 1]} : vector<8x128xf32> to vector<8x32xf32>
    %114 = arith.negf %113 : vector<8x32xf32>
    %115 = math.exp %114 : vector<8x32xf32>
    %cst_68 = arith.constant 1.000000e+00 : f32
    %116 = vector.broadcast %cst_68 : f32 to vector<8x32xf32>
    %117 = arith.addf %116, %115 : vector<8x32xf32>
    %118 = arith.divf %116, %117 : vector<8x32xf32>
    %119 = vector.extract_strided_slice %112 {offsets = [0, 32], sizes = [8, 32], strides = [1, 1]} : vector<8x128xf32> to vector<8x32xf32>
    %120 = arith.negf %119 : vector<8x32xf32>
    %121 = math.exp %120 : vector<8x32xf32>
    %cst_69 = arith.constant 1.000000e+00 : f32
    %122 = vector.broadcast %cst_69 : f32 to vector<8x32xf32>
    %123 = arith.addf %122, %121 : vector<8x32xf32>
    %124 = arith.divf %122, %123 : vector<8x32xf32>
    %125 = vector.extract_strided_slice %112 {offsets = [0, 64], sizes = [8, 32], strides = [1, 1]} : vector<8x128xf32> to vector<8x32xf32>
    %126 = math.tanh %125 : vector<8x32xf32>
    %127 = vector.extract_strided_slice %112 {offsets = [0, 96], sizes = [8, 32], strides = [1, 1]} : vector<8x128xf32> to vector<8x32xf32>
    %128 = arith.negf %127 : vector<8x32xf32>
    %129 = math.exp %128 : vector<8x32xf32>
    %cst_70 = arith.constant 1.000000e+00 : f32
    %130 = vector.broadcast %cst_70 : f32 to vector<8x32xf32>
    %131 = arith.addf %130, %129 : vector<8x32xf32>
    %132 = arith.divf %130, %131 : vector<8x32xf32>
    %c0_71 = arith.constant 0 : index
    %c0_72 = arith.constant 0 : index
    %133 = vector.load %arg8[%c0_71, %c0_72] : memref<8x32xf32, #tpu.memory_space<vmem>>, vector<8x32xf32>
    %134 = arith.mulf %124, %133 : vector<8x32xf32>
    %135 = arith.mulf %118, %126 : vector<8x32xf32>
    %136 = arith.addf %134, %135 : vector<8x32xf32>
    %137 = math.tanh %136 : vector<8x32xf32>
    %138 = arith.mulf %132, %137 : vector<8x32xf32>
    %c0_73 = arith.constant 0 : index
    %c0_74 = arith.constant 0 : index
    %139 = vector.load %arg8[%c0_73, %c0_74] : memref<8x32xf32, #tpu.memory_space<vmem>>, vector<8x32xf32>
    tpu.vector_store %arg8[%c0_73, %c0_74], %136 {strides = array<i32>} : memref<8x32xf32, #tpu.memory_space<vmem>>, vector<8x32xf32>,
    %c0_75 = arith.constant 0 : index
    %c0_76 = arith.constant 0 : index
    %140 = vector.load %arg7[%c0_75, %c0_76] : memref<8x32xf32, #tpu.memory_space<vmem>>, vector<8x32xf32>
    tpu.vector_store %arg7[%c0_75, %c0_76], %138 {strides = array<i32>} : memref<8x32xf32, #tpu.memory_space<vmem>>, vector<8x32xf32>,
    %c0_77 = arith.constant 0 : index
    %141 = arith.index_cast %103 : i32 to index
    %c0_78 = arith.constant 0 : index
    %c0_79 = arith.constant 0 : index
    %142 = vector.load %arg5[%c0_77, %141, %c0_78, %c0_79] : memref<1x8x8x32xf32, #tpu.memory_space<vmem>>, vector<1x1x8x32xf32>
    %143 = vector.shape_cast %142 : vector<1x1x8x32xf32> to vector<8x32xf32>
    %144 = vector.shape_cast %138 : vector<8x32xf32> to vector<1x1x8x32xf32>
    tpu.vector_store %arg5[%c0_77, %141, %c0_78, %c0_79], %144 {strides = array<i32>} : memref<1x8x8x32xf32, #tpu.memory_space<vmem>>, vector<1x1x8x32xf32>,
    %c3_i32 = arith.constant 3 : i32
    %c7_i32_80 = arith.constant 7 : i32
    %145 = arith.subi %c7_i32_80, %c3_i32 : i32
    %146 = arith.select %15, %145, %c3_i32 : i32
    %147 = arith.index_cast %146 : i32 to index
    %c0_81 = arith.constant 0 : index
    %c0_82 = arith.constant 0 : index
    %148 = vector.load %arg6[%147, %c0_81, %c0_82] : memref<8x8x128xf32, #tpu.memory_space<vmem>>, vector<1x8x128xf32>
    %149 = vector.shape_cast %148 : vector<1x8x128xf32> to vector<8x128xf32>
    %c0_83 = arith.constant 0 : index
    %c0_84 = arith.constant 0 : index
    %150 = vector.load %arg7[%c0_83, %c0_84] : memref<8x32xf32, #tpu.memory_space<vmem>>, vector<8x32xf32>
    %151 = arith.truncf %150 : vector<8x32xf32> to vector<8x32xbf16>
    %c0_85 = arith.constant 0 : index
    %c0_86 = arith.constant 0 : index
    %c0_87 = arith.constant 0 : index
    %152 = vector.load %arg3[%c0_85, %c0_86, %c0_87] : memref<1x32x128xbf16, #tpu.memory_space<vmem>>, vector<1x32x128xbf16>
    %153 = vector.shape_cast %152 : vector<1x32x128xbf16> to vector<32x128xbf16>
    %cst_88 = arith.constant dense<0.000000e+00> : vector<8x128xf32>
    %154 = tpu.matmul %151, %153, %cst_88 {dimension_numbers = #tpu.dot_dimension_numbers<[1], [0], [0], [1], [0, 0, 1, 1], [], []>} : vector<8x32xbf16>, vector<32x128xbf16>, vector<8x128xf32> -> vector<8x128xf32>
    %155 = arith.addf %149, %154 : vector<8x128xf32>
    %156 = vector.extract_strided_slice %155 {offsets = [0, 0], sizes = [8, 32], strides = [1, 1]} : vector<8x128xf32> to vector<8x32xf32>
    %157 = arith.negf %156 : vector<8x32xf32>
    %158 = math.exp %157 : vector<8x32xf32>
    %cst_89 = arith.constant 1.000000e+00 : f32
    %159 = vector.broadcast %cst_89 : f32 to vector<8x32xf32>
    %160 = arith.addf %159, %158 : vector<8x32xf32>
    %161 = arith.divf %159, %160 : vector<8x32xf32>
    %162 = vector.extract_strided_slice %155 {offsets = [0, 32], sizes = [8, 32], strides = [1, 1]} : vector<8x128xf32> to vector<8x32xf32>
    %163 = arith.negf %162 : vector<8x32xf32>
    %164 = math.exp %163 : vector<8x32xf32>
    %cst_90 = arith.constant 1.000000e+00 : f32
    %165 = vector.broadcast %cst_90 : f32 to vector<8x32xf32>
    %166 = arith.addf %165, %164 : vector<8x32xf32>
    %167 = arith.divf %165, %166 : vector<8x32xf32>
    %168 = vector.extract_strided_slice %155 {offsets = [0, 64], sizes = [8, 32], strides = [1, 1]} : vector<8x128xf32> to vector<8x32xf32>
    %169 = math.tanh %168 : vector<8x32xf32>
    %170 = vector.extract_strided_slice %155 {offsets = [0, 96], sizes = [8, 32], strides = [1, 1]} : vector<8x128xf32> to vector<8x32xf32>
    %171 = arith.negf %170 : vector<8x32xf32>
    %172 = math.exp %171 : vector<8x32xf32>
    %cst_91 = arith.constant 1.000000e+00 : f32
    %173 = vector.broadcast %cst_91 : f32 to vector<8x32xf32>
    %174 = arith.addf %173, %172 : vector<8x32xf32>
    %175 = arith.divf %173, %174 : vector<8x32xf32>
    %c0_92 = arith.constant 0 : index
    %c0_93 = arith.constant 0 : index
    %176 = vector.load %arg8[%c0_92, %c0_93] : memref<8x32xf32, #tpu.memory_space<vmem>>, vector<8x32xf32>
    %177 = arith.mulf %167, %176 : vector<8x32xf32>
    %178 = arith.mulf %161, %169 : vector<8x32xf32>
    %179 = arith.addf %177, %178 : vector<8x32xf32>
    %180 = math.tanh %179 : vector<8x32xf32>
    %181 = arith.mulf %175, %180 : vector<8x32xf32>
    %c0_94 = arith.constant 0 : index
    %c0_95 = arith.constant 0 : index
    %182 = vector.load %arg8[%c0_94, %c0_95] : memref<8x32xf32, #tpu.memory_space<vmem>>, vector<8x32xf32>
    tpu.vector_store %arg8[%c0_94, %c0_95], %179 {strides = array<i32>} : memref<8x32xf32, #tpu.memory_space<vmem>>, vector<8x32xf32>,
    %c0_96 = arith.constant 0 : index
    %c0_97 = arith.constant 0 : index
    %183 = vector.load %arg7[%c0_96, %c0_97] : memref<8x32xf32, #tpu.memory_space<vmem>>, vector<8x32xf32>
    tpu.vector_store %arg7[%c0_96, %c0_97], %181 {strides = array<i32>} : memref<8x32xf32, #tpu.memory_space<vmem>>, vector<8x32xf32>,
    %c0_98 = arith.constant 0 : index
    %184 = arith.index_cast %146 : i32 to index
    %c0_99 = arith.constant 0 : index
    %c0_100 = arith.constant 0 : index
    %185 = vector.load %arg5[%c0_98, %184, %c0_99, %c0_100] : memref<1x8x8x32xf32, #tpu.memory_space<vmem>>, vector<1x1x8x32xf32>
    %186 = vector.shape_cast %185 : vector<1x1x8x32xf32> to vector<8x32xf32>
    %187 = vector.shape_cast %181 : vector<8x32xf32> to vector<1x1x8x32xf32>
    tpu.vector_store %arg5[%c0_98, %184, %c0_99, %c0_100], %187 {strides = array<i32>} : memref<1x8x8x32xf32, #tpu.memory_space<vmem>>, vector<1x1x8x32xf32>,
    %c4_i32 = arith.constant 4 : i32
    %c7_i32_101 = arith.constant 7 : i32
    %188 = arith.subi %c7_i32_101, %c4_i32 : i32
    %189 = arith.select %15, %188, %c4_i32 : i32
    %190 = arith.index_cast %189 : i32 to index
    %c0_102 = arith.constant 0 : index
    %c0_103 = arith.constant 0 : index
    %191 = vector.load %arg6[%190, %c0_102, %c0_103] : memref<8x8x128xf32, #tpu.memory_space<vmem>>, vector<1x8x128xf32>
    %192 = vector.shape_cast %191 : vector<1x8x128xf32> to vector<8x128xf32>
    %c0_104 = arith.constant 0 : index
    %c0_105 = arith.constant 0 : index
    %193 = vector.load %arg7[%c0_104, %c0_105] : memref<8x32xf32, #tpu.memory_space<vmem>>, vector<8x32xf32>
    %194 = arith.truncf %193 : vector<8x32xf32> to vector<8x32xbf16>
    %c0_106 = arith.constant 0 : index
    %c0_107 = arith.constant 0 : index
    %c0_108 = arith.constant 0 : index
    %195 = vector.load %arg3[%c0_106, %c0_107, %c0_108] : memref<1x32x128xbf16, #tpu.memory_space<vmem>>, vector<1x32x128xbf16>
    %196 = vector.shape_cast %195 : vector<1x32x128xbf16> to vector<32x128xbf16>
    %cst_109 = arith.constant dense<0.000000e+00> : vector<8x128xf32>
    %197 = tpu.matmul %194, %196, %cst_109 {dimension_numbers = #tpu.dot_dimension_numbers<[1], [0], [0], [1], [0, 0, 1, 1], [], []>} : vector<8x32xbf16>, vector<32x128xbf16>, vector<8x128xf32> -> vector<8x128xf32>
    %198 = arith.addf %192, %197 : vector<8x128xf32>
    %199 = vector.extract_strided_slice %198 {offsets = [0, 0], sizes = [8, 32], strides = [1, 1]} : vector<8x128xf32> to vector<8x32xf32>
    %200 = arith.negf %199 : vector<8x32xf32>
    %201 = math.exp %200 : vector<8x32xf32>
    %cst_110 = arith.constant 1.000000e+00 : f32
    %202 = vector.broadcast %cst_110 : f32 to vector<8x32xf32>
    %203 = arith.addf %202, %201 : vector<8x32xf32>
    %204 = arith.divf %202, %203 : vector<8x32xf32>
    %205 = vector.extract_strided_slice %198 {offsets = [0, 32], sizes = [8, 32], strides = [1, 1]} : vector<8x128xf32> to vector<8x32xf32>
    %206 = arith.negf %205 : vector<8x32xf32>
    %207 = math.exp %206 : vector<8x32xf32>
    %cst_111 = arith.constant 1.000000e+00 : f32
    %208 = vector.broadcast %cst_111 : f32 to vector<8x32xf32>
    %209 = arith.addf %208, %207 : vector<8x32xf32>
    %210 = arith.divf %208, %209 : vector<8x32xf32>
    %211 = vector.extract_strided_slice %198 {offsets = [0, 64], sizes = [8, 32], strides = [1, 1]} : vector<8x128xf32> to vector<8x32xf32>
    %212 = math.tanh %211 : vector<8x32xf32>
    %213 = vector.extract_strided_slice %198 {offsets = [0, 96], sizes = [8, 32], strides = [1, 1]} : vector<8x128xf32> to vector<8x32xf32>
    %214 = arith.negf %213 : vector<8x32xf32>
    %215 = math.exp %214 : vector<8x32xf32>
    %cst_112 = arith.constant 1.000000e+00 : f32
    %216 = vector.broadcast %cst_112 : f32 to vector<8x32xf32>
    %217 = arith.addf %216, %215 : vector<8x32xf32>
    %218 = arith.divf %216, %217 : vector<8x32xf32>
    %c0_113 = arith.constant 0 : index
    %c0_114 = arith.constant 0 : index
    %219 = vector.load %arg8[%c0_113, %c0_114] : memref<8x32xf32, #tpu.memory_space<vmem>>, vector<8x32xf32>
    %220 = arith.mulf %210, %219 : vector<8x32xf32>
    %221 = arith.mulf %204, %212 : vector<8x32xf32>
    %222 = arith.addf %220, %221 : vector<8x32xf32>
    %223 = math.tanh %222 : vector<8x32xf32>
    %224 = arith.mulf %218, %223 : vector<8x32xf32>
    %c0_115 = arith.constant 0 : index
    %c0_116 = arith.constant 0 : index
    %225 = vector.load %arg8[%c0_115, %c0_116] : memref<8x32xf32, #tpu.memory_space<vmem>>, vector<8x32xf32>
    tpu.vector_store %arg8[%c0_115, %c0_116], %222 {strides = array<i32>} : memref<8x32xf32, #tpu.memory_space<vmem>>, vector<8x32xf32>,
    %c0_117 = arith.constant 0 : index
    %c0_118 = arith.constant 0 : index
    %226 = vector.load %arg7[%c0_117, %c0_118] : memref<8x32xf32, #tpu.memory_space<vmem>>, vector<8x32xf32>
    tpu.vector_store %arg7[%c0_117, %c0_118], %224 {strides = array<i32>} : memref<8x32xf32, #tpu.memory_space<vmem>>, vector<8x32xf32>,
    %c0_119 = arith.constant 0 : index
    %227 = arith.index_cast %189 : i32 to index
    %c0_120 = arith.constant 0 : index
    %c0_121 = arith.constant 0 : index
    %228 = vector.load %arg5[%c0_119, %227, %c0_120, %c0_121] : memref<1x8x8x32xf32, #tpu.memory_space<vmem>>, vector<1x1x8x32xf32>
    %229 = vector.shape_cast %228 : vector<1x1x8x32xf32> to vector<8x32xf32>
    %230 = vector.shape_cast %224 : vector<8x32xf32> to vector<1x1x8x32xf32>
    tpu.vector_store %arg5[%c0_119, %227, %c0_120, %c0_121], %230 {strides = array<i32>} : memref<1x8x8x32xf32, #tpu.memory_space<vmem>>, vector<1x1x8x32xf32>,
    %c5_i32 = arith.constant 5 : i32
    %c7_i32_122 = arith.constant 7 : i32
    %231 = arith.subi %c7_i32_122, %c5_i32 : i32
    %232 = arith.select %15, %231, %c5_i32 : i32
    %233 = arith.index_cast %232 : i32 to index
    %c0_123 = arith.constant 0 : index
    %c0_124 = arith.constant 0 : index
    %234 = vector.load %arg6[%233, %c0_123, %c0_124] : memref<8x8x128xf32, #tpu.memory_space<vmem>>, vector<1x8x128xf32>
    %235 = vector.shape_cast %234 : vector<1x8x128xf32> to vector<8x128xf32>
    %c0_125 = arith.constant 0 : index
    %c0_126 = arith.constant 0 : index
    %236 = vector.load %arg7[%c0_125, %c0_126] : memref<8x32xf32, #tpu.memory_space<vmem>>, vector<8x32xf32>
    %237 = arith.truncf %236 : vector<8x32xf32> to vector<8x32xbf16>
    %c0_127 = arith.constant 0 : index
    %c0_128 = arith.constant 0 : index
    %c0_129 = arith.constant 0 : index
    %238 = vector.load %arg3[%c0_127, %c0_128, %c0_129] : memref<1x32x128xbf16, #tpu.memory_space<vmem>>, vector<1x32x128xbf16>
    %239 = vector.shape_cast %238 : vector<1x32x128xbf16> to vector<32x128xbf16>
    %cst_130 = arith.constant dense<0.000000e+00> : vector<8x128xf32>
    %240 = tpu.matmul %237, %239, %cst_130 {dimension_numbers = #tpu.dot_dimension_numbers<[1], [0], [0], [1], [0, 0, 1, 1], [], []>} : vector<8x32xbf16>, vector<32x128xbf16>, vector<8x128xf32> -> vector<8x128xf32>
    %241 = arith.addf %235, %240 : vector<8x128xf32>
    %242 = vector.extract_strided_slice %241 {offsets = [0, 0], sizes = [8, 32], strides = [1, 1]} : vector<8x128xf32> to vector<8x32xf32>
    %243 = arith.negf %242 : vector<8x32xf32>
    %244 = math.exp %243 : vector<8x32xf32>
    %cst_131 = arith.constant 1.000000e+00 : f32
    %245 = vector.broadcast %cst_131 : f32 to vector<8x32xf32>
    %246 = arith.addf %245, %244 : vector<8x32xf32>
    %247 = arith.divf %245, %246 : vector<8x32xf32>
    %248 = vector.extract_strided_slice %241 {offsets = [0, 32], sizes = [8, 32], strides = [1, 1]} : vector<8x128xf32> to vector<8x32xf32>
    %249 = arith.negf %248 : vector<8x32xf32>
    %250 = math.exp %249 : vector<8x32xf32>
    %cst_132 = arith.constant 1.000000e+00 : f32
    %251 = vector.broadcast %cst_132 : f32 to vector<8x32xf32>
    %252 = arith.addf %251, %250 : vector<8x32xf32>
    %253 = arith.divf %251, %252 : vector<8x32xf32>
    %254 = vector.extract_strided_slice %241 {offsets = [0, 64], sizes = [8, 32], strides = [1, 1]} : vector<8x128xf32> to vector<8x32xf32>
    %255 = math.tanh %254 : vector<8x32xf32>
    %256 = vector.extract_strided_slice %241 {offsets = [0, 96], sizes = [8, 32], strides = [1, 1]} : vector<8x128xf32> to vector<8x32xf32>
    %257 = arith.negf %256 : vector<8x32xf32>
    %258 = math.exp %257 : vector<8x32xf32>
    %cst_133 = arith.constant 1.000000e+00 : f32
    %259 = vector.broadcast %cst_133 : f32 to vector<8x32xf32>
    %260 = arith.addf %259, %258 : vector<8x32xf32>
    %261 = arith.divf %259, %260 : vector<8x32xf32>
    %c0_134 = arith.constant 0 : index
    %c0_135 = arith.constant 0 : index
    %262 = vector.load %arg8[%c0_134, %c0_135] : memref<8x32xf32, #tpu.memory_space<vmem>>, vector<8x32xf32>
    %263 = arith.mulf %253, %262 : vector<8x32xf32>
    %264 = arith.mulf %247, %255 : vector<8x32xf32>
    %265 = arith.addf %263, %264 : vector<8x32xf32>
    %266 = math.tanh %265 : vector<8x32xf32>
    %267 = arith.mulf %261, %266 : vector<8x32xf32>
    %c0_136 = arith.constant 0 : index
    %c0_137 = arith.constant 0 : index
    %268 = vector.load %arg8[%c0_136, %c0_137] : memref<8x32xf32, #tpu.memory_space<vmem>>, vector<8x32xf32>
    tpu.vector_store %arg8[%c0_136, %c0_137], %265 {strides = array<i32>} : memref<8x32xf32, #tpu.memory_space<vmem>>, vector<8x32xf32>,
    %c0_138 = arith.constant 0 : index
    %c0_139 = arith.constant 0 : index
    %269 = vector.load %arg7[%c0_138, %c0_139] : memref<8x32xf32, #tpu.memory_space<vmem>>, vector<8x32xf32>
    tpu.vector_store %arg7[%c0_138, %c0_139], %267 {strides = array<i32>} : memref<8x32xf32, #tpu.memory_space<vmem>>, vector<8x32xf32>,
    %c0_140 = arith.constant 0 : index
    %270 = arith.index_cast %232 : i32 to index
    %c0_141 = arith.constant 0 : index
    %c0_142 = arith.constant 0 : index
    %271 = vector.load %arg5[%c0_140, %270, %c0_141, %c0_142] : memref<1x8x8x32xf32, #tpu.memory_space<vmem>>, vector<1x1x8x32xf32>
    %272 = vector.shape_cast %271 : vector<1x1x8x32xf32> to vector<8x32xf32>
    %273 = vector.shape_cast %267 : vector<8x32xf32> to vector<1x1x8x32xf32>
    tpu.vector_store %arg5[%c0_140, %270, %c0_141, %c0_142], %273 {strides = array<i32>} : memref<1x8x8x32xf32, #tpu.memory_space<vmem>>, vector<1x1x8x32xf32>,
    %c6_i32 = arith.constant 6 : i32
    %c7_i32_143 = arith.constant 7 : i32
    %274 = arith.subi %c7_i32_143, %c6_i32 : i32
    %275 = arith.select %15, %274, %c6_i32 : i32
    %276 = arith.index_cast %275 : i32 to index
    %c0_144 = arith.constant 0 : index
    %c0_145 = arith.constant 0 : index
    %277 = vector.load %arg6[%276, %c0_144, %c0_145] : memref<8x8x128xf32, #tpu.memory_space<vmem>>, vector<1x8x128xf32>
    %278 = vector.shape_cast %277 : vector<1x8x128xf32> to vector<8x128xf32>
    %c0_146 = arith.constant 0 : index
    %c0_147 = arith.constant 0 : index
    %279 = vector.load %arg7[%c0_146, %c0_147] : memref<8x32xf32, #tpu.memory_space<vmem>>, vector<8x32xf32>
    %280 = arith.truncf %279 : vector<8x32xf32> to vector<8x32xbf16>
    %c0_148 = arith.constant 0 : index
    %c0_149 = arith.constant 0 : index
    %c0_150 = arith.constant 0 : index
    %281 = vector.load %arg3[%c0_148, %c0_149, %c0_150] : memref<1x32x128xbf16, #tpu.memory_space<vmem>>, vector<1x32x128xbf16>
    %282 = vector.shape_cast %281 : vector<1x32x128xbf16> to vector<32x128xbf16>
    %cst_151 = arith.constant dense<0.000000e+00> : vector<8x128xf32>
    %283 = tpu.matmul %280, %282, %cst_151 {dimension_numbers = #tpu.dot_dimension_numbers<[1], [0], [0], [1], [0, 0, 1, 1], [], []>} : vector<8x32xbf16>, vector<32x128xbf16>, vector<8x128xf32> -> vector<8x128xf32>
    %284 = arith.addf %278, %283 : vector<8x128xf32>
    %285 = vector.extract_strided_slice %284 {offsets = [0, 0], sizes = [8, 32], strides = [1, 1]} : vector<8x128xf32> to vector<8x32xf32>
    %286 = arith.negf %285 : vector<8x32xf32>
    %287 = math.exp %286 : vector<8x32xf32>
    %cst_152 = arith.constant 1.000000e+00 : f32
    %288 = vector.broadcast %cst_152 : f32 to vector<8x32xf32>
    %289 = arith.addf %288, %287 : vector<8x32xf32>
    %290 = arith.divf %288, %289 : vector<8x32xf32>
    %291 = vector.extract_strided_slice %284 {offsets = [0, 32], sizes = [8, 32], strides = [1, 1]} : vector<8x128xf32> to vector<8x32xf32>
    %292 = arith.negf %291 : vector<8x32xf32>
    %293 = math.exp %292 : vector<8x32xf32>
    %cst_153 = arith.constant 1.000000e+00 : f32
    %294 = vector.broadcast %cst_153 : f32 to vector<8x32xf32>
    %295 = arith.addf %294, %293 : vector<8x32xf32>
    %296 = arith.divf %294, %295 : vector<8x32xf32>
    %297 = vector.extract_strided_slice %284 {offsets = [0, 64], sizes = [8, 32], strides = [1, 1]} : vector<8x128xf32> to vector<8x32xf32>
    %298 = math.tanh %297 : vector<8x32xf32>
    %299 = vector.extract_strided_slice %284 {offsets = [0, 96], sizes = [8, 32], strides = [1, 1]} : vector<8x128xf32> to vector<8x32xf32>
    %300 = arith.negf %299 : vector<8x32xf32>
    %301 = math.exp %300 : vector<8x32xf32>
    %cst_154 = arith.constant 1.000000e+00 : f32
    %302 = vector.broadcast %cst_154 : f32 to vector<8x32xf32>
    %303 = arith.addf %302, %301 : vector<8x32xf32>
    %304 = arith.divf %302, %303 : vector<8x32xf32>
    %c0_155 = arith.constant 0 : index
    %c0_156 = arith.constant 0 : index
    %305 = vector.load %arg8[%c0_155, %c0_156] : memref<8x32xf32, #tpu.memory_space<vmem>>, vector<8x32xf32>
    %306 = arith.mulf %296, %305 : vector<8x32xf32>
    %307 = arith.mulf %290, %298 : vector<8x32xf32>
    %308 = arith.addf %306, %307 : vector<8x32xf32>
    %309 = math.tanh %308 : vector<8x32xf32>
    %310 = arith.mulf %304, %309 : vector<8x32xf32>
    %c0_157 = arith.constant 0 : index
    %c0_158 = arith.constant 0 : index
    %311 = vector.load %arg8[%c0_157, %c0_158] : memref<8x32xf32, #tpu.memory_space<vmem>>, vector<8x32xf32>
    tpu.vector_store %arg8[%c0_157, %c0_158], %308 {strides = array<i32>} : memref<8x32xf32, #tpu.memory_space<vmem>>, vector<8x32xf32>,
    %c0_159 = arith.constant 0 : index
    %c0_160 = arith.constant 0 : index
    %312 = vector.load %arg7[%c0_159, %c0_160] : memref<8x32xf32, #tpu.memory_space<vmem>>, vector<8x32xf32>
    tpu.vector_store %arg7[%c0_159, %c0_160], %310 {strides = array<i32>} : memref<8x32xf32, #tpu.memory_space<vmem>>, vector<8x32xf32>,
    %c0_161 = arith.constant 0 : index
    %313 = arith.index_cast %275 : i32 to index
    %c0_162 = arith.constant 0 : index
    %c0_163 = arith.constant 0 : index
    %314 = vector.load %arg5[%c0_161, %313, %c0_162, %c0_163] : memref<1x8x8x32xf32, #tpu.memory_space<vmem>>, vector<1x1x8x32xf32>
    %315 = vector.shape_cast %314 : vector<1x1x8x32xf32> to vector<8x32xf32>
    %316 = vector.shape_cast %310 : vector<8x32xf32> to vector<1x1x8x32xf32>
    tpu.vector_store %arg5[%c0_161, %313, %c0_162, %c0_163], %316 {strides = array<i32>} : memref<1x8x8x32xf32, #tpu.memory_space<vmem>>, vector<1x1x8x32xf32>,
    %c7_i32_164 = arith.constant 7 : i32
    %c7_i32_165 = arith.constant 7 : i32
    %317 = arith.subi %c7_i32_165, %c7_i32_164 : i32
    %318 = arith.select %15, %317, %c7_i32_164 : i32
    %319 = arith.index_cast %318 : i32 to index
    %c0_166 = arith.constant 0 : index
    %c0_167 = arith.constant 0 : index
    %320 = vector.load %arg6[%319, %c0_166, %c0_167] : memref<8x8x128xf32, #tpu.memory_space<vmem>>, vector<1x8x128xf32>
    %321 = vector.shape_cast %320 : vector<1x8x128xf32> to vector<8x128xf32>
    %c0_168 = arith.constant 0 : index
    %c0_169 = arith.constant 0 : index
    %322 = vector.load %arg7[%c0_168, %c0_169] : memref<8x32xf32, #tpu.memory_space<vmem>>, vector<8x32xf32>
    %323 = arith.truncf %322 : vector<8x32xf32> to vector<8x32xbf16>
    %c0_170 = arith.constant 0 : index
    %c0_171 = arith.constant 0 : index
    %c0_172 = arith.constant 0 : index
    %324 = vector.load %arg3[%c0_170, %c0_171, %c0_172] : memref<1x32x128xbf16, #tpu.memory_space<vmem>>, vector<1x32x128xbf16>
    %325 = vector.shape_cast %324 : vector<1x32x128xbf16> to vector<32x128xbf16>
    %cst_173 = arith.constant dense<0.000000e+00> : vector<8x128xf32>
    %326 = tpu.matmul %323, %325, %cst_173 {dimension_numbers = #tpu.dot_dimension_numbers<[1], [0], [0], [1], [0, 0, 1, 1], [], []>} : vector<8x32xbf16>, vector<32x128xbf16>, vector<8x128xf32> -> vector<8x128xf32>
    %327 = arith.addf %321, %326 : vector<8x128xf32>
    %328 = vector.extract_strided_slice %327 {offsets = [0, 0], sizes = [8, 32], strides = [1, 1]} : vector<8x128xf32> to vector<8x32xf32>
    %329 = arith.negf %328 : vector<8x32xf32>
    %330 = math.exp %329 : vector<8x32xf32>
    %cst_174 = arith.constant 1.000000e+00 : f32
    %331 = vector.broadcast %cst_174 : f32 to vector<8x32xf32>
    %332 = arith.addf %331, %330 : vector<8x32xf32>
    %333 = arith.divf %331, %332 : vector<8x32xf32>
    %334 = vector.extract_strided_slice %327 {offsets = [0, 32], sizes = [8, 32], strides = [1, 1]} : vector<8x128xf32> to vector<8x32xf32>
    %335 = arith.negf %334 : vector<8x32xf32>
    %336 = math.exp %335 : vector<8x32xf32>
    %cst_175 = arith.constant 1.000000e+00 : f32
    %337 = vector.broadcast %cst_175 : f32 to vector<8x32xf32>
    %338 = arith.addf %337, %336 : vector<8x32xf32>
    %339 = arith.divf %337, %338 : vector<8x32xf32>
    %340 = vector.extract_strided_slice %327 {offsets = [0, 64], sizes = [8, 32], strides = [1, 1]} : vector<8x128xf32> to vector<8x32xf32>
    %341 = math.tanh %340 : vector<8x32xf32>
    %342 = vector.extract_strided_slice %327 {offsets = [0, 96], sizes = [8, 32], strides = [1, 1]} : vector<8x128xf32> to vector<8x32xf32>
    %343 = arith.negf %342 : vector<8x32xf32>
    %344 = math.exp %343 : vector<8x32xf32>
    %cst_176 = arith.constant 1.000000e+00 : f32
    %345 = vector.broadcast %cst_176 : f32 to vector<8x32xf32>
    %346 = arith.addf %345, %344 : vector<8x32xf32>
    %347 = arith.divf %345, %346 : vector<8x32xf32>
    %c0_177 = arith.constant 0 : index
    %c0_178 = arith.constant 0 : index
    %348 = vector.load %arg8[%c0_177, %c0_178] : memref<8x32xf32, #tpu.memory_space<vmem>>, vector<8x32xf32>
    %349 = arith.mulf %339, %348 : vector<8x32xf32>
    %350 = arith.mulf %333, %341 : vector<8x32xf32>
    %351 = arith.addf %349, %350 : vector<8x32xf32>
    %352 = math.tanh %351 : vector<8x32xf32>
    %353 = arith.mulf %347, %352 : vector<8x32xf32>
    %c0_179 = arith.constant 0 : index
    %c0_180 = arith.constant 0 : index
    %354 = vector.load %arg8[%c0_179, %c0_180] : memref<8x32xf32, #tpu.memory_space<vmem>>, vector<8x32xf32>
    tpu.vector_store %arg8[%c0_179, %c0_180], %351 {strides = array<i32>} : memref<8x32xf32, #tpu.memory_space<vmem>>, vector<8x32xf32>,
    %c0_181 = arith.constant 0 : index
    %c0_182 = arith.constant 0 : index
    %355 = vector.load %arg7[%c0_181, %c0_182] : memref<8x32xf32, #tpu.memory_space<vmem>>, vector<8x32xf32>
    tpu.vector_store %arg7[%c0_181, %c0_182], %353 {strides = array<i32>} : memref<8x32xf32, #tpu.memory_space<vmem>>, vector<8x32xf32>,
    %c0_183 = arith.constant 0 : index
    %356 = arith.index_cast %318 : i32 to index
    %c0_184 = arith.constant 0 : index
    %c0_185 = arith.constant 0 : index
    %357 = vector.load %arg5[%c0_183, %356, %c0_184, %c0_185] : memref<1x8x8x32xf32, #tpu.memory_space<vmem>>, vector<1x1x8x32xf32>
    %358 = vector.shape_cast %357 : vector<1x1x8x32xf32> to vector<8x32xf32>
    %359 = vector.shape_cast %353 : vector<8x32xf32> to vector<1x1x8x32xf32>
    tpu.vector_store %arg5[%c0_183, %356, %c0_184, %c0_185], %359 {strides = array<i32>} : memref<1x8x8x32xf32, #tpu.memory_space<vmem>>, vector<1x1x8x32xf32>,
    %c8_i32 = arith.constant 8 : i32
    return
  }
  func.func @transform_0(%arg0: i32) -> (i32, i32, i32) {
    %c0_i32 = arith.constant 0 : i32
    %c0_i32_0 = arith.constant 0 : i32
    %c0_i32_1 = arith.constant 0 : i32
    %c0_i32_2 = arith.constant 0 : i32
    return %c0_i32, %c0_i32_0, %c0_i32_1 : i32, i32, i32
  }
  func.func @transform_1(%arg0: i32) -> (i32, i32, i32) {
    %c0_i32 = arith.constant 0 : i32
    %c0_i32_0 = arith.constant 0 : i32
    %c0_i32_1 = arith.constant 0 : i32
    return %arg0, %c0_i32, %c0_i32_0 : i32, i32, i32
  }
  func.func @transform_2(%arg0: i32) -> (i32, i32, i32) {
    %c0_i32 = arith.constant 0 : i32
    %c0_i32_0 = arith.constant 0 : i32
    %c0_i32_1 = arith.constant 0 : i32
    return %arg0, %c0_i32, %c0_i32_0 : i32, i32, i32
  }
  func.func @transform_3(%arg0: i32) -> (i32, i32, i32) {
    %c0_i32 = arith.constant 0 : i32
    %c0_i32_0 = arith.constant 0 : i32
    %c0_i32_1 = arith.constant 0 : i32
    return %arg0, %c0_i32, %c0_i32_0 : i32, i32, i32
  }
  func.func @transform_4(%arg0: i32) -> (i32, i32, i32, i32) {
    %c0_i32 = arith.constant 0 : i32
    %c0_i32_0 = arith.constant 0 : i32
    %c0_i32_1 = arith.constant 0 : i32
    %c0_i32_2 = arith.constant 0 : i32
    return %arg0, %c0_i32, %c0_i32_0, %c0_i32_1 : i32, i32, i32, i32
  }
}

module attributes {stable_mosaic.version = 11 : i64} {
  func.func @_bilstm_layer_kernel(%arg0: i32, %arg1: memref<8x8x64xbf16, #tpu.memory_space<vmem>>, %arg2: memref<1x64x128xbf16, #tpu.memory_space<vmem>>, %arg3: memref<1x32x128xbf16, #tpu.memory_space<vmem>>, %arg4: memref<1x1x128xf32, #tpu.memory_space<vmem>>, %arg5: memref<1x8x8x32xf32, #tpu.memory_space<vmem>>, %arg6: memref<8x8x128xf32, #tpu.memory_space<vmem>>, %arg7: memref<8x32xf32, #tpu.memory_space<vmem>>, %arg8: memref<8x32xf32, #tpu.memory_space<vmem>>) attributes {dimension_semantics = [#tpu.dimension_semantics<parallel>], iteration_bounds = array<i64: 2>, scalar_prefetch = 0 : i64, scratch_operands = 3 : i64, tpu.core_type = #tpu.core_type<tc>, window_params = [{pipeline_mode = #tpu.pipeline_mode<synchronous>, transform_indices = @transform_0, window_bounds = array<i64: 8, 8, 64>}, {transform_indices = @transform_1, window_bounds = array<i64: 1, 64, 128>}, {transform_indices = @transform_2, window_bounds = array<i64: 1, 32, 128>}, {transform_indices = @transform_3, window_bounds = array<i64: 1, 1, 128>}, {transform_indices = @transform_4, window_bounds = array<i64: 1, 8, 8, 32>}]} {
    %c0 = arith.constant 0 : index
    %c0_0 = arith.constant 0 : index
    %c0_1 = arith.constant 0 : index
    %0 = vector.load %arg1[%c0, %c0_0, %c0_1] : memref<8x8x64xbf16, #tpu.memory_space<vmem>>, vector<8x8x64xbf16>
    %1 = vector.shape_cast %0 : vector<8x8x64xbf16> to vector<64x64xbf16>
    %c0_2 = arith.constant 0 : index
    %c0_3 = arith.constant 0 : index
    %c0_4 = arith.constant 0 : index
    %2 = vector.load %arg2[%c0_2, %c0_3, %c0_4] : memref<1x64x128xbf16, #tpu.memory_space<vmem>>, vector<1x64x128xbf16>
    %3 = vector.shape_cast %2 : vector<1x64x128xbf16> to vector<64x128xbf16>
    %cst = arith.constant dense<0.000000e+00> : vector<64x128xf32>
    %4 = tpu.matmul %1, %3, %cst {dimension_numbers = #tpu.dot_dimension_numbers<[1], [0], [0], [1], [0, 0, 1, 1], [], []>} : vector<64x64xbf16>, vector<64x128xbf16>, vector<64x128xf32> -> vector<64x128xf32>
    %c0_5 = arith.constant 0 : index
    %c0_6 = arith.constant 0 : index
    %c0_7 = arith.constant 0 : index
    %5 = vector.load %arg4[%c0_5, %c0_6, %c0_7] : memref<1x1x128xf32, #tpu.memory_space<vmem>>, vector<1x1x128xf32>
    %6 = vector.shape_cast %5 : vector<1x1x128xf32> to vector<1x128xf32>
    %7 = vector.broadcast %6 : vector<1x128xf32> to vector<64x128xf32>
    %8 = arith.addf %4, %7 : vector<64x128xf32>
    %9 = vector.shape_cast %8 : vector<64x128xf32> to vector<8x8x128xf32>
    %c0_8 = arith.constant 0 : index
    %c0_9 = arith.constant 0 : index
    %c0_10 = arith.constant 0 : index
    %10 = vector.load %arg6[%c0_8, %c0_9, %c0_10] : memref<8x8x128xf32, #tpu.memory_space<vmem>>, vector<8x8x128xf32>
    tpu.vector_store %arg6[%c0_8, %c0_9, %c0_10], %9 {strides = array<i32>} : memref<8x8x128xf32, #tpu.memory_space<vmem>>, vector<8x8x128xf32>,
    %cst_11 = arith.constant 0.000000e+00 : f32
    %11 = vector.broadcast %cst_11 : f32 to vector<8x32xf32>
    %c0_12 = arith.constant 0 : index
    %c0_13 = arith.constant 0 : index
    %12 = vector.load %arg7[%c0_12, %c0_13] : memref<8x32xf32, #tpu.memory_space<vmem>>, vector<8x32xf32>
    tpu.vector_store %arg7[%c0_12, %c0_13], %11 {strides = array<i32>} : memref<8x32xf32, #tpu.memory_space<vmem>>, vector<8x32xf32>,
    %cst_14 = arith.constant 0.000000e+00 : f32
    %13 = vector.broadcast %cst_14 : f32 to vector<8x32xf32>
    %c0_15 = arith.constant 0 : index
    %c0_16 = arith.constant 0 : index
    %14 = vector.load %arg8[%c0_15, %c0_16] : memref<8x32xf32, #tpu.memory_space<vmem>>, vector<8x32xf32>
    tpu.vector_store %arg8[%c0_15, %c0_16], %13 {strides = array<i32>} : memref<8x32xf32, #tpu.memory_space<vmem>>, vector<8x32xf32>,
    %c1_i32 = arith.constant 1 : i32
    %15 = arith.cmpi eq, %arg0, %c1_i32 : i32
    %c0_i32 = arith.constant 0 : i32
    %c7_i32 = arith.constant 7 : i32
    %16 = arith.subi %c7_i32, %c0_i32 : i32
    %17 = arith.select %15, %16, %c0_i32 : i32
    %18 = arith.index_cast %17 : i32 to index
    %c0_17 = arith.constant 0 : index
    %c0_18 = arith.constant 0 : index
    %19 = vector.load %arg6[%18, %c0_17, %c0_18] : memref<8x8x128xf32, #tpu.memory_space<vmem>>, vector<1x8x128xf32>
    %20 = vector.shape_cast %19 : vector<1x8x128xf32> to vector<8x128xf32>
    %c0_19 = arith.constant 0 : index
    %c0_20 = arith.constant 0 : index
    %21 = vector.load %arg7[%c0_19, %c0_20] : memref<8x32xf32, #tpu.memory_space<vmem>>, vector<8x32xf32>
    %22 = arith.truncf %21 : vector<8x32xf32> to vector<8x32xbf16>
    %c0_21 = arith.constant 0 : index
    %c0_22 = arith.constant 0 : index
    %c0_23 = arith.constant 0 : index
    %23 = vector.load %arg3[%c0_21, %c0_22, %c0_23] : memref<1x32x128xbf16, #tpu.memory_space<vmem>>, vector<1x32x128xbf16>
    %24 = vector.shape_cast %23 : vector<1x32x128xbf16> to vector<32x128xbf16>
    %cst_24 = arith.constant dense<0.000000e+00> : vector<8x128xf32>
    %25 = tpu.matmul %22, %24, %cst_24 {dimension_numbers = #tpu.dot_dimension_numbers<[1], [0], [0], [1], [0, 0, 1, 1], [], []>} : vector<8x32xbf16>, vector<32x128xbf16>, vector<8x128xf32> -> vector<8x128xf32>
    %26 = arith.addf %20, %25 : vector<8x128xf32>
    %27 = vector.extract_strided_slice %26 {offsets = [0, 0], sizes = [8, 32], strides = [1, 1]} : vector<8x128xf32> to vector<8x32xf32>
    %28 = arith.negf %27 : vector<8x32xf32>
    %29 = math.exp %28 : vector<8x32xf32>
    %cst_25 = arith.constant 1.000000e+00 : f32
    %30 = vector.broadcast %cst_25 : f32 to vector<8x32xf32>
    %31 = arith.addf %30, %29 : vector<8x32xf32>
    %32 = arith.divf %30, %31 : vector<8x32xf32>
    %33 = vector.extract_strided_slice %26 {offsets = [0, 32], sizes = [8, 32], strides = [1, 1]} : vector<8x128xf32> to vector<8x32xf32>
    %34 = arith.negf %33 : vector<8x32xf32>
    %35 = math.exp %34 : vector<8x32xf32>
    %cst_26 = arith.constant 1.000000e+00 : f32
    %36 = vector.broadcast %cst_26 : f32 to vector<8x32xf32>
    %37 = arith.addf %36, %35 : vector<8x32xf32>
    %38 = arith.divf %36, %37 : vector<8x32xf32>
    %39 = vector.extract_strided_slice %26 {offsets = [0, 64], sizes = [8, 32], strides = [1, 1]} : vector<8x128xf32> to vector<8x32xf32>
    %40 = math.tanh %39 : vector<8x32xf32>
    %41 = vector.extract_strided_slice %26 {offsets = [0, 96], sizes = [8, 32], strides = [1, 1]} : vector<8x128xf32> to vector<8x32xf32>
    %42 = arith.negf %41 : vector<8x32xf32>
    %43 = math.exp %42 : vector<8x32xf32>
    %cst_27 = arith.constant 1.000000e+00 : f32
    %44 = vector.broadcast %cst_27 : f32 to vector<8x32xf32>
    %45 = arith.addf %44, %43 : vector<8x32xf32>
    %46 = arith.divf %44, %45 : vector<8x32xf32>
    %c0_28 = arith.constant 0 : index
    %c0_29 = arith.constant 0 : index
    %47 = vector.load %arg8[%c0_28, %c0_29] : memref<8x32xf32, #tpu.memory_space<vmem>>, vector<8x32xf32>
    %48 = arith.mulf %38, %47 : vector<8x32xf32>
    %49 = arith.mulf %32, %40 : vector<8x32xf32>
    %50 = arith.addf %48, %49 : vector<8x32xf32>
    %51 = math.tanh %50 : vector<8x32xf32>
    %52 = arith.mulf %46, %51 : vector<8x32xf32>
    %c0_30 = arith.constant 0 : index
    %c0_31 = arith.constant 0 : index
    %53 = vector.load %arg8[%c0_30, %c0_31] : memref<8x32xf32, #tpu.memory_space<vmem>>, vector<8x32xf32>
    tpu.vector_store %arg8[%c0_30, %c0_31], %50 {strides = array<i32>} : memref<8x32xf32, #tpu.memory_space<vmem>>, vector<8x32xf32>,
    %c0_32 = arith.constant 0 : index
    %c0_33 = arith.constant 0 : index
    %54 = vector.load %arg7[%c0_32, %c0_33] : memref<8x32xf32, #tpu.memory_space<vmem>>, vector<8x32xf32>
    tpu.vector_store %arg7[%c0_32, %c0_33], %52 {strides = array<i32>} : memref<8x32xf32, #tpu.memory_space<vmem>>, vector<8x32xf32>,
    %c0_34 = arith.constant 0 : index
    %55 = arith.index_cast %17 : i32 to index
    %c0_35 = arith.constant 0 : index
    %c0_36 = arith.constant 0 : index
    %56 = vector.load %arg5[%c0_34, %55, %c0_35, %c0_36] : memref<1x8x8x32xf32, #tpu.memory_space<vmem>>, vector<1x1x8x32xf32>
    %57 = vector.shape_cast %56 : vector<1x1x8x32xf32> to vector<8x32xf32>
    %58 = vector.shape_cast %52 : vector<8x32xf32> to vector<1x1x8x32xf32>
    tpu.vector_store %arg5[%c0_34, %55, %c0_35, %c0_36], %58 {strides = array<i32>} : memref<1x8x8x32xf32, #tpu.memory_space<vmem>>, vector<1x1x8x32xf32>,
    %c1_i32_37 = arith.constant 1 : i32
    %c7_i32_38 = arith.constant 7 : i32
    %59 = arith.subi %c7_i32_38, %c1_i32_37 : i32
    %60 = arith.select %15, %59, %c1_i32_37 : i32
    %61 = arith.index_cast %60 : i32 to index
    %c0_39 = arith.constant 0 : index
    %c0_40 = arith.constant 0 : index
    %62 = vector.load %arg6[%61, %c0_39, %c0_40] : memref<8x8x128xf32, #tpu.memory_space<vmem>>, vector<1x8x128xf32>
    %63 = vector.shape_cast %62 : vector<1x8x128xf32> to vector<8x128xf32>
    %c0_41 = arith.constant 0 : index
    %c0_42 = arith.constant 0 : index
    %64 = vector.load %arg7[%c0_41, %c0_42] : memref<8x32xf32, #tpu.memory_space<vmem>>, vector<8x32xf32>
    %65 = arith.truncf %64 : vector<8x32xf32> to vector<8x32xbf16>
    %c0_43 = arith.constant 0 : index
    %c0_44 = arith.constant 0 : index
    %c0_45 = arith.constant 0 : index
    %66 = vector.load %arg3[%c0_43, %c0_44, %c0_45] : memref<1x32x128xbf16, #tpu.memory_space<vmem>>, vector<1x32x128xbf16>
    %67 = vector.shape_cast %66 : vector<1x32x128xbf16> to vector<32x128xbf16>
    %cst_46 = arith.constant dense<0.000000e+00> : vector<8x128xf32>
    %68 = tpu.matmul %65, %67, %cst_46 {dimension_numbers = #tpu.dot_dimension_numbers<[1], [0], [0], [1], [0, 0, 1, 1], [], []>} : vector<8x32xbf16>, vector<32x128xbf16>, vector<8x128xf32> -> vector<8x128xf32>
    %69 = arith.addf %63, %68 : vector<8x128xf32>
    %70 = vector.extract_strided_slice %69 {offsets = [0, 0], sizes = [8, 32], strides = [1, 1]} : vector<8x128xf32> to vector<8x32xf32>
    %71 = arith.negf %70 : vector<8x32xf32>
    %72 = math.exp %71 : vector<8x32xf32>
    %cst_47 = arith.constant 1.000000e+00 : f32
    %73 = vector.broadcast %cst_47 : f32 to vector<8x32xf32>
    %74 = arith.addf %73, %72 : vector<8x32xf32>
    %75 = arith.divf %73, %74 : vector<8x32xf32>
    %76 = vector.extract_strided_slice %69 {offsets = [0, 32], sizes = [8, 32], strides = [1, 1]} : vector<8x128xf32> to vector<8x32xf32>
    %77 = arith.negf %76 : vector<8x32xf32>
    %78 = math.exp %77 : vector<8x32xf32>
    %cst_48 = arith.constant 1.000000e+00 : f32
    %79 = vector.broadcast %cst_48 : f32 to vector<8x32xf32>
    %80 = arith.addf %79, %78 : vector<8x32xf32>
    %81 = arith.divf %79, %80 : vector<8x32xf32>
    %82 = vector.extract_strided_slice %69 {offsets = [0, 64], sizes = [8, 32], strides = [1, 1]} : vector<8x128xf32> to vector<8x32xf32>
    %83 = math.tanh %82 : vector<8x32xf32>
    %84 = vector.extract_strided_slice %69 {offsets = [0, 96], sizes = [8, 32], strides = [1, 1]} : vector<8x128xf32> to vector<8x32xf32>
    %85 = arith.negf %84 : vector<8x32xf32>
    %86 = math.exp %85 : vector<8x32xf32>
    %cst_49 = arith.constant 1.000000e+00 : f32
    %87 = vector.broadcast %cst_49 : f32 to vector<8x32xf32>
    %88 = arith.addf %87, %86 : vector<8x32xf32>
    %89 = arith.divf %87, %88 : vector<8x32xf32>
    %c0_50 = arith.constant 0 : index
    %c0_51 = arith.constant 0 : index
    %90 = vector.load %arg8[%c0_50, %c0_51] : memref<8x32xf32, #tpu.memory_space<vmem>>, vector<8x32xf32>
    %91 = arith.mulf %81, %90 : vector<8x32xf32>
    %92 = arith.mulf %75, %83 : vector<8x32xf32>
    %93 = arith.addf %91, %92 : vector<8x32xf32>
    %94 = math.tanh %93 : vector<8x32xf32>
    %95 = arith.mulf %89, %94 : vector<8x32xf32>
    %c0_52 = arith.constant 0 : index
    %c0_53 = arith.constant 0 : index
    %96 = vector.load %arg8[%c0_52, %c0_53] : memref<8x32xf32, #tpu.memory_space<vmem>>, vector<8x32xf32>
    tpu.vector_store %arg8[%c0_52, %c0_53], %93 {strides = array<i32>} : memref<8x32xf32, #tpu.memory_space<vmem>>, vector<8x32xf32>,
    %c0_54 = arith.constant 0 : index
    %c0_55 = arith.constant 0 : index
    %97 = vector.load %arg7[%c0_54, %c0_55] : memref<8x32xf32, #tpu.memory_space<vmem>>, vector<8x32xf32>
    tpu.vector_store %arg7[%c0_54, %c0_55], %95 {strides = array<i32>} : memref<8x32xf32, #tpu.memory_space<vmem>>, vector<8x32xf32>,
    %c0_56 = arith.constant 0 : index
    %98 = arith.index_cast %60 : i32 to index
    %c0_57 = arith.constant 0 : index
    %c0_58 = arith.constant 0 : index
    %99 = vector.load %arg5[%c0_56, %98, %c0_57, %c0_58] : memref<1x8x8x32xf32, #tpu.memory_space<vmem>>, vector<1x1x8x32xf32>
    %100 = vector.shape_cast %99 : vector<1x1x8x32xf32> to vector<8x32xf32>
    %101 = vector.shape_cast %95 : vector<8x32xf32> to vector<1x1x8x32xf32>
    tpu.vector_store %arg5[%c0_56, %98, %c0_57, %c0_58], %101 {strides = array<i32>} : memref<1x8x8x32xf32, #tpu.memory_space<vmem>>, vector<1x1x8x32xf32>,
    %c2_i32 = arith.constant 2 : i32
    %c7_i32_59 = arith.constant 7 : i32
    %102 = arith.subi %c7_i32_59, %c2_i32 : i32
    %103 = arith.select %15, %102, %c2_i32 : i32
    %104 = arith.index_cast %103 : i32 to index
    %c0_60 = arith.constant 0 : index
    %c0_61 = arith.constant 0 : index
    %105 = vector.load %arg6[%104, %c0_60, %c0_61] : memref<8x8x128xf32, #tpu.memory_space<vmem>>, vector<1x8x128xf32>
    %106 = vector.shape_cast %105 : vector<1x8x128xf32> to vector<8x128xf32>
    %c0_62 = arith.constant 0 : index
    %c0_63 = arith.constant 0 : index
    %107 = vector.load %arg7[%c0_62, %c0_63] : memref<8x32xf32, #tpu.memory_space<vmem>>, vector<8x32xf32>
    %108 = arith.truncf %107 : vector<8x32xf32> to vector<8x32xbf16>
    %c0_64 = arith.constant 0 : index
    %c0_65 = arith.constant 0 : index
    %c0_66 = arith.constant 0 : index
    %109 = vector.load %arg3[%c0_64, %c0_65, %c0_66] : memref<1x32x128xbf16, #tpu.memory_space<vmem>>, vector<1x32x128xbf16>
    %110 = vector.shape_cast %109 : vector<1x32x128xbf16> to vector<32x128xbf16>
    %cst_67 = arith.constant dense<0.000000e+00> : vector<8x128xf32>
    %111 = tpu.matmul %108, %110, %cst_67 {dimension_numbers = #tpu.dot_dimension_numbers<[1], [0], [0], [1], [0, 0, 1, 1], [], []>} : vector<8x32xbf16>, vector<32x128xbf16>, vector<8x128xf32> -> vector<8x128xf32>
    %112 = arith.addf %106, %111 : vector<8x128xf32>
    %113 = vector.extract_strided_slice %112 {offsets = [0, 0], sizes = [8, 32], strides = [1, 1]} : vector<8x128xf32> to vector<8x32xf32>
    %114 = arith.negf %113 : vector<8x32xf32>
    %115 = math.exp %114 : vector<8x32xf32>
    %cst_68 = arith.constant 1.000000e+00 : f32
    %116 = vector.broadcast %cst_68 : f32 to vector<8x32xf32>
    %117 = arith.addf %116, %115 : vector<8x32xf32>
    %118 = arith.divf %116, %117 : vector<8x32xf32>
    %119 = vector.extract_strided_slice %112 {offsets = [0, 32], sizes = [8, 32], strides = [1, 1]} : vector<8x128xf32> to vector<8x32xf32>
    %120 = arith.negf %119 : vector<8x32xf32>
    %121 = math.exp %120 : vector<8x32xf32>
    %cst_69 = arith.constant 1.000000e+00 : f32
    %122 = vector.broadcast %cst_69 : f32 to vector<8x32xf32>
    %123 = arith.addf %122, %121 : vector<8x32xf32>
    %124 = arith.divf %122, %123 : vector<8x32xf32>
    %125 = vector.extract_strided_slice %112 {offsets = [0, 64], sizes = [8, 32], strides = [1, 1]} : vector<8x128xf32> to vector<8x32xf32>
    %126 = math.tanh %125 : vector<8x32xf32>
    %127 = vector.extract_strided_slice %112 {offsets = [0, 96], sizes = [8, 32], strides = [1, 1]} : vector<8x128xf32> to vector<8x32xf32>
    %128 = arith.negf %127 : vector<8x32xf32>
    %129 = math.exp %128 : vector<8x32xf32>
    %cst_70 = arith.constant 1.000000e+00 : f32
    %130 = vector.broadcast %cst_70 : f32 to vector<8x32xf32>
    %131 = arith.addf %130, %129 : vector<8x32xf32>
    %132 = arith.divf %130, %131 : vector<8x32xf32>
    %c0_71 = arith.constant 0 : index
    %c0_72 = arith.constant 0 : index
    %133 = vector.load %arg8[%c0_71, %c0_72] : memref<8x32xf32, #tpu.memory_space<vmem>>, vector<8x32xf32>
    %134 = arith.mulf %124, %133 : vector<8x32xf32>
    %135 = arith.mulf %118, %126 : vector<8x32xf32>
    %136 = arith.addf %134, %135 : vector<8x32xf32>
    %137 = math.tanh %136 : vector<8x32xf32>
    %138 = arith.mulf %132, %137 : vector<8x32xf32>
    %c0_73 = arith.constant 0 : index
    %c0_74 = arith.constant 0 : index
    %139 = vector.load %arg8[%c0_73, %c0_74] : memref<8x32xf32, #tpu.memory_space<vmem>>, vector<8x32xf32>
    tpu.vector_store %arg8[%c0_73, %c0_74], %136 {strides = array<i32>} : memref<8x32xf32, #tpu.memory_space<vmem>>, vector<8x32xf32>,
    %c0_75 = arith.constant 0 : index
    %c0_76 = arith.constant 0 : index
    %140 = vector.load %arg7[%c0_75, %c0_76] : memref<8x32xf32, #tpu.memory_space<vmem>>, vector<8x32xf32>
    tpu.vector_store %arg7[%c0_75, %c0_76], %138 {strides = array<i32>} : memref<8x32xf32, #tpu.memory_space<vmem>>, vector<8x32xf32>,
    %c0_77 = arith.constant 0 : index
    %141 = arith.index_cast %103 : i32 to index
    %c0_78 = arith.constant 0 : index
    %c0_79 = arith.constant 0 : index
    %142 = vector.load %arg5[%c0_77, %141, %c0_78, %c0_79] : memref<1x8x8x32xf32, #tpu.memory_space<vmem>>, vector<1x1x8x32xf32>
    %143 = vector.shape_cast %142 : vector<1x1x8x32xf32> to vector<8x32xf32>
    %144 = vector.shape_cast %138 : vector<8x32xf32> to vector<1x1x8x32xf32>
    tpu.vector_store %arg5[%c0_77, %141, %c0_78, %c0_79], %144 {strides = array<i32>} : memref<1x8x8x32xf32, #tpu.memory_space<vmem>>, vector<1x1x8x32xf32>,
    %c3_i32 = arith.constant 3 : i32
    %c7_i32_80 = arith.constant 7 : i32
    %145 = arith.subi %c7_i32_80, %c3_i32 : i32
    %146 = arith.select %15, %145, %c3_i32 : i32
    %147 = arith.index_cast %146 : i32 to index
    %c0_81 = arith.constant 0 : index
    %c0_82 = arith.constant 0 : index
    %148 = vector.load %arg6[%147, %c0_81, %c0_82] : memref<8x8x128xf32, #tpu.memory_space<vmem>>, vector<1x8x128xf32>
    %149 = vector.shape_cast %148 : vector<1x8x128xf32> to vector<8x128xf32>
    %c0_83 = arith.constant 0 : index
    %c0_84 = arith.constant 0 : index
    %150 = vector.load %arg7[%c0_83, %c0_84] : memref<8x32xf32, #tpu.memory_space<vmem>>, vector<8x32xf32>
    %151 = arith.truncf %150 : vector<8x32xf32> to vector<8x32xbf16>
    %c0_85 = arith.constant 0 : index
    %c0_86 = arith.constant 0 : index
    %c0_87 = arith.constant 0 : index
    %152 = vector.load %arg3[%c0_85, %c0_86, %c0_87] : memref<1x32x128xbf16, #tpu.memory_space<vmem>>, vector<1x32x128xbf16>
    %153 = vector.shape_cast %152 : vector<1x32x128xbf16> to vector<32x128xbf16>
    %cst_88 = arith.constant dense<0.000000e+00> : vector<8x128xf32>
    %154 = tpu.matmul %151, %153, %cst_88 {dimension_numbers = #tpu.dot_dimension_numbers<[1], [0], [0], [1], [0, 0, 1, 1], [], []>} : vector<8x32xbf16>, vector<32x128xbf16>, vector<8x128xf32> -> vector<8x128xf32>
    %155 = arith.addf %149, %154 : vector<8x128xf32>
    %156 = vector.extract_strided_slice %155 {offsets = [0, 0], sizes = [8, 32], strides = [1, 1]} : vector<8x128xf32> to vector<8x32xf32>
    %157 = arith.negf %156 : vector<8x32xf32>
    %158 = math.exp %157 : vector<8x32xf32>
    %cst_89 = arith.constant 1.000000e+00 : f32
    %159 = vector.broadcast %cst_89 : f32 to vector<8x32xf32>
    %160 = arith.addf %159, %158 : vector<8x32xf32>
    %161 = arith.divf %159, %160 : vector<8x32xf32>
    %162 = vector.extract_strided_slice %155 {offsets = [0, 32], sizes = [8, 32], strides = [1, 1]} : vector<8x128xf32> to vector<8x32xf32>
    %163 = arith.negf %162 : vector<8x32xf32>
    %164 = math.exp %163 : vector<8x32xf32>
    %cst_90 = arith.constant 1.000000e+00 : f32
    %165 = vector.broadcast %cst_90 : f32 to vector<8x32xf32>
    %166 = arith.addf %165, %164 : vector<8x32xf32>
    %167 = arith.divf %165, %166 : vector<8x32xf32>
    %168 = vector.extract_strided_slice %155 {offsets = [0, 64], sizes = [8, 32], strides = [1, 1]} : vector<8x128xf32> to vector<8x32xf32>
    %169 = math.tanh %168 : vector<8x32xf32>
    %170 = vector.extract_strided_slice %155 {offsets = [0, 96], sizes = [8, 32], strides = [1, 1]} : vector<8x128xf32> to vector<8x32xf32>
    %171 = arith.negf %170 : vector<8x32xf32>
    %172 = math.exp %171 : vector<8x32xf32>
    %cst_91 = arith.constant 1.000000e+00 : f32
    %173 = vector.broadcast %cst_91 : f32 to vector<8x32xf32>
    %174 = arith.addf %173, %172 : vector<8x32xf32>
    %175 = arith.divf %173, %174 : vector<8x32xf32>
    %c0_92 = arith.constant 0 : index
    %c0_93 = arith.constant 0 : index
    %176 = vector.load %arg8[%c0_92, %c0_93] : memref<8x32xf32, #tpu.memory_space<vmem>>, vector<8x32xf32>
    %177 = arith.mulf %167, %176 : vector<8x32xf32>
    %178 = arith.mulf %161, %169 : vector<8x32xf32>
    %179 = arith.addf %177, %178 : vector<8x32xf32>
    %180 = math.tanh %179 : vector<8x32xf32>
    %181 = arith.mulf %175, %180 : vector<8x32xf32>
    %c0_94 = arith.constant 0 : index
    %c0_95 = arith.constant 0 : index
    %182 = vector.load %arg8[%c0_94, %c0_95] : memref<8x32xf32, #tpu.memory_space<vmem>>, vector<8x32xf32>
    tpu.vector_store %arg8[%c0_94, %c0_95], %179 {strides = array<i32>} : memref<8x32xf32, #tpu.memory_space<vmem>>, vector<8x32xf32>,
    %c0_96 = arith.constant 0 : index
    %c0_97 = arith.constant 0 : index
    %183 = vector.load %arg7[%c0_96, %c0_97] : memref<8x32xf32, #tpu.memory_space<vmem>>, vector<8x32xf32>
    tpu.vector_store %arg7[%c0_96, %c0_97], %181 {strides = array<i32>} : memref<8x32xf32, #tpu.memory_space<vmem>>, vector<8x32xf32>,
    %c0_98 = arith.constant 0 : index
    %184 = arith.index_cast %146 : i32 to index
    %c0_99 = arith.constant 0 : index
    %c0_100 = arith.constant 0 : index
    %185 = vector.load %arg5[%c0_98, %184, %c0_99, %c0_100] : memref<1x8x8x32xf32, #tpu.memory_space<vmem>>, vector<1x1x8x32xf32>
    %186 = vector.shape_cast %185 : vector<1x1x8x32xf32> to vector<8x32xf32>
    %187 = vector.shape_cast %181 : vector<8x32xf32> to vector<1x1x8x32xf32>
    tpu.vector_store %arg5[%c0_98, %184, %c0_99, %c0_100], %187 {strides = array<i32>} : memref<1x8x8x32xf32, #tpu.memory_space<vmem>>, vector<1x1x8x32xf32>,
    %c4_i32 = arith.constant 4 : i32
    %c7_i32_101 = arith.constant 7 : i32
    %188 = arith.subi %c7_i32_101, %c4_i32 : i32
    %189 = arith.select %15, %188, %c4_i32 : i32
    %190 = arith.index_cast %189 : i32 to index
    %c0_102 = arith.constant 0 : index
    %c0_103 = arith.constant 0 : index
    %191 = vector.load %arg6[%190, %c0_102, %c0_103] : memref<8x8x128xf32, #tpu.memory_space<vmem>>, vector<1x8x128xf32>
    %192 = vector.shape_cast %191 : vector<1x8x128xf32> to vector<8x128xf32>
    %c0_104 = arith.constant 0 : index
    %c0_105 = arith.constant 0 : index
    %193 = vector.load %arg7[%c0_104, %c0_105] : memref<8x32xf32, #tpu.memory_space<vmem>>, vector<8x32xf32>
    %194 = arith.truncf %193 : vector<8x32xf32> to vector<8x32xbf16>
    %c0_106 = arith.constant 0 : index
    %c0_107 = arith.constant 0 : index
    %c0_108 = arith.constant 0 : index
    %195 = vector.load %arg3[%c0_106, %c0_107, %c0_108] : memref<1x32x128xbf16, #tpu.memory_space<vmem>>, vector<1x32x128xbf16>
    %196 = vector.shape_cast %195 : vector<1x32x128xbf16> to vector<32x128xbf16>
    %cst_109 = arith.constant dense<0.000000e+00> : vector<8x128xf32>
    %197 = tpu.matmul %194, %196, %cst_109 {dimension_numbers = #tpu.dot_dimension_numbers<[1], [0], [0], [1], [0, 0, 1, 1], [], []>} : vector<8x32xbf16>, vector<32x128xbf16>, vector<8x128xf32> -> vector<8x128xf32>
    %198 = arith.addf %192, %197 : vector<8x128xf32>
    %199 = vector.extract_strided_slice %198 {offsets = [0, 0], sizes = [8, 32], strides = [1, 1]} : vector<8x128xf32> to vector<8x32xf32>
    %200 = arith.negf %199 : vector<8x32xf32>
    %201 = math.exp %200 : vector<8x32xf32>
    %cst_110 = arith.constant 1.000000e+00 : f32
    %202 = vector.broadcast %cst_110 : f32 to vector<8x32xf32>
    %203 = arith.addf %202, %201 : vector<8x32xf32>
    %204 = arith.divf %202, %203 : vector<8x32xf32>
    %205 = vector.extract_strided_slice %198 {offsets = [0, 32], sizes = [8, 32], strides = [1, 1]} : vector<8x128xf32> to vector<8x32xf32>
    %206 = arith.negf %205 : vector<8x32xf32>
    %207 = math.exp %206 : vector<8x32xf32>
    %cst_111 = arith.constant 1.000000e+00 : f32
    %208 = vector.broadcast %cst_111 : f32 to vector<8x32xf32>
    %209 = arith.addf %208, %207 : vector<8x32xf32>
    %210 = arith.divf %208, %209 : vector<8x32xf32>
    %211 = vector.extract_strided_slice %198 {offsets = [0, 64], sizes = [8, 32], strides = [1, 1]} : vector<8x128xf32> to vector<8x32xf32>
    %212 = math.tanh %211 : vector<8x32xf32>
    %213 = vector.extract_strided_slice %198 {offsets = [0, 96], sizes = [8, 32], strides = [1, 1]} : vector<8x128xf32> to vector<8x32xf32>
    %214 = arith.negf %213 : vector<8x32xf32>
    %215 = math.exp %214 : vector<8x32xf32>
    %cst_112 = arith.constant 1.000000e+00 : f32
    %216 = vector.broadcast %cst_112 : f32 to vector<8x32xf32>
    %217 = arith.addf %216, %215 : vector<8x32xf32>
    %218 = arith.divf %216, %217 : vector<8x32xf32>
    %c0_113 = arith.constant 0 : index
    %c0_114 = arith.constant 0 : index
    %219 = vector.load %arg8[%c0_113, %c0_114] : memref<8x32xf32, #tpu.memory_space<vmem>>, vector<8x32xf32>
    %220 = arith.mulf %210, %219 : vector<8x32xf32>
    %221 = arith.mulf %204, %212 : vector<8x32xf32>
    %222 = arith.addf %220, %221 : vector<8x32xf32>
    %223 = math.tanh %222 : vector<8x32xf32>
    %224 = arith.mulf %218, %223 : vector<8x32xf32>
    %c0_115 = arith.constant 0 : index
    %c0_116 = arith.constant 0 : index
    %225 = vector.load %arg8[%c0_115, %c0_116] : memref<8x32xf32, #tpu.memory_space<vmem>>, vector<8x32xf32>
    tpu.vector_store %arg8[%c0_115, %c0_116], %222 {strides = array<i32>} : memref<8x32xf32, #tpu.memory_space<vmem>>, vector<8x32xf32>,
    %c0_117 = arith.constant 0 : index
    %c0_118 = arith.constant 0 : index
    %226 = vector.load %arg7[%c0_117, %c0_118] : memref<8x32xf32, #tpu.memory_space<vmem>>, vector<8x32xf32>
    tpu.vector_store %arg7[%c0_117, %c0_118], %224 {strides = array<i32>} : memref<8x32xf32, #tpu.memory_space<vmem>>, vector<8x32xf32>,
    %c0_119 = arith.constant 0 : index
    %227 = arith.index_cast %189 : i32 to index
    %c0_120 = arith.constant 0 : index
    %c0_121 = arith.constant 0 : index
    %228 = vector.load %arg5[%c0_119, %227, %c0_120, %c0_121] : memref<1x8x8x32xf32, #tpu.memory_space<vmem>>, vector<1x1x8x32xf32>
    %229 = vector.shape_cast %228 : vector<1x1x8x32xf32> to vector<8x32xf32>
    %230 = vector.shape_cast %224 : vector<8x32xf32> to vector<1x1x8x32xf32>
    tpu.vector_store %arg5[%c0_119, %227, %c0_120, %c0_121], %230 {strides = array<i32>} : memref<1x8x8x32xf32, #tpu.memory_space<vmem>>, vector<1x1x8x32xf32>,
    %c5_i32 = arith.constant 5 : i32
    %c7_i32_122 = arith.constant 7 : i32
    %231 = arith.subi %c7_i32_122, %c5_i32 : i32
    %232 = arith.select %15, %231, %c5_i32 : i32
    %233 = arith.index_cast %232 : i32 to index
    %c0_123 = arith.constant 0 : index
    %c0_124 = arith.constant 0 : index
    %234 = vector.load %arg6[%233, %c0_123, %c0_124] : memref<8x8x128xf32, #tpu.memory_space<vmem>>, vector<1x8x128xf32>
    %235 = vector.shape_cast %234 : vector<1x8x128xf32> to vector<8x128xf32>
    %c0_125 = arith.constant 0 : index
    %c0_126 = arith.constant 0 : index
    %236 = vector.load %arg7[%c0_125, %c0_126] : memref<8x32xf32, #tpu.memory_space<vmem>>, vector<8x32xf32>
    %237 = arith.truncf %236 : vector<8x32xf32> to vector<8x32xbf16>
    %c0_127 = arith.constant 0 : index
    %c0_128 = arith.constant 0 : index
    %c0_129 = arith.constant 0 : index
    %238 = vector.load %arg3[%c0_127, %c0_128, %c0_129] : memref<1x32x128xbf16, #tpu.memory_space<vmem>>, vector<1x32x128xbf16>
    %239 = vector.shape_cast %238 : vector<1x32x128xbf16> to vector<32x128xbf16>
    %cst_130 = arith.constant dense<0.000000e+00> : vector<8x128xf32>
    %240 = tpu.matmul %237, %239, %cst_130 {dimension_numbers = #tpu.dot_dimension_numbers<[1], [0], [0], [1], [0, 0, 1, 1], [], []>} : vector<8x32xbf16>, vector<32x128xbf16>, vector<8x128xf32> -> vector<8x128xf32>
    %241 = arith.addf %235, %240 : vector<8x128xf32>
    %242 = vector.extract_strided_slice %241 {offsets = [0, 0], sizes = [8, 32], strides = [1, 1]} : vector<8x128xf32> to vector<8x32xf32>
    %243 = arith.negf %242 : vector<8x32xf32>
    %244 = math.exp %243 : vector<8x32xf32>
    %cst_131 = arith.constant 1.000000e+00 : f32
    %245 = vector.broadcast %cst_131 : f32 to vector<8x32xf32>
    %246 = arith.addf %245, %244 : vector<8x32xf32>
    %247 = arith.divf %245, %246 : vector<8x32xf32>
    %248 = vector.extract_strided_slice %241 {offsets = [0, 32], sizes = [8, 32], strides = [1, 1]} : vector<8x128xf32> to vector<8x32xf32>
    %249 = arith.negf %248 : vector<8x32xf32>
    %250 = math.exp %249 : vector<8x32xf32>
    %cst_132 = arith.constant 1.000000e+00 : f32
    %251 = vector.broadcast %cst_132 : f32 to vector<8x32xf32>
    %252 = arith.addf %251, %250 : vector<8x32xf32>
    %253 = arith.divf %251, %252 : vector<8x32xf32>
    %254 = vector.extract_strided_slice %241 {offsets = [0, 64], sizes = [8, 32], strides = [1, 1]} : vector<8x128xf32> to vector<8x32xf32>
    %255 = math.tanh %254 : vector<8x32xf32>
    %256 = vector.extract_strided_slice %241 {offsets = [0, 96], sizes = [8, 32], strides = [1, 1]} : vector<8x128xf32> to vector<8x32xf32>
    %257 = arith.negf %256 : vector<8x32xf32>
    %258 = math.exp %257 : vector<8x32xf32>
    %cst_133 = arith.constant 1.000000e+00 : f32
    %259 = vector.broadcast %cst_133 : f32 to vector<8x32xf32>
    %260 = arith.addf %259, %258 : vector<8x32xf32>
    %261 = arith.divf %259, %260 : vector<8x32xf32>
    %c0_134 = arith.constant 0 : index
    %c0_135 = arith.constant 0 : index
    %262 = vector.load %arg8[%c0_134, %c0_135] : memref<8x32xf32, #tpu.memory_space<vmem>>, vector<8x32xf32>
    %263 = arith.mulf %253, %262 : vector<8x32xf32>
    %264 = arith.mulf %247, %255 : vector<8x32xf32>
    %265 = arith.addf %263, %264 : vector<8x32xf32>
    %266 = math.tanh %265 : vector<8x32xf32>
    %267 = arith.mulf %261, %266 : vector<8x32xf32>
    %c0_136 = arith.constant 0 : index
    %c0_137 = arith.constant 0 : index
    %268 = vector.load %arg8[%c0_136, %c0_137] : memref<8x32xf32, #tpu.memory_space<vmem>>, vector<8x32xf32>
    tpu.vector_store %arg8[%c0_136, %c0_137], %265 {strides = array<i32>} : memref<8x32xf32, #tpu.memory_space<vmem>>, vector<8x32xf32>,
    %c0_138 = arith.constant 0 : index
    %c0_139 = arith.constant 0 : index
    %269 = vector.load %arg7[%c0_138, %c0_139] : memref<8x32xf32, #tpu.memory_space<vmem>>, vector<8x32xf32>
    tpu.vector_store %arg7[%c0_138, %c0_139], %267 {strides = array<i32>} : memref<8x32xf32, #tpu.memory_space<vmem>>, vector<8x32xf32>,
    %c0_140 = arith.constant 0 : index
    %270 = arith.index_cast %232 : i32 to index
    %c0_141 = arith.constant 0 : index
    %c0_142 = arith.constant 0 : index
    %271 = vector.load %arg5[%c0_140, %270, %c0_141, %c0_142] : memref<1x8x8x32xf32, #tpu.memory_space<vmem>>, vector<1x1x8x32xf32>
    %272 = vector.shape_cast %271 : vector<1x1x8x32xf32> to vector<8x32xf32>
    %273 = vector.shape_cast %267 : vector<8x32xf32> to vector<1x1x8x32xf32>
    tpu.vector_store %arg5[%c0_140, %270, %c0_141, %c0_142], %273 {strides = array<i32>} : memref<1x8x8x32xf32, #tpu.memory_space<vmem>>, vector<1x1x8x32xf32>,
    %c6_i32 = arith.constant 6 : i32
    %c7_i32_143 = arith.constant 7 : i32
    %274 = arith.subi %c7_i32_143, %c6_i32 : i32
    %275 = arith.select %15, %274, %c6_i32 : i32
    %276 = arith.index_cast %275 : i32 to index
    %c0_144 = arith.constant 0 : index
    %c0_145 = arith.constant 0 : index
    %277 = vector.load %arg6[%276, %c0_144, %c0_145] : memref<8x8x128xf32, #tpu.memory_space<vmem>>, vector<1x8x128xf32>
    %278 = vector.shape_cast %277 : vector<1x8x128xf32> to vector<8x128xf32>
    %c0_146 = arith.constant 0 : index
    %c0_147 = arith.constant 0 : index
    %279 = vector.load %arg7[%c0_146, %c0_147] : memref<8x32xf32, #tpu.memory_space<vmem>>, vector<8x32xf32>
    %280 = arith.truncf %279 : vector<8x32xf32> to vector<8x32xbf16>
    %c0_148 = arith.constant 0 : index
    %c0_149 = arith.constant 0 : index
    %c0_150 = arith.constant 0 : index
    %281 = vector.load %arg3[%c0_148, %c0_149, %c0_150] : memref<1x32x128xbf16, #tpu.memory_space<vmem>>, vector<1x32x128xbf16>
    %282 = vector.shape_cast %281 : vector<1x32x128xbf16> to vector<32x128xbf16>
    %cst_151 = arith.constant dense<0.000000e+00> : vector<8x128xf32>
    %283 = tpu.matmul %280, %282, %cst_151 {dimension_numbers = #tpu.dot_dimension_numbers<[1], [0], [0], [1], [0, 0, 1, 1], [], []>} : vector<8x32xbf16>, vector<32x128xbf16>, vector<8x128xf32> -> vector<8x128xf32>
    %284 = arith.addf %278, %283 : vector<8x128xf32>
    %285 = vector.extract_strided_slice %284 {offsets = [0, 0], sizes = [8, 32], strides = [1, 1]} : vector<8x128xf32> to vector<8x32xf32>
    %286 = arith.negf %285 : vector<8x32xf32>
    %287 = math.exp %286 : vector<8x32xf32>
    %cst_152 = arith.constant 1.000000e+00 : f32
    %288 = vector.broadcast %cst_152 : f32 to vector<8x32xf32>
    %289 = arith.addf %288, %287 : vector<8x32xf32>
    %290 = arith.divf %288, %289 : vector<8x32xf32>
    %291 = vector.extract_strided_slice %284 {offsets = [0, 32], sizes = [8, 32], strides = [1, 1]} : vector<8x128xf32> to vector<8x32xf32>
    %292 = arith.negf %291 : vector<8x32xf32>
    %293 = math.exp %292 : vector<8x32xf32>
    %cst_153 = arith.constant 1.000000e+00 : f32
    %294 = vector.broadcast %cst_153 : f32 to vector<8x32xf32>
    %295 = arith.addf %294, %293 : vector<8x32xf32>
    %296 = arith.divf %294, %295 : vector<8x32xf32>
    %297 = vector.extract_strided_slice %284 {offsets = [0, 64], sizes = [8, 32], strides = [1, 1]} : vector<8x128xf32> to vector<8x32xf32>
    %298 = math.tanh %297 : vector<8x32xf32>
    %299 = vector.extract_strided_slice %284 {offsets = [0, 96], sizes = [8, 32], strides = [1, 1]} : vector<8x128xf32> to vector<8x32xf32>
    %300 = arith.negf %299 : vector<8x32xf32>
    %301 = math.exp %300 : vector<8x32xf32>
    %cst_154 = arith.constant 1.000000e+00 : f32
    %302 = vector.broadcast %cst_154 : f32 to vector<8x32xf32>
    %303 = arith.addf %302, %301 : vector<8x32xf32>
    %304 = arith.divf %302, %303 : vector<8x32xf32>
    %c0_155 = arith.constant 0 : index
    %c0_156 = arith.constant 0 : index
    %305 = vector.load %arg8[%c0_155, %c0_156] : memref<8x32xf32, #tpu.memory_space<vmem>>, vector<8x32xf32>
    %306 = arith.mulf %296, %305 : vector<8x32xf32>
    %307 = arith.mulf %290, %298 : vector<8x32xf32>
    %308 = arith.addf %306, %307 : vector<8x32xf32>
    %309 = math.tanh %308 : vector<8x32xf32>
    %310 = arith.mulf %304, %309 : vector<8x32xf32>
    %c0_157 = arith.constant 0 : index
    %c0_158 = arith.constant 0 : index
    %311 = vector.load %arg8[%c0_157, %c0_158] : memref<8x32xf32, #tpu.memory_space<vmem>>, vector<8x32xf32>
    tpu.vector_store %arg8[%c0_157, %c0_158], %308 {strides = array<i32>} : memref<8x32xf32, #tpu.memory_space<vmem>>, vector<8x32xf32>,
    %c0_159 = arith.constant 0 : index
    %c0_160 = arith.constant 0 : index
    %312 = vector.load %arg7[%c0_159, %c0_160] : memref<8x32xf32, #tpu.memory_space<vmem>>, vector<8x32xf32>
    tpu.vector_store %arg7[%c0_159, %c0_160], %310 {strides = array<i32>} : memref<8x32xf32, #tpu.memory_space<vmem>>, vector<8x32xf32>,
    %c0_161 = arith.constant 0 : index
    %313 = arith.index_cast %275 : i32 to index
    %c0_162 = arith.constant 0 : index
    %c0_163 = arith.constant 0 : index
    %314 = vector.load %arg5[%c0_161, %313, %c0_162, %c0_163] : memref<1x8x8x32xf32, #tpu.memory_space<vmem>>, vector<1x1x8x32xf32>
    %315 = vector.shape_cast %314 : vector<1x1x8x32xf32> to vector<8x32xf32>
    %316 = vector.shape_cast %310 : vector<8x32xf32> to vector<1x1x8x32xf32>
    tpu.vector_store %arg5[%c0_161, %313, %c0_162, %c0_163], %316 {strides = array<i32>} : memref<1x8x8x32xf32, #tpu.memory_space<vmem>>, vector<1x1x8x32xf32>,
    %c7_i32_164 = arith.constant 7 : i32
    %c7_i32_165 = arith.constant 7 : i32
    %317 = arith.subi %c7_i32_165, %c7_i32_164 : i32
    %318 = arith.select %15, %317, %c7_i32_164 : i32
    %319 = arith.index_cast %318 : i32 to index
    %c0_166 = arith.constant 0 : index
    %c0_167 = arith.constant 0 : index
    %320 = vector.load %arg6[%319, %c0_166, %c0_167] : memref<8x8x128xf32, #tpu.memory_space<vmem>>, vector<1x8x128xf32>
    %321 = vector.shape_cast %320 : vector<1x8x128xf32> to vector<8x128xf32>
    %c0_168 = arith.constant 0 : index
    %c0_169 = arith.constant 0 : index
    %322 = vector.load %arg7[%c0_168, %c0_169] : memref<8x32xf32, #tpu.memory_space<vmem>>, vector<8x32xf32>
    %323 = arith.truncf %322 : vector<8x32xf32> to vector<8x32xbf16>
    %c0_170 = arith.constant 0 : index
    %c0_171 = arith.constant 0 : index
    %c0_172 = arith.constant 0 : index
    %324 = vector.load %arg3[%c0_170, %c0_171, %c0_172] : memref<1x32x128xbf16, #tpu.memory_space<vmem>>, vector<1x32x128xbf16>
    %325 = vector.shape_cast %324 : vector<1x32x128xbf16> to vector<32x128xbf16>
    %cst_173 = arith.constant dense<0.000000e+00> : vector<8x128xf32>
    %326 = tpu.matmul %323, %325, %cst_173 {dimension_numbers = #tpu.dot_dimension_numbers<[1], [0], [0], [1], [0, 0, 1, 1], [], []>} : vector<8x32xbf16>, vector<32x128xbf16>, vector<8x128xf32> -> vector<8x128xf32>
    %327 = arith.addf %321, %326 : vector<8x128xf32>
    %328 = vector.extract_strided_slice %327 {offsets = [0, 0], sizes = [8, 32], strides = [1, 1]} : vector<8x128xf32> to vector<8x32xf32>
    %329 = arith.negf %328 : vector<8x32xf32>
    %330 = math.exp %329 : vector<8x32xf32>
    %cst_174 = arith.constant 1.000000e+00 : f32
    %331 = vector.broadcast %cst_174 : f32 to vector<8x32xf32>
    %332 = arith.addf %331, %330 : vector<8x32xf32>
    %333 = arith.divf %331, %332 : vector<8x32xf32>
    %334 = vector.extract_strided_slice %327 {offsets = [0, 32], sizes = [8, 32], strides = [1, 1]} : vector<8x128xf32> to vector<8x32xf32>
    %335 = arith.negf %334 : vector<8x32xf32>
    %336 = math.exp %335 : vector<8x32xf32>
    %cst_175 = arith.constant 1.000000e+00 : f32
    %337 = vector.broadcast %cst_175 : f32 to vector<8x32xf32>
    %338 = arith.addf %337, %336 : vector<8x32xf32>
    %339 = arith.divf %337, %338 : vector<8x32xf32>
    %340 = vector.extract_strided_slice %327 {offsets = [0, 64], sizes = [8, 32], strides = [1, 1]} : vector<8x128xf32> to vector<8x32xf32>
    %341 = math.tanh %340 : vector<8x32xf32>
    %342 = vector.extract_strided_slice %327 {offsets = [0, 96], sizes = [8, 32], strides = [1, 1]} : vector<8x128xf32> to vector<8x32xf32>
    %343 = arith.negf %342 : vector<8x32xf32>
    %344 = math.exp %343 : vector<8x32xf32>
    %cst_176 = arith.constant 1.000000e+00 : f32
    %345 = vector.broadcast %cst_176 : f32 to vector<8x32xf32>
    %346 = arith.addf %345, %344 : vector<8x32xf32>
    %347 = arith.divf %345, %346 : vector<8x32xf32>
    %c0_177 = arith.constant 0 : index
    %c0_178 = arith.constant 0 : index
    %348 = vector.load %arg8[%c0_177, %c0_178] : memref<8x32xf32, #tpu.memory_space<vmem>>, vector<8x32xf32>
    %349 = arith.mulf %339, %348 : vector<8x32xf32>
    %350 = arith.mulf %333, %341 : vector<8x32xf32>
    %351 = arith.addf %349, %350 : vector<8x32xf32>
    %352 = math.tanh %351 : vector<8x32xf32>
    %353 = arith.mulf %347, %352 : vector<8x32xf32>
    %c0_179 = arith.constant 0 : index
    %c0_180 = arith.constant 0 : index
    %354 = vector.load %arg8[%c0_179, %c0_180] : memref<8x32xf32, #tpu.memory_space<vmem>>, vector<8x32xf32>
    tpu.vector_store %arg8[%c0_179, %c0_180], %351 {strides = array<i32>} : memref<8x32xf32, #tpu.memory_space<vmem>>, vector<8x32xf32>,
    %c0_181 = arith.constant 0 : index
    %c0_182 = arith.constant 0 : index
    %355 = vector.load %arg7[%c0_181, %c0_182] : memref<8x32xf32, #tpu.memory_space<vmem>>, vector<8x32xf32>
    tpu.vector_store %arg7[%c0_181, %c0_182], %353 {strides = array<i32>} : memref<8x32xf32, #tpu.memory_space<vmem>>, vector<8x32xf32>,
    %c0_183 = arith.constant 0 : index
    %356 = arith.index_cast %318 : i32 to index
    %c0_184 = arith.constant 0 : index
    %c0_185 = arith.constant 0 : index
    %357 = vector.load %arg5[%c0_183, %356, %c0_184, %c0_185] : memref<1x8x8x32xf32, #tpu.memory_space<vmem>>, vector<1x1x8x32xf32>
    %358 = vector.shape_cast %357 : vector<1x1x8x32xf32> to vector<8x32xf32>
    %359 = vector.shape_cast %353 : vector<8x32xf32> to vector<1x1x8x32xf32>
    tpu.vector_store %arg5[%c0_183, %356, %c0_184, %c0_185], %359 {strides = array<i32>} : memref<1x8x8x32xf32, #tpu.memory_space<vmem>>, vector<1x1x8x32xf32>,
    %c8_i32 = arith.constant 8 : i32
    return
  }
  func.func @transform_0(%arg0: i32) -> (i32, i32, i32) {
    %c0_i32 = arith.constant 0 : i32
    %c0_i32_0 = arith.constant 0 : i32
    %c0_i32_1 = arith.constant 0 : i32
    %c0_i32_2 = arith.constant 0 : i32
    return %c0_i32, %c0_i32_0, %c0_i32_1 : i32, i32, i32
  }
  func.func @transform_1(%arg0: i32) -> (i32, i32, i32) {
    %c0_i32 = arith.constant 0 : i32
    %c0_i32_0 = arith.constant 0 : i32
    %c0_i32_1 = arith.constant 0 : i32
    return %arg0, %c0_i32, %c0_i32_0 : i32, i32, i32
  }
  func.func @transform_2(%arg0: i32) -> (i32, i32, i32) {
    %c0_i32 = arith.constant 0 : i32
    %c0_i32_0 = arith.constant 0 : i32
    %c0_i32_1 = arith.constant 0 : i32
    return %arg0, %c0_i32, %c0_i32_0 : i32, i32, i32
  }
  func.func @transform_3(%arg0: i32) -> (i32, i32, i32) {
    %c0_i32 = arith.constant 0 : i32
    %c0_i32_0 = arith.constant 0 : i32
    %c0_i32_1 = arith.constant 0 : i32
    return %arg0, %c0_i32, %c0_i32_0 : i32, i32, i32
  }
  func.func @transform_4(%arg0: i32) -> (i32, i32, i32, i32) {
    %c0_i32 = arith.constant 0 : i32
    %c0_i32_0 = arith.constant 0 : i32
    %c0_i32_1 = arith.constant 0 : i32
    %c0_i32_2 = arith.constant 0 : i32
    return %arg0, %c0_i32, %c0_i32_0, %c0_i32_1 : i32, i32, i32, i32
  }
}

</mosaic_0001>

<llo_original>
// kernel: birnn_forward.3
$region0: #{birnn_forward.3}
  #allocation0 [shape = 'u32[]', space=smem, size = 0x4, offset = 0x4, fixed_abs, tag = 'smem constant byte address 0x4 - core index']
  #allocation1 [shape = 'u32[144,128]{1,0:T(1,128)}', space=vmem, size = 0x12000, scoped, tag = 'internal scratch']
  #allocation2 [shape = 'f32[8,8,128]{2,1,0:T(8,128)}', space=vmem, size = 0x8000, scoped, tag = 'scratch operand']
  #allocation3 [shape = 'f32[8,32]{1,0:T(8,128)}', space=vmem, size = 0x1000, scoped, tag = 'scratch operand']
  #allocation4 [shape = 'f32[8,32]{1,0:T(8,128)}', space=vmem, size = 0x1000, scoped, tag = 'scratch operand']
  %s0 = inlined_call_operand.vmem [shape: bf16[8,8,64], index: 0, kind: input, shape index: {}]
  %s1 = inlined_call_operand.vmem [shape: bf16[2,64,128], index: 1, kind: input, shape index: {}]
  %s2 = inlined_call_operand.vmem [shape: bf16[2,32,128], index: 2, kind: input, shape index: {}]
  %s3 = inlined_call_operand.vmem [shape: f32[2,1,128], index: 3, kind: input, shape index: {}]
  %s4 = inlined_call_operand.vmem [shape: f32[2,8,8,32], index: 4, kind: output, shape index: {}]
  %s5 = sld [smem:[#allocation0]]
  $region49: #{birnn_forward.3} parent=0
    _
  %s7 = ssub.s32 1, %s5
  %s8 = scalar_select 0, %s7, %s5
  loop: start=0, step=1, limit=4
  $region2: #{birnn_forward.3} parent=0 // loop_pre_header
    _
  $region3: #{birnn_forward.3} parent=0 // loop_header
    %s10 = sphi 0, %s14
    %p11 = scmp.ge.s32.totalorder %s10, 4
    %s18 = sphi 0, %s18
    %s20 = sphi 0, %s18
    %s21 = sphi 0, %s20
    %s35 = sphi 0, %s21
    %s41 = sphi 0, %s43
    %s44 = sphi 0, %s41
    %s45 = sphi 0, %s44
    %s61 = sphi 0, %s45
    %s67 = sphi 0, %s69
    %s70 = sphi 0, %s67
    %s71 = sphi 0, %s70
    %s87 = sphi 0, %s71
    %s93 = sphi 0, %s95
    %s96 = sphi 0, %s93
    %s97 = sphi 0, %s96
    %s113 = sphi 0, %s97
    %s119 = sphi 0, %s121
    %s122 = sphi 0, %s119
    %s123 = sphi 0, %s122
    %s139 = sphi 0, %s123
  $region4: #{birnn_forward.3} parent=0 // loop_header_branch
    %13 = sbr.rel (%p11) target = $region8
  $region5: #{birnn_forward.3} parent=0 // loop_body
    %s15 = ssub.s32 %s10, 1
    %s16 = ssub.s32 %s10, 2
    %s17 = sadd.s32 %s10, 1
    %s19 = sadd.s32 %s18, 1
    %p22 = scmp.eq.s32.totalorder %s10, 1
    %p23 = scmp.ne.s32.totalorder %s18, %s20
    %p24 = scmp.eq.s32.totalorder %s10, 0
    %p25 = por %p23, %p24
    %p26 = scmp.ne.s32.totalorder %s18, %s20
    %p27 = scmp.eq.s32.totalorder %s15, 1
    %p28 = por %p26, %p27
    %p29 = scmp.ne.s32.totalorder %s20, %s21
    %p30 = scmp.eq.s32.totalorder %s15, 0
    %p31 = por %p29, %p30
    %p32 = scmp.ne.s32.totalorder %s20, %s21
    %p33 = scmp.eq.s32.totalorder %s16, 1
    %p34 = por %p32, %p33
    %p36 = scmp.ne.s32.totalorder %s21, %s35
    %p37 = scmp.eq.s32.totalorder %s16, 0
    %p38 = por %p36, %p37
    %s39 = ssub.s32 %s10, %s17
    %p40 = scmp.eq.s32.totalorder %s39, 0
    %s42 = sadd.s32 %s41, 1
    %s43 = scalar_select %p40, %s41, %s42
    %p46 = pneg %p40
    %p47 = scmp.eq.s32.totalorder %s10, 1
    %p48 = por %p46, %p47
    %p49 = scmp.ne.s32.totalorder %s41, %s44
    %p50 = scmp.eq.s32.totalorder %s10, 0
    %p51 = por %p49, %p50
    %p52 = scmp.ne.s32.totalorder %s41, %s44
    %p53 = scmp.eq.s32.totalorder %s15, 1
    %p54 = por %p52, %p53
    %p55 = scmp.ne.s32.totalorder %s44, %s45
    %p56 = scmp.eq.s32.totalorder %s15, 0
    %p57 = por %p55, %p56
    %p58 = scmp.ne.s32.totalorder %s44, %s45
    %p59 = scmp.eq.s32.totalorder %s16, 1
    %p60 = por %p58, %p59
    %p62 = scmp.ne.s32.totalorder %s45, %s61
    %p63 = scmp.eq.s32.totalorder %s16, 0
    %p64 = por %p62, %p63
    %s65 = ssub.s32 %s10, %s17
    %p66 = scmp.eq.s32.totalorder %s65, 0
    %s68 = sadd.s32 %s67, 1
    %s69 = scalar_select %p66, %s67, %s68
    %p72 = pneg %p66
    %p73 = scmp.eq.s32.totalorder %s10, 1
    %p74 = por %p72, %p73
    %p75 = scmp.ne.s32.totalorder %s67, %s70
    %p76 = scmp.eq.s32.totalorder %s10, 0
    %p77 = por %p75, %p76
    %p78 = scmp.ne.s32.totalorder %s67, %s70
    %p79 = scmp.eq.s32.totalorder %s15, 1
    %p80 = por %p78, %p79
    %p81 = scmp.ne.s32.totalorder %s70, %s71
    %p82 = scmp.eq.s32.totalorder %s15, 0
    %p83 = por %p81, %p82
    %p84 = scmp.ne.s32.totalorder %s70, %s71
    %p85 = scmp.eq.s32.totalorder %s16, 1
    %p86 = por %p84, %p85
    %p88 = scmp.ne.s32.totalorder %s71, %s87
    %p89 = scmp.eq.s32.totalorder %s16, 0
    %p90 = por %p88, %p89
    %s91 = ssub.s32 %s10, %s17
    %p92 = scmp.eq.s32.totalorder %s91, 0
    %s94 = sadd.s32 %s93, 1
    %s95 = scalar_select %p92, %s93, %s94
    %p98 = pneg %p92
    %p99 = scmp.eq.s32.totalorder %s10, 1
    %p100 = por %p98, %p99
    %p101 = scmp.ne.s32.totalorder %s93, %s96
    %p102 = scmp.eq.s32.totalorder %s10, 0
    %p103 = por %p101, %p102
    %p104 = scmp.ne.s32.totalorder %s93, %s96
    %p105 = scmp.eq.s32.totalorder %s15, 1
    %p106 = por %p104, %p105
    %p107 = scmp.ne.s32.totalorder %s96, %s97
    %p108 = scmp.eq.s32.totalorder %s15, 0
    %p109 = por %p107, %p108
    %p110 = scmp.ne.s32.totalorder %s96, %s97
    %p111 = scmp.eq.s32.totalorder %s16, 1
    %p112 = por %p110, %p111
    %p114 = scmp.ne.s32.totalorder %s97, %s113
    %p115 = scmp.eq.s32.totalorder %s16, 0
    %p116 = por %p114, %p115
    %s117 = ssub.s32 %s10, %s17
    %p118 = scmp.eq.s32.totalorder %s117, 0
    %s120 = sadd.s32 %s119, 1
    %s121 = scalar_select %p118, %s119, %s120
    %p124 = pneg %p118
    %p125 = scmp.eq.s32.totalorder %s10, 1
    %p126 = por %p124, %p125
    %p127 = scmp.ne.s32.totalorder %s119, %s122
    %p128 = scmp.eq.s32.totalorder %s10, 0
    %p129 = por %p127, %p128
    %p130 = scmp.ne.s32.totalorder %s119, %s122
    %p131 = scmp.eq.s32.totalorder %s15, 1
    %p132 = por %p130, %p131
    %p133 = scmp.ne.s32.totalorder %s122, %s123
    %p134 = scmp.eq.s32.totalorder %s15, 0
    %p135 = por %p133, %p134
    %p136 = scmp.ne.s32.totalorder %s122, %s123
    %p137 = scmp.eq.s32.totalorder %s16, 1
    %p138 = por %p136, %p137
    %p140 = scmp.ne.s32.totalorder %s123, %s139
    %p141 = scmp.eq.s32.totalorder %s16, 0
    %p142 = por %p140, %p141
    %p143 = scmp.le.s32.totalorder 1, %s10
    %p144 = scmp.lt.s32.totalorder %s10, 3
    %p145 = pnand %p143, %p144
    %p146 = pneg %p145
    // Predicated region
    $region9: #{birnn_forward.3} parent=5 // pred_check
      _
    $region10: #{birnn_forward.3} parent=5 // pred_check_branch
      %148 = sbr.rel (%p145) target = $region12
    $region11: #{birnn_forward.3} parent=5 // pred_region
      %s149 = ssub.s32 %s10, 1
      // Predicated region
      $region13: #{birnn_forward.3} parent=11 // pred_check
        %p150 = pneg %p31
      $region14: #{birnn_forward.3} parent=11 // pred_check_branch
        %152 = sbr.rel (%p150) target = $region16
      $region15: #{birnn_forward.3} parent=11 // pred_region
        _
      $region16: #{birnn_forward.3} parent=11 // pred_fallthru
        _
    $region12: #{birnn_forward.3} parent=5 // pred_fallthru
      _
    %p153 = scmp.lt.s32.totalorder %s10, 2
    // Predicated region
    $region17: #{birnn_forward.3} parent=5 // pred_check
      %p154 = pneg %p153
    $region18: #{birnn_forward.3} parent=5 // pred_check_branch
      %156 = sbr.rel (%p154) target = $region20
    $region19: #{birnn_forward.3} parent=5 // pred_region
      // Predicated region
      $region21: #{birnn_forward.3} parent=19 // pred_check
        %p157 = pneg %p51
      $region22: #{birnn_forward.3} parent=19 // pred_check_branch
        %159 = sbr.rel (%p157) target = $region24
      $region23: #{birnn_forward.3} parent=19 // pred_region
        %p160 = scmp.lt.s32.totalorder %s10, 1
        %s161 = scalar_select %p160, %s10, 1
        %s162 = smul.addr %s161, 8
        %s163 = smul.addr %s162, 4
        %s164 = scalar_lea.vmem %s1, %s163
      $region24: #{birnn_forward.3} parent=19 // pred_fallthru
        _
      // Predicated region
      $region25: #{birnn_forward.3} parent=19 // pred_check
        %p165 = pneg %p77
      $region26: #{birnn_forward.3} parent=19 // pred_check_branch
        %167 = sbr.rel (%p165) target = $region28
      $region27: #{birnn_forward.3} parent=19 // pred_region
        %p168 = scmp.lt.s32.totalorder %s10, 1
        %s169 = scalar_select %p168, %s10, 1
        %s170 = smul.addr %s169, 4
        %s171 = smul.addr %s170, 4
        %s172 = scalar_lea.vmem %s2, %s171
      $region28: #{birnn_forward.3} parent=19 // pred_fallthru
        _
      // Predicated region
      $region29: #{birnn_forward.3} parent=19 // pred_check
        %p173 = pneg %p103
      $region30: #{birnn_forward.3} parent=19 // pred_check_branch
        %175 = sbr.rel (%p173) target = $region32
      $region31: #{birnn_forward.3} parent=19 // pred_region
        %p176 = scmp.lt.s32.totalorder %s10, 1
        %s177 = scalar_select %p176, %s10, 1
        %s178 = scalar_lea.vmem %s3, %s177
      $region32: #{birnn_forward.3} parent=19 // pred_fallthru
        _
    $region20: #{birnn_forward.3} parent=5 // pred_fallthru
      _
    %p179 = scmp.le.s32.totalorder 1, %s10
    %p180 = scmp.lt.s32.totalorder %s10, 3
    %p181 = pnand %p179, %p180
    %p182 = pneg %p181
    // Predicated region
    $region33: #{birnn_forward.3} parent=5 // pred_check
      _
    $region34: #{birnn_forward.3} parent=5 // pred_check_branch
      %184 = sbr.rel (%p181) target = $region36
    $region35: #{birnn_forward.3} parent=5 // pred_region
      %s185 = ssub.s32 %s10, 1
      %p186 = pneg %p31
      %p187 = pneg %p28
      %p188 = scmp.lt.s32.totalorder %s15, 1
      %s189 = scalar_select %p188, %s15, 1
      %s190 = smul.addr %s189, 8
      %s191 = smul.addr %s190, 4
      %s192 = scalar_lea.vmem %s1, %s191
      %p193 = pneg %p57
      %p194 = pneg %p54
      %p195 = scmp.lt.s32.totalorder %s15, 1
      %s196 = scalar_select %p195, %s15, 1
      %s197 = smul.addr %s196, 4
      %s198 = smul.addr %s197, 4
      %s199 = scalar_lea.vmem %s2, %s198
      %p200 = pneg %p83
      %p201 = pneg %p80
      %p202 = scmp.lt.s32.totalorder %s15, 1
      %s203 = scalar_select %p202, %s15, 1
      %s204 = scalar_lea.vmem %s3, %s203
      %p205 = pneg %p109
      %p206 = pneg %p106
      %p207 = pneg %p135
      %p208 = pneg %p132
      %p209 = scmp.lt.s32.totalorder %s15, 1
      %s210 = scalar_select %p209, %s15, 1
      %s211 = smul.addr %s210, 8
      %s212 = smul.addr %s211, 8
      %s213 = scalar_lea.vmem %s4, %s212
      %p214 = scmp.lt.s32.totalorder %s15, 1
      %s215 = scalar_select %p214, %s15, 1
      %s216 = smul.addr %s215, 8
      %s217 = smul.addr %s216, 4
      %s218 = scalar_lea.vmem %s1, %s217
      %p219 = scmp.lt.s32.totalorder %s15, 1
      %s220 = scalar_select %p219, %s15, 1
      %s221 = smul.addr %s220, 4
      %s222 = smul.addr %s221, 4
      %s223 = scalar_lea.vmem %s2, %s222
      %p224 = scmp.lt.s32.totalorder %s15, 1
      %s225 = scalar_select %p224, %s15, 1
      %s226 = scalar_lea.vmem %s3, %s225
      %p227 = scmp.lt.s32.totalorder %s15, 1
      %s228 = scalar_select %p227, %s15, 1
      %s229 = smul.addr %s228, 8
      %s230 = smul.addr %s229, 8
      %s231 = scalar_lea.vmem %s4, %s230
      %v233 = vld [vmem:[%s0] sm:$0xf]
      %v234 = vld [vmem:[%s0 + $0x4] sm:$0xf]
      %v235 = vld [vmem:[%s0 + $0x8] sm:$0xf]
      %v236 = vld [vmem:[%s0 + $0xc] sm:$0xf]
      %v237 = vld [vmem:[%s0 + $0x10] sm:$0xf]
      %v238 = vld [vmem:[%s0 + $0x14] sm:$0xf]
      %v239 = vld [vmem:[%s0 + $0x18] sm:$0xf]
      %v240 = vld [vmem:[%s0 + $0x1c] sm:$0xf]
      %v241 = vld [vmem:[%s218] sm:$0xf]
      %v242 = vld [vmem:[%s218 + $0x4] sm:$0xf]
      %v243 = vld [vmem:[%s218 + $0x8] sm:$0xf]
      %v244 = vld [vmem:[%s218 + $0xc] sm:$0xf]
      %v245 = vld [vmem:[%s218 + $0x10] sm:$0xf]
      %v246 = vld [vmem:[%s218 + $0x14] sm:$0xf]
      %v247 = vld [vmem:[%s218 + $0x18] sm:$0xf]
      %v248 = vld [vmem:[%s218 + $0x1c] sm:$0xf]
      %v249 = vld [vmem:[%s226] sm:$0x1]
      %v251 = vlaneseq
      %v252 = vshrl.u32 %v251, 7
      %v253 = vsub.s32 0, %v252
      %v254 = vrot.slane %v249, %v253
      %v264 = vunpack.c.l.b16 %v233
      %v265 = vunpack.c.l.b16 %v234
      %v266 = vunpack.c.l.b16 %v235
      %v267 = vunpack.c.l.b16 %v236
      %v268 = vunpack.c.l.b16 %v237
      %v269 = vunpack.c.l.b16 %v238
      %v270 = vunpack.c.l.b16 %v239
      %v271 = vunpack.c.l.b16 %v240
      %v272 = vpack.c.b16 %v265, %v264
      %v273 = vpack.c.b16 %v267, %v266
      %v274 = vpack.c.b16 %v269, %v268
      %v275 = vpack.c.b16 %v271, %v270
      %v284 = vunpack.c.l.b16 %v241
      %v285 = vunpack.c.l.b16 %v242
      %v286 = vunpack.c.l.b16 %v243
      %v287 = vunpack.c.l.b16 %v244
      %v288 = vunpack.c.l.b16 %v245
      %v289 = vunpack.c.l.b16 %v246
      %v290 = vunpack.c.l.b16 %v247
      %v291 = vunpack.c.l.b16 %v248
      %v292 = vpack.c.b16 %v285, %v284
      %v293 = vpack.c.b16 %v287, %v286
      %v294 = vpack.c.b16 %v289, %v288
      %v295 = vpack.c.b16 %v291, %v290
      %vm300 = vcmask 523264
      %v302 = vsel %vm300, %v272, 0
      %v305 = vsel %vm300, %v273, 0
      %v308 = vsel %vm300, %v274, 0
      %v311 = vsel %vm300, %v275, 0
      %313 = vmatprep.subr.bf16.mxu0 0
      %314 = vmatpush1.bf16.msra.mxu0 0
      %315 = vmatprep.subr.bf16.mxu0 0
      %316 = vmatpush1.bf16.msra.mxu0 0
      %317 = vmatprep.subr.bf16.mxu0 0
      %318 = vmatpush1.bf16.msra.mxu0 0
      %319 = vmatprep.subr.bf16.mxu0 0
      %320 = vmatpush1.bf16.msra.mxu0 0
      %321 = vmatprep.subr.bf16.mxu0 0
      %322 = vmatpush1.bf16.msra.mxu0 %v295
      %323 = vmatprep.subr.bf16.mxu0 0
      %324 = vmatpush1.bf16.msra.mxu0 %v294
      %325 = vmatprep.subr.bf16.mxu0 0
      %326 = vmatpush1.bf16.msra.mxu0 %v293
      %327 = vmatprep.subr.bf16.mxu0 0
      %328 = vmatpush1.bf16.msra.mxu0 %v292
      %329 = vmatprep.subr.bf16.mxu0 0
      %330 = vmatpush2.bf16.msra.mxu0 0
      %331 = vmatprep.subr.bf16.mxu0 0
      %332 = vmatpush2.bf16.msra.mxu0 0
      %333 = vmatprep.subr.bf16.mxu0 0
      %334 = vmatpush2.bf16.msra.mxu0 0
      %335 = vmatprep.subr.bf16.mxu0 0
      %336 = vmatpush2.bf16.msra.mxu0 0
      %337 = vmatprep.subr.bf16.mxu0 0
      %338 = vmatpush2.bf16.msra.mxu0 0
      %339 = vmatprep.subr.bf16.mxu0 0
      %340 = vmatpush2.bf16.msra.mxu0 0
      %341 = vmatprep.subr.bf16.mxu0 0
      %342 = vmatpush2.bf16.msra.mxu0 0
      %343 = vmatprep.subr.bf16.mxu0 0
      %344 = vmatpush2.bf16.msra.mxu0 0
      %345 = vmatprep.mubr.bf16.mxu0 0
      %346 = vmatmul.mubr.bf16.gmra.mxu0 %v302
      %v347 = vpop.f32.mrf.mxu0
      %v348 = vadd.f32 %v254, %v347
      %v349 = vpop.f32.mrf.mxu0
      %v350 = vpop.f32.mrf.mxu0
      %v351 = vadd.f32 %v254, %v350
      %v352 = vpop.f32.mrf.mxu0
      %353 = vmatprep.mubr.bf16.mxu0 0
      %354 = vmatmul.mubr.bf16.gmra.mxu0 %v305
      %v355 = vpop.f32.mrf.mxu0
      %v356 = vadd.f32 %v254, %v355
      %v357 = vpop.f32.mrf.mxu0
      %v358 = vpop.f32.mrf.mxu0
      %v359 = vadd.f32 %v254, %v358
      %v360 = vpop.f32.mrf.mxu0
      %361 = vmatprep.mubr.bf16.mxu0 0
      %362 = vmatmul.mubr.bf16.gmra.mxu0 %v308
      %v363 = vpop.f32.mrf.mxu0
      %v364 = vadd.f32 %v254, %v363
      %v365 = vpop.f32.mrf.mxu0
      %v366 = vpop.f32.mrf.mxu0
      %v367 = vadd.f32 %v254, %v366
      %v368 = vpop.f32.mrf.mxu0
      %369 = vmatprep.mubr.bf16.mxu0 0
      %370 = vmatmul.mubr.bf16.gmra.mxu0 %v311
      %v371 = vpop.f32.mrf.mxu0
      %v372 = vadd.f32 %v254, %v371
      %v373 = vpop.f32.mrf.mxu0
      %v374 = vpop.f32.mrf.mxu0
      %v375 = vadd.f32 %v254, %v374
      %v376 = vpop.f32.mrf.mxu0
      %377 = vdwg.mxu0
      %378 = vst [vmem:[#allocation2] sm:$0xff] %v348
      %379 = vst [vmem:[#allocation2 + $0x8] sm:$0xff] %v351
      %380 = vst [vmem:[#allocation2 + $0x10] sm:$0xff] %v356
      %381 = vst [vmem:[#allocation2 + $0x18] sm:$0xff] %v359
      %382 = vst [vmem:[#allocation2 + $0x20] sm:$0xff] %v364
      %383 = vst [vmem:[#allocation2 + $0x28] sm:$0xff] %v367
      %384 = vst [vmem:[#allocation2 + $0x30] sm:$0xff] %v372
      %385 = vst [vmem:[#allocation2 + $0x38] sm:$0xff] %v375
      %vm386 = vcmask 261120
      %387 = vst.msk [vmem:[#allocation3] sm:$0xff] %vm386, 0.0
      %388 = vst.msk [vmem:[#allocation4] sm:$0xff] %vm386, 0.0
      %p389 = scmp.eq.s32.totalorder %s15, 1
      %s390 = scalar_select %p389, 7, 0
      %s391 = smul.u32 %s390, 8
      %s392 = scalar_lea.vmem [#allocation2], %s391
      %v393 = vld [vmem:[%s392] sm:$0xff]
      %v394 = vld [vmem:[#allocation3] sm:$0xff]
      %v395 = vpack.c.bf16 %v394, %v394
      %v396 = vld [vmem:[%s223] sm:$0xf]
      %v397 = vld [vmem:[%s223 + $0x4] sm:$0xf]
      %v398 = vld [vmem:[%s223 + $0x8] sm:$0xf]
      %v399 = vld [vmem:[%s223 + $0xc] sm:$0xf]
      %v404 = vunpack.c.l.b16 %v396
      %v405 = vunpack.c.l.b16 %v397
      %v406 = vunpack.c.l.b16 %v398
      %v407 = vunpack.c.l.b16 %v399
      %v408 = vpack.c.b16 %v405, %v404
      %v409 = vpack.c.b16 %v407, %v406
      %v413 = vsel %vm386, %v395, 0
      %415 = vmatprep.subr.bf16.mxu0 0
      %416 = vmatpush1.bf16.msra.mxu0 0
      %417 = vmatprep.subr.bf16.mxu0 0
      %418 = vmatpush1.bf16.msra.mxu0 0
      %419 = vmatprep.subr.bf16.mxu0 0
      %420 = vmatpush1.bf16.msra.mxu0 0
      %421 = vmatprep.subr.bf16.mxu0 0
      %422 = vmatpush1.bf16.msra.mxu0 0
      %423 = vmatprep.subr.bf16.mxu0 0
      %424 = vmatpush1.bf16.msra.mxu0 0
      %425 = vmatprep.subr.bf16.mxu0 0
      %426 = vmatpush1.bf16.msra.mxu0 0
      %427 = vmatprep.subr.bf16.mxu0 0
      %428 = vmatpush1.bf16.msra.mxu0 %v409
      %429 = vmatprep.subr.bf16.mxu0 0
      %430 = vmatpush1.bf16.msra.mxu0 %v408
      %431 = vmatprep.subr.bf16.mxu0 0
      %432 = vmatpush2.bf16.msra.mxu0 0
      %433 = vmatprep.subr.bf16.mxu0 0
      %434 = vmatpush2.bf16.msra.mxu0 0
      %435 = vmatprep.subr.bf16.mxu0 0
      %436 = vmatpush2.bf16.msra.mxu0 0
      %437 = vmatprep.subr.bf16.mxu0 0
      %438 = vmatpush2.bf16.msra.mxu0 0
      %439 = vmatprep.subr.bf16.mxu0 0
      %440 = vmatpush2.bf16.msra.mxu0 0
      %441 = vmatprep.subr.bf16.mxu0 0
      %442 = vmatpush2.bf16.msra.mxu0 0
      %443 = vmatprep.subr.bf16.mxu0 0
      %444 = vmatpush2.bf16.msra.mxu0 0
      %445 = vmatprep.subr.bf16.mxu0 0
      %446 = vmatpush2.bf16.msra.mxu0 0
      %447 = vmatprep.mubr.bf16.mxu0 0
      %448 = vmatmul.mubr.bf16.gmra.mxu0 %v413
      %v449 = vpop.f32.mrf.mxu0
      %v450 = vadd.f32 0.0, %v449
      %v451 = vpop.f32.mrf.mxu0
      %v452 = vpop.f32.mrf.mxu0
      %v453 = vpop.f32.mrf.mxu0
      %454 = vdwg.mxu0
      %v455 = vadd.f32 %v393, %v450
      %v456 = vxor.u32 %v455, 2147483648
      %v457 = vmul.f32 %v456, 1.442695
      %v458 = vpow.pop %v457
      %v459 = vadd.f32 %v458, 1.0
      %v460 = vrcp.pop %v459
      %v461 = vmul.f32 1.0, %v460
      %v462 = vtanh.pop %v455
      %v463 = vld [vmem:[#allocation4] sm:$0xff]
      %465 = vrot.lane.b32.xlu0 %v463, 32
      %v466 = vpop.permute.xlu0 %465
      %v468 = vmul.f32 %v461, %v466
      %470 = vrot.lane.b32.xlu0 %v462, 64
      %v471 = vpop.permute.xlu0 %470
      %v473 = vmul.f32 %v461, %v471
      %475 = vrot.lane.b32.xlu0 %v473, 32
      %v476 = vpop.permute.xlu0 %475
      %v478 = vadd.f32 %v468, %v476
      %v479 = vtanh.pop %v478
      %481 = vrot.lane.b32.xlu0 %v479, 64
      %v482 = vpop.permute.xlu0 %481
      %v484 = vmul.f32 %v461, %v482
      %486 = vrot.lane.b32.xlu0 %v478, 96
      %v487 = vpop.permute.xlu0 %486
      %489 = vst.msk [vmem:[#allocation4] sm:$0xff] %vm386, %v487
      %491 = vrot.lane.b32.xlu0 %v484, 32
      %v492 = vpop.permute.xlu0 %491
      %494 = vst.msk [vmem:[#allocation3] sm:$0xff] %vm386, %v492
      %s495 = scalar_lea.vmem %s231, %s391
      %496 = vst.msk [vmem:[%s495] sm:$0xff] %vm386, %v492
      %s497 = scalar_select %p389, 6, 1
      %s498 = smul.u32 %s497, 8
      %s499 = scalar_lea.vmem [#allocation2], %s498
      %v500 = vld [vmem:[%s499] sm:$0xff]
      %v501 = vld [vmem:[#allocation3] sm:$0xff]
      %v502 = vpack.c.bf16 %v501, %v501
      %v503 = vld [vmem:[%s223] sm:$0xf]
      %v504 = vld [vmem:[%s223 + $0x4] sm:$0xf]
      %v505 = vld [vmem:[%s223 + $0x8] sm:$0xf]
      %v506 = vld [vmem:[%s223 + $0xc] sm:$0xf]
      %v511 = vunpack.c.l.b16 %v503
      %v512 = vunpack.c.l.b16 %v504
      %v513 = vunpack.c.l.b16 %v505
      %v514 = vunpack.c.l.b16 %v506
      %v515 = vpack.c.b16 %v512, %v511
      %v516 = vpack.c.b16 %v514, %v513
      %v520 = vsel %vm386, %v502, 0
      %522 = vmatprep.subr.bf16.mxu0 0
      %523 = vmatpush1.bf16.msra.mxu0 0
      %524 = vmatprep.subr.bf16.mxu0 0
      %525 = vmatpush1.bf16.msra.mxu0 0
      %526 = vmatprep.subr.bf16.mxu0 0
      %527 = vmatpush1.bf16.msra.mxu0 0
      %528 = vmatprep.subr.bf16.mxu0 0
      %529 = vmatpush1.bf16.msra.mxu0 0
      %530 = vmatprep.subr.bf16.mxu0 0
      %531 = vmatpush1.bf16.msra.mxu0 0
      %532 = vmatprep.subr.bf16.mxu0 0
      %533 = vmatpush1.bf16.msra.mxu0 0
      %534 = vmatprep.subr.bf16.mxu0 0
      %535 = vmatpush1.bf16.msra.mxu0 %v516
      %536 = vmatprep.subr.bf16.mxu0 0
      %537 = vmatpush1.bf16.msra.mxu0 %v515
      %538 = vmatprep.subr.bf16.mxu0 0
      %539 = vmatpush2.bf16.msra.mxu0 0
      %540 = vmatprep.subr.bf16.mxu0 0
      %541 = vmatpush2.bf16.msra.mxu0 0
      %542 = vmatprep.subr.bf16.mxu0 0
      %543 = vmatpush2.bf16.msra.mxu0 0
      %544 = vmatprep.subr.bf16.mxu0 0
      %545 = vmatpush2.bf16.msra.mxu0 0
      %546 = vmatprep.subr.bf16.mxu0 0
      %547 = vmatpush2.bf16.msra.mxu0 0
      %548 = vmatprep.subr.bf16.mxu0 0
      %549 = vmatpush2.bf16.msra.mxu0 0
      %550 = vmatprep.subr.bf16.mxu0 0
      %551 = vmatpush2.bf16.msra.mxu0 0
      %552 = vmatprep.subr.bf16.mxu0 0
      %553 = vmatpush2.bf16.msra.mxu0 0
      %554 = vmatprep.mubr.bf16.mxu0 0
      %555 = vmatmul.mubr.bf16.gmra.mxu0 %v520
      %v556 = vpop.f32.mrf.mxu0
      %v557 = vadd.f32 0.0, %v556
      %v558 = vpop.f32.mrf.mxu0
      %v559 = vpop.f32.mrf.mxu0
      %v560 = vpop.f32.mrf.mxu0
      %561 = vdwg.mxu0
      %v562 = vadd.f32 %v500, %v557
      %v563 = vxor.u32 %v562, 2147483648
      %v564 = vmul.f32 %v563, 1.442695
      %v565 = vpow.pop %v564
      %v566 = vadd.f32 %v565, 1.0
      %v567 = vrcp.pop %v566
      %v568 = vmul.f32 1.0, %v567
      %v569 = vtanh.pop %v562
      %v570 = vld [vmem:[#allocation4] sm:$0xff]
      %572 = vrot.lane.b32.xlu0 %v570, 32
      %v573 = vpop.permute.xlu0 %572
      %v575 = vmul.f32 %v568, %v573
      %577 = vrot.lane.b32.xlu0 %v569, 64
      %v578 = vpop.permute.xlu0 %577
      %v580 = vmul.f32 %v568, %v578
      %582 = vrot.lane.b32.xlu0 %v580, 32
      %v583 = vpop.permute.xlu0 %582
      %v585 = vadd.f32 %v575, %v583
      %v586 = vtanh.pop %v585
      %588 = vrot.lane.b32.xlu0 %v586, 64
      %v589 = vpop.permute.xlu0 %588
      %v591 = vmul.f32 %v568, %v589
      %593 = vrot.lane.b32.xlu0 %v585, 96
      %v594 = vpop.permute.xlu0 %593
      %596 = vst.msk [vmem:[#allocation4] sm:$0xff] %vm386, %v594
      %598 = vrot.lane.b32.xlu0 %v591, 32
      %v599 = vpop.permute.xlu0 %598
      %601 = vst.msk [vmem:[#allocation3] sm:$0xff] %vm386, %v599
      %s602 = scalar_lea.vmem %s231, %s498
      %603 = vst.msk [vmem:[%s602] sm:$0xff] %vm386, %v599
      %s604 = scalar_select %p389, 5, 2
      %s605 = smul.u32 %s604, 8
      %s606 = scalar_lea.vmem [#allocation2], %s605
      %v607 = vld [vmem:[%s606] sm:$0xff]
      %v608 = vld [vmem:[#allocation3] sm:$0xff]
      %v609 = vpack.c.bf16 %v608, %v608
      %v610 = vld [vmem:[%s223] sm:$0xf]
      %v611 = vld [vmem:[%s223 + $0x4] sm:$0xf]
      %v612 = vld [vmem:[%s223 + $0x8] sm:$0xf]
      %v613 = vld [vmem:[%s223 + $0xc] sm:$0xf]
      %v618 = vunpack.c.l.b16 %v610
      %v619 = vunpack.c.l.b16 %v611
      %v620 = vunpack.c.l.b16 %v612
      %v621 = vunpack.c.l.b16 %v613
      %v622 = vpack.c.b16 %v619, %v618
      %v623 = vpack.c.b16 %v621, %v620
      %v627 = vsel %vm386, %v609, 0
      %629 = vmatprep.subr.bf16.mxu0 0
      %630 = vmatpush1.bf16.msra.mxu0 0
      %631 = vmatprep.subr.bf16.mxu0 0
      %632 = vmatpush1.bf16.msra.mxu0 0
      %633 = vmatprep.subr.bf16.mxu0 0
      %634 = vmatpush1.bf16.msra.mxu0 0
      %635 = vmatprep.subr.bf16.mxu0 0
      %636 = vmatpush1.bf16.msra.mxu0 0
      %637 = vmatprep.subr.bf16.mxu0 0
      %638 = vmatpush1.bf16.msra.mxu0 0
      %639 = vmatprep.subr.bf16.mxu0 0
      %640 = vmatpush1.bf16.msra.mxu0 0
      %641 = vmatprep.subr.bf16.mxu0 0
      %642 = vmatpush1.bf16.msra.mxu0 %v623
      %643 = vmatprep.subr.bf16.mxu0 0
      %644 = vmatpush1.bf16.msra.mxu0 %v622
      %645 = vmatprep.subr.bf16.mxu0 0
      %646 = vmatpush2.bf16.msra.mxu0 0
      %647 = vmatprep.subr.bf16.mxu0 0
      %648 = vmatpush2.bf16.msra.mxu0 0
      %649 = vmatprep.subr.bf16.mxu0 0
      %650 = vmatpush2.bf16.msra.mxu0 0
      %651 = vmatprep.subr.bf16.mxu0 0
      %652 = vmatpush2.bf16.msra.mxu0 0
      %653 = vmatprep.subr.bf16.mxu0 0
      %654 = vmatpush2.bf16.msra.mxu0 0
      %655 = vmatprep.subr.bf16.mxu0 0
      %656 = vmatpush2.bf16.msra.mxu0 0
      %657 = vmatprep.subr.bf16.mxu0 0
      %658 = vmatpush2.bf16.msra.mxu0 0
      %659 = vmatprep.subr.bf16.mxu0 0
      %660 = vmatpush2.bf16.msra.mxu0 0
      %661 = vmatprep.mubr.bf16.mxu0 0
      %662 = vmatmul.mubr.bf16.gmra.mxu0 %v627
      %v663 = vpop.f32.mrf.mxu0
      %v664 = vadd.f32 0.0, %v663
      %v665 = vpop.f32.mrf.mxu0
      %v666 = vpop.f32.mrf.mxu0
      %v667 = vpop.f32.mrf.mxu0
      %668 = vdwg.mxu0
      %v669 = vadd.f32 %v607, %v664
      %v670 = vxor.u32 %v669, 2147483648
      %v671 = vmul.f32 %v670, 1.442695
      %v672 = vpow.pop %v671
      %v673 = vadd.f32 %v672, 1.0
      %v674 = vrcp.pop %v673
      %v675 = vmul.f32 1.0, %v674
      %v676 = vtanh.pop %v669
      %v677 = vld [vmem:[#allocation4] sm:$0xff]
      %679 = vrot.lane.b32.xlu0 %v677, 32
      %v680 = vpop.permute.xlu0 %679
      %v682 = vmul.f32 %v675, %v680
      %684 = vrot.lane.b32.xlu0 %v676, 64
      %v685 = vpop.permute.xlu0 %684
      %v687 = vmul.f32 %v675, %v685
      %689 = vrot.lane.b32.xlu0 %v687, 32
      %v690 = vpop.permute.xlu0 %689
      %v692 = vadd.f32 %v682, %v690
      %v693 = vtanh.pop %v692
      %695 = vrot.lane.b32.xlu0 %v693, 64
      %v696 = vpop.permute.xlu0 %695
      %v698 = vmul.f32 %v675, %v696
      %700 = vrot.lane.b32.xlu0 %v692, 96
      %v701 = vpop.permute.xlu0 %700
      %703 = vst.msk [vmem:[#allocation4] sm:$0xff] %vm386, %v701
      %705 = vrot.lane.b32.xlu0 %v698, 32
      %v706 = vpop.permute.xlu0 %705
      %708 = vst.msk [vmem:[#allocation3] sm:$0xff] %vm386, %v706
      %s709 = scalar_lea.vmem %s231, %s605
      %710 = vst.msk [vmem:[%s709] sm:$0xff] %vm386, %v706
      %s711 = scalar_select %p389, 4, 3
      %s712 = smul.u32 %s711, 8
      %s713 = scalar_lea.vmem [#allocation2], %s712
      %v714 = vld [vmem:[%s713] sm:$0xff]
      %v715 = vld [vmem:[#allocation3] sm:$0xff]
      %v716 = vpack.c.bf16 %v715, %v715
      %v717 = vld [vmem:[%s223] sm:$0xf]
      %v718 = vld [vmem:[%s223 + $0x4] sm:$0xf]
      %v719 = vld [vmem:[%s223 + $0x8] sm:$0xf]
      %v720 = vld [vmem:[%s223 + $0xc] sm:$0xf]
      %v725 = vunpack.c.l.b16 %v717
      %v726 = vunpack.c.l.b16 %v718
      %v727 = vunpack.c.l.b16 %v719
      %v728 = vunpack.c.l.b16 %v720
      %v729 = vpack.c.b16 %v726, %v725
      %v730 = vpack.c.b16 %v728, %v727
      %v734 = vsel %vm386, %v716, 0
      %736 = vmatprep.subr.bf16.mxu0 0
      %737 = vmatpush1.bf16.msra.mxu0 0
      %738 = vmatprep.subr.bf16.mxu0 0
      %739 = vmatpush1.bf16.msra.mxu0 0
      %740 = vmatprep.subr.bf16.mxu0 0
      %741 = vmatpush1.bf16.msra.mxu0 0
      %742 = vmatprep.subr.bf16.mxu0 0
      %743 = vmatpush1.bf16.msra.mxu0 0
      %744 = vmatprep.subr.bf16.mxu0 0
      %745 = vmatpush1.bf16.msra.mxu0 0
      %746 = vmatprep.subr.bf16.mxu0 0
      %747 = vmatpush1.bf16.msra.mxu0 0
      %748 = vmatprep.subr.bf16.mxu0 0
      %749 = vmatpush1.bf16.msra.mxu0 %v730
      %750 = vmatprep.subr.bf16.mxu0 0
      %751 = vmatpush1.bf16.msra.mxu0 %v729
      %752 = vmatprep.subr.bf16.mxu0 0
      %753 = vmatpush2.bf16.msra.mxu0 0
      %754 = vmatprep.subr.bf16.mxu0 0
      %755 = vmatpush2.bf16.msra.mxu0 0
      %756 = vmatprep.subr.bf16.mxu0 0
      %757 = vmatpush2.bf16.msra.mxu0 0
      %758 = vmatprep.subr.bf16.mxu0 0
      %759 = vmatpush2.bf16.msra.mxu0 0
      %760 = vmatprep.subr.bf16.mxu0 0
      %761 = vmatpush2.bf16.msra.mxu0 0
      %762 = vmatprep.subr.bf16.mxu0 0
      %763 = vmatpush2.bf16.msra.mxu0 0
      %764 = vmatprep.subr.bf16.mxu0 0
      %765 = vmatpush2.bf16.msra.mxu0 0
      %766 = vmatprep.subr.bf16.mxu0 0
      %767 = vmatpush2.bf16.msra.mxu0 0
      %768 = vmatprep.mubr.bf16.mxu0 0
      %769 = vmatmul.mubr.bf16.gmra.mxu0 %v734
      %v770 = vpop.f32.mrf.mxu0
      %v771 = vadd.f32 0.0, %v770
      %v772 = vpop.f32.mrf.mxu0
      %v773 = vpop.f32.mrf.mxu0
      %v774 = vpop.f32.mrf.mxu0
      %775 = vdwg.mxu0
      %v776 = vadd.f32 %v714, %v771
      %v777 = vxor.u32 %v776, 2147483648
      %v778 = vmul.f32 %v777, 1.442695
      %v779 = vpow.pop %v778
      %v780 = vadd.f32 %v779, 1.0
      %v781 = vrcp.pop %v780
      %v782 = vmul.f32 1.0, %v781
      %v783 = vtanh.pop %v776
      %v784 = vld [vmem:[#allocation4] sm:$0xff]
      %786 = vrot.lane.b32.xlu0 %v784, 32
      %v787 = vpop.permute.xlu0 %786
      %v789 = vmul.f32 %v782, %v787
      %791 = vrot.lane.b32.xlu0 %v783, 64
      %v792 = vpop.permute.xlu0 %791
      %v794 = vmul.f32 %v782, %v792
      %796 = vrot.lane.b32.xlu0 %v794, 32
      %v797 = vpop.permute.xlu0 %796
      %v799 = vadd.f32 %v789, %v797
      %v800 = vtanh.pop %v799
      %802 = vrot.lane.b32.xlu0 %v800, 64
      %v803 = vpop.permute.xlu0 %802
      %v805 = vmul.f32 %v782, %v803
      %807 = vrot.lane.b32.xlu0 %v799, 96
      %v808 = vpop.permute.xlu0 %807
      %810 = vst.msk [vmem:[#allocation4] sm:$0xff] %vm386, %v808
      %812 = vrot.lane.b32.xlu0 %v805, 32
      %v813 = vpop.permute.xlu0 %812
      %815 = vst.msk [vmem:[#allocation3] sm:$0xff] %vm386, %v813
      %s816 = scalar_lea.vmem %s231, %s712
      %817 = vst.msk [vmem:[%s816] sm:$0xff] %vm386, %v813
      %s818 = scalar_select %p389, 3, 4
      %s819 = smul.u32 %s818, 8
      %s820 = scalar_lea.vmem [#allocation2], %s819
      %v821 = vld [vmem:[%s820] sm:$0xff]
      %v822 = vld [vmem:[#allocation3] sm:$0xff]
      %v823 = vpack.c.bf16 %v822, %v822
      %v824 = vld [vmem:[%s223] sm:$0xf]
      %v825 = vld [vmem:[%s223 + $0x4] sm:$0xf]
      %v826 = vld [vmem:[%s223 + $0x8] sm:$0xf]
      %v827 = vld [vmem:[%s223 + $0xc] sm:$0xf]
      %v832 = vunpack.c.l.b16 %v824
      %v833 = vunpack.c.l.b16 %v825
      %v834 = vunpack.c.l.b16 %v826
      %v835 = vunpack.c.l.b16 %v827
      %v836 = vpack.c.b16 %v833, %v832
      %v837 = vpack.c.b16 %v835, %v834
      %v841 = vsel %vm386, %v823, 0
      %843 = vmatprep.subr.bf16.mxu0 0
      %844 = vmatpush1.bf16.msra.mxu0 0
      %845 = vmatprep.subr.bf16.mxu0 0
      %846 = vmatpush1.bf16.msra.mxu0 0
      %847 = vmatprep.subr.bf16.mxu0 0
      %848 = vmatpush1.bf16.msra.mxu0 0
      %849 = vmatprep.subr.bf16.mxu0 0
      %850 = vmatpush1.bf16.msra.mxu0 0
      %851 = vmatprep.subr.bf16.mxu0 0
      %852 = vmatpush1.bf16.msra.mxu0 0
      %853 = vmatprep.subr.bf16.mxu0 0
      %854 = vmatpush1.bf16.msra.mxu0 0
      %855 = vmatprep.subr.bf16.mxu0 0
      %856 = vmatpush1.bf16.msra.mxu0 %v837
      %857 = vmatprep.subr.bf16.mxu0 0
      %858 = vmatpush1.bf16.msra.mxu0 %v836
      %859 = vmatprep.subr.bf16.mxu0 0
      %860 = vmatpush2.bf16.msra.mxu0 0
      %861 = vmatprep.subr.bf16.mxu0 0
      %862 = vmatpush2.bf16.msra.mxu0 0
      %863 = vmatprep.subr.bf16.mxu0 0
      %864 = vmatpush2.bf16.msra.mxu0 0
      %865 = vmatprep.subr.bf16.mxu0 0
      %866 = vmatpush2.bf16.msra.mxu0 0
      %867 = vmatprep.subr.bf16.mxu0 0
      %868 = vmatpush2.bf16.msra.mxu0 0
      %869 = vmatprep.subr.bf16.mxu0 0
      %870 = vmatpush2.bf16.msra.mxu0 0
      %871 = vmatprep.subr.bf16.mxu0 0
      %872 = vmatpush2.bf16.msra.mxu0 0
      %873 = vmatprep.subr.bf16.mxu0 0
      %874 = vmatpush2.bf16.msra.mxu0 0
      %875 = vmatprep.mubr.bf16.mxu0 0
      %876 = vmatmul.mubr.bf16.gmra.mxu0 %v841
      %v877 = vpop.f32.mrf.mxu0
      %v878 = vadd.f32 0.0, %v877
      %v879 = vpop.f32.mrf.mxu0
      %v880 = vpop.f32.mrf.mxu0
      %v881 = vpop.f32.mrf.mxu0
      %882 = vdwg.mxu0
      %v883 = vadd.f32 %v821, %v878
      %v884 = vxor.u32 %v883, 2147483648
      %v885 = vmul.f32 %v884, 1.442695
      %v886 = vpow.pop %v885
      %v887 = vadd.f32 %v886, 1.0
      %v888 = vrcp.pop %v887
      %v889 = vmul.f32 1.0, %v888
      %v890 = vtanh.pop %v883
      %v891 = vld [vmem:[#allocation4] sm:$0xff]
      %893 = vrot.lane.b32.xlu0 %v891, 32
      %v894 = vpop.permute.xlu0 %893
      %v896 = vmul.f32 %v889, %v894
      %898 = vrot.lane.b32.xlu0 %v890, 64
      %v899 = vpop.permute.xlu0 %898
      %v901 = vmul.f32 %v889, %v899
      %903 = vrot.lane.b32.xlu0 %v901, 32
      %v904 = vpop.permute.xlu0 %903
      %v906 = vadd.f32 %v896, %v904
      %v907 = vtanh.pop %v906
      %909 = vrot.lane.b32.xlu0 %v907, 64
      %v910 = vpop.permute.xlu0 %909
      %v912 = vmul.f32 %v889, %v910
      %914 = vrot.lane.b32.xlu0 %v906, 96
      %v915 = vpop.permute.xlu0 %914
      %917 = vst.msk [vmem:[#allocation4] sm:$0xff] %vm386, %v915
      %919 = vrot.lane.b32.xlu0 %v912, 32
      %v920 = vpop.permute.xlu0 %919
      %922 = vst.msk [vmem:[#allocation3] sm:$0xff] %vm386, %v920
      %s923 = scalar_lea.vmem %s231, %s819
      %924 = vst.msk [vmem:[%s923] sm:$0xff] %vm386, %v920
      %s925 = scalar_select %p389, 2, 5
      %s926 = smul.u32 %s925, 8
      %s927 = scalar_lea.vmem [#allocation2], %s926
      %v928 = vld [vmem:[%s927] sm:$0xff]
      %v929 = vld [vmem:[#allocation3] sm:$0xff]
      %v930 = vpack.c.bf16 %v929, %v929
      %v931 = vld [vmem:[%s223] sm:$0xf]
      %v932 = vld [vmem:[%s223 + $0x4] sm:$0xf]
      %v933 = vld [vmem:[%s223 + $0x8] sm:$0xf]
      %v934 = vld [vmem:[%s223 + $0xc] sm:$0xf]
      %v939 = vunpack.c.l.b16 %v931
      %v940 = vunpack.c.l.b16 %v932
      %v941 = vunpack.c.l.b16 %v933
      %v942 = vunpack.c.l.b16 %v934
      %v943 = vpack.c.b16 %v940, %v939
      %v944 = vpack.c.b16 %v942, %v941
      %v948 = vsel %vm386, %v930, 0
      %950 = vmatprep.subr.bf16.mxu0 0
      %951 = vmatpush1.bf16.msra.mxu0 0
      %952 = vmatprep.subr.bf16.mxu0 0
      %953 = vmatpush1.bf16.msra.mxu0 0
      %954 = vmatprep.subr.bf16.mxu0 0
      %955 = vmatpush1.bf16.msra.mxu0 0
      %956 = vmatprep.subr.bf16.mxu0 0
      %957 = vmatpush1.bf16.msra.mxu0 0
      %958 = vmatprep.subr.bf16.mxu0 0
      %959 = vmatpush1.bf16.msra.mxu0 0
      %960 = vmatprep.subr.bf16.mxu0 0
      %961 = vmatpush1.bf16.msra.mxu0 0
      %962 = vmatprep.subr.bf16.mxu0 0
      %963 = vmatpush1.bf16.msra.mxu0 %v944
      %964 = vmatprep.subr.bf16.mxu0 0
      %965 = vmatpush1.bf16.msra.mxu0 %v943
      %966 = vmatprep.subr.bf16.mxu0 0
      %967 = vmatpush2.bf16.msra.mxu0 0
      %968 = vmatprep.subr.bf16.mxu0 0
      %969 = vmatpush2.bf16.msra.mxu0 0
      %970 = vmatprep.subr.bf16.mxu0 0
      %971 = vmatpush2.bf16.msra.mxu0 0
      %972 = vmatprep.subr.bf16.mxu0 0
      %973 = vmatpush2.bf16.msra.mxu0 0
      %974 = vmatprep.subr.bf16.mxu0 0
      %975 = vmatpush2.bf16.msra.mxu0 0
      %976 = vmatprep.subr.bf16.mxu0 0
      %977 = vmatpush2.bf16.msra.mxu0 0
      %978 = vmatprep.subr.bf16.mxu0 0
      %979 = vmatpush2.bf16.msra.mxu0 0
      %980 = vmatprep.subr.bf16.mxu0 0
      %981 = vmatpush2.bf16.msra.mxu0 0
      %982 = vmatprep.mubr.bf16.mxu0 0
      %983 = vmatmul.mubr.bf16.gmra.mxu0 %v948
      %v984 = vpop.f32.mrf.mxu0
      %v985 = vadd.f32 0.0, %v984
      %v986 = vpop.f32.mrf.mxu0
      %v987 = vpop.f32.mrf.mxu0
      %v988 = vpop.f32.mrf.mxu0
      %989 = vdwg.mxu0
      %v990 = vadd.f32 %v928, %v985
      %v991 = vxor.u32 %v990, 2147483648
      %v992 = vmul.f32 %v991, 1.442695
      %v993 = vpow.pop %v992
      %v994 = vadd.f32 %v993, 1.0
      %v995 = vrcp.pop %v994
      %v996 = vmul.f32 1.0, %v995
      %v997 = vtanh.pop %v990
      %v998 = vld [vmem:[#allocation4] sm:$0xff]
      %1000 = vrot.lane.b32.xlu0 %v998, 32
      %v1001 = vpop.permute.xlu0 %1000
      %v1003 = vmul.f32 %v996, %v1001
      %1005 = vrot.lane.b32.xlu0 %v997, 64
      %v1006 = vpop.permute.xlu0 %1005
      %v1008 = vmul.f32 %v996, %v1006
      %1010 = vrot.lane.b32.xlu0 %v1008, 32
      %v1011 = vpop.permute.xlu0 %1010
      %v1013 = vadd.f32 %v1003, %v1011
      %v1014 = vtanh.pop %v1013
      %1016 = vrot.lane.b32.xlu0 %v1014, 64
      %v1017 = vpop.permute.xlu0 %1016
      %v1019 = vmul.f32 %v996, %v1017
      %1021 = vrot.lane.b32.xlu0 %v1013, 96
      %v1022 = vpop.permute.xlu0 %1021
      %1024 = vst.msk [vmem:[#allocation4] sm:$0xff] %vm386, %v1022
      %1026 = vrot.lane.b32.xlu0 %v1019, 32
      %v1027 = vpop.permute.xlu0 %1026
      %1029 = vst.msk [vmem:[#allocation3] sm:$0xff] %vm386, %v1027
      %s1030 = scalar_lea.vmem %s231, %s926
      %1031 = vst.msk [vmem:[%s1030] sm:$0xff] %vm386, %v1027
      %s1032 = scalar_select %p389, 1, 6
      %s1033 = smul.u32 %s1032, 8
      %s1034 = scalar_lea.vmem [#allocation2], %s1033
      %v1035 = vld [vmem:[%s1034] sm:$0xff]
      %v1036 = vld [vmem:[#allocation3] sm:$0xff]
      %v1037 = vpack.c.bf16 %v1036, %v1036
      %v1038 = vld [vmem:[%s223] sm:$0xf]
      %v1039 = vld [vmem:[%s223 + $0x4] sm:$0xf]
      %v1040 = vld [vmem:[%s223 + $0x8] sm:$0xf]
      %v1041 = vld [vmem:[%s223 + $0xc] sm:$0xf]
      %v1046 = vunpack.c.l.b16 %v1038
      %v1047 = vunpack.c.l.b16 %v1039
      %v1048 = vunpack.c.l.b16 %v1040
      %v1049 = vunpack.c.l.b16 %v1041
      %v1050 = vpack.c.b16 %v1047, %v1046
      %v1051 = vpack.c.b16 %v1049, %v1048
      %v1055 = vsel %vm386, %v1037, 0
      %1057 = vmatprep.subr.bf16.mxu0 0
      %1058 = vmatpush1.bf16.msra.mxu0 0
      %1059 = vmatprep.subr.bf16.mxu0 0
      %1060 = vmatpush1.bf16.msra.mxu0 0
      %1061 = vmatprep.subr.bf16.mxu0 0
      %1062 = vmatpush1.bf16.msra.mxu0 0
      %1063 = vmatprep.subr.bf16.mxu0 0
      %1064 = vmatpush1.bf16.msra.mxu0 0
      %1065 = vmatprep.subr.bf16.mxu0 0
      %1066 = vmatpush1.bf16.msra.mxu0 0
      %1067 = vmatprep.subr.bf16.mxu0 0
      %1068 = vmatpush1.bf16.msra.mxu0 0
      %1069 = vmatprep.subr.bf16.mxu0 0
      %1070 = vmatpush1.bf16.msra.mxu0 %v1051
      %1071 = vmatprep.subr.bf16.mxu0 0
      %1072 = vmatpush1.bf16.msra.mxu0 %v1050
      %1073 = vmatprep.subr.bf16.mxu0 0
      %1074 = vmatpush2.bf16.msra.mxu0 0
      %1075 = vmatprep.subr.bf16.mxu0 0
      %1076 = vmatpush2.bf16.msra.mxu0 0
      %1077 = vmatprep.subr.bf16.mxu0 0
      %1078 = vmatpush2.bf16.msra.mxu0 0
      %1079 = vmatprep.subr.bf16.mxu0 0
      %1080 = vmatpush2.bf16.msra.mxu0 0
      %1081 = vmatprep.subr.bf16.mxu0 0
      %1082 = vmatpush2.bf16.msra.mxu0 0
      %1083 = vmatprep.subr.bf16.mxu0 0
      %1084 = vmatpush2.bf16.msra.mxu0 0
      %1085 = vmatprep.subr.bf16.mxu0 0
      %1086 = vmatpush2.bf16.msra.mxu0 0
      %1087 = vmatprep.subr.bf16.mxu0 0
      %1088 = vmatpush2.bf16.msra.mxu0 0
      %1089 = vmatprep.mubr.bf16.mxu0 0
      %1090 = vmatmul.mubr.bf16.gmra.mxu0 %v1055
      %v1091 = vpop.f32.mrf.mxu0
      %v1092 = vadd.f32 0.0, %v1091
      %v1093 = vpop.f32.mrf.mxu0
      %v1094 = vpop.f32.mrf.mxu0
      %v1095 = vpop.f32.mrf.mxu0
      %1096 = vdwg.mxu0
      %v1097 = vadd.f32 %v1035, %v1092
      %v1098 = vxor.u32 %v1097, 2147483648
      %v1099 = vmul.f32 %v1098, 1.442695
      %v1100 = vpow.pop %v1099
      %v1101 = vadd.f32 %v1100, 1.0
      %v1102 = vrcp.pop %v1101
      %v1103 = vmul.f32 1.0, %v1102
      %v1104 = vtanh.pop %v1097
      %v1105 = vld [vmem:[#allocation4] sm:$0xff]
      %1107 = vrot.lane.b32.xlu0 %v1105, 32
      %v1108 = vpop.permute.xlu0 %1107
      %v1110 = vmul.f32 %v1103, %v1108
      %1112 = vrot.lane.b32.xlu0 %v1104, 64
      %v1113 = vpop.permute.xlu0 %1112
      %v1115 = vmul.f32 %v1103, %v1113
      %1117 = vrot.lane.b32.xlu0 %v1115, 32
      %v1118 = vpop.permute.xlu0 %1117
      %v1120 = vadd.f32 %v1110, %v1118
      %v1121 = vtanh.pop %v1120
      %1123 = vrot.lane.b32.xlu0 %v1121, 64
      %v1124 = vpop.permute.xlu0 %1123
      %v1126 = vmul.f32 %v1103, %v1124
      %1128 = vrot.lane.b32.xlu0 %v1120, 96
      %v1129 = vpop.permute.xlu0 %1128
      %1131 = vst.msk [vmem:[#allocation4] sm:$0xff] %vm386, %v1129
      %1133 = vrot.lane.b32.xlu0 %v1126, 32
      %v1134 = vpop.permute.xlu0 %1133
      %1136 = vst.msk [vmem:[#allocation3] sm:$0xff] %vm386, %v1134
      %s1137 = scalar_lea.vmem %s231, %s1033
      %1138 = vst.msk [vmem:[%s1137] sm:$0xff] %vm386, %v1134
      %s1139 = scalar_select %p389, 0, 7
      %s1140 = smul.u32 %s1139, 8
      %s1141 = scalar_lea.vmem [#allocation2], %s1140
      %v1142 = vld [vmem:[%s1141] sm:$0xff]
      %v1143 = vld [vmem:[#allocation3] sm:$0xff]
      %v1144 = vpack.c.bf16 %v1143, %v1143
      %v1145 = vld [vmem:[%s223] sm:$0xf]
      %v1146 = vld [vmem:[%s223 + $0x4] sm:$0xf]
      %v1147 = vld [vmem:[%s223 + $0x8] sm:$0xf]
      %v1148 = vld [vmem:[%s223 + $0xc] sm:$0xf]
      %v1153 = vunpack.c.l.b16 %v1145
      %v1154 = vunpack.c.l.b16 %v1146
      %v1155 = vunpack.c.l.b16 %v1147
      %v1156 = vunpack.c.l.b16 %v1148
      %v1157 = vpack.c.b16 %v1154, %v1153
      %v1158 = vpack.c.b16 %v1156, %v1155
      %v1162 = vsel %vm386, %v1144, 0
      %1164 = vmatprep.subr.bf16.mxu0 0
      %1165 = vmatpush1.bf16.msra.mxu0 0
      %1166 = vmatprep.subr.bf16.mxu0 0
      %1167 = vmatpush1.bf16.msra.mxu0 0
      %1168 = vmatprep.subr.bf16.mxu0 0
      %1169 = vmatpush1.bf16.msra.mxu0 0
      %1170 = vmatprep.subr.bf16.mxu0 0
      %1171 = vmatpush1.bf16.msra.mxu0 0
      %1172 = vmatprep.subr.bf16.mxu0 0
      %1173 = vmatpush1.bf16.msra.mxu0 0
      %1174 = vmatprep.subr.bf16.mxu0 0
      %1175 = vmatpush1.bf16.msra.mxu0 0
      %1176 = vmatprep.subr.bf16.mxu0 0
      %1177 = vmatpush1.bf16.msra.mxu0 %v1158
      %1178 = vmatprep.subr.bf16.mxu0 0
      %1179 = vmatpush1.bf16.msra.mxu0 %v1157
      %1180 = vmatprep.subr.bf16.mxu0 0
      %1181 = vmatpush2.bf16.msra.mxu0 0
      %1182 = vmatprep.subr.bf16.mxu0 0
      %1183 = vmatpush2.bf16.msra.mxu0 0
      %1184 = vmatprep.subr.bf16.mxu0 0
      %1185 = vmatpush2.bf16.msra.mxu0 0
      %1186 = vmatprep.subr.bf16.mxu0 0
      %1187 = vmatpush2.bf16.msra.mxu0 0
      %1188 = vmatprep.subr.bf16.mxu0 0
      %1189 = vmatpush2.bf16.msra.mxu0 0
      %1190 = vmatprep.subr.bf16.mxu0 0
      %1191 = vmatpush2.bf16.msra.mxu0 0
      %1192 = vmatprep.subr.bf16.mxu0 0
      %1193 = vmatpush2.bf16.msra.mxu0 0
      %1194 = vmatprep.subr.bf16.mxu0 0
      %1195 = vmatpush2.bf16.msra.mxu0 0
      %1196 = vmatprep.mubr.bf16.mxu0 0
      %1197 = vmatmul.mubr.bf16.gmra.mxu0 %v1162
      %v1198 = vpop.f32.mrf.mxu0
      %v1199 = vadd.f32 0.0, %v1198
      %v1200 = vpop.f32.mrf.mxu0
      %v1201 = vpop.f32.mrf.mxu0
      %v1202 = vpop.f32.mrf.mxu0
      %1203 = vdwg.mxu0
      %v1204 = vadd.f32 %v1142, %v1199
      %v1205 = vxor.u32 %v1204, 2147483648
      %v1206 = vmul.f32 %v1205, 1.442695
      %v1207 = vpow.pop %v1206
      %v1208 = vadd.f32 %v1207, 1.0
      %v1209 = vrcp.pop %v1208
      %v1210 = vmul.f32 1.0, %v1209
      %v1211 = vtanh.pop %v1204
      %v1212 = vld [vmem:[#allocation4] sm:$0xff]
      %1214 = vrot.lane.b32.xlu0 %v1212, 32
      %v1215 = vpop.permute.xlu0 %1214
      %v1217 = vmul.f32 %v1210, %v1215
      %1219 = vrot.lane.b32.xlu0 %v1211, 64
      %v1220 = vpop.permute.xlu0 %1219
      %v1222 = vmul.f32 %v1210, %v1220
      %1224 = vrot.lane.b32.xlu0 %v1222, 32
      %v1225 = vpop.permute.xlu0 %1224
      %v1227 = vadd.f32 %v1217, %v1225
      %v1228 = vtanh.pop %v1227
      %1230 = vrot.lane.b32.xlu0 %v1228, 64
      %v1231 = vpop.permute.xlu0 %1230
      %v1233 = vmul.f32 %v1210, %v1231
      %1235 = vrot.lane.b32.xlu0 %v1227, 96
      %v1236 = vpop.permute.xlu0 %1235
      %1238 = vst.msk [vmem:[#allocation4] sm:$0xff] %vm386, %v1236
      %1240 = vrot.lane.b32.xlu0 %v1233, 32
      %v1241 = vpop.permute.xlu0 %1240
      %1243 = vst.msk [vmem:[#allocation3] sm:$0xff] %vm386, %v1241
      %s1244 = scalar_lea.vmem %s231, %s1140
      %1245 = vst.msk [vmem:[%s1244] sm:$0xff] %vm386, %v1241
      %p1246 = scmp.lt.s32.totalorder %s15, 1
      %s1247 = scalar_select %p1246, %s15, 1
      %s1248 = smul.addr %s1247, 8
      %s1249 = smul.addr %s1248, 8
      %s1250 = scalar_lea.vmem %s4, %s1249
      // Predicated region
      $region37: #{birnn_forward.3} parent=35 // pred_check
        %p1251 = pneg %p132
      $region38: #{birnn_forward.3} parent=35 // pred_check_branch
        %1253 = sbr.rel (%p1251) target = $region40
      $region39: #{birnn_forward.3} parent=35 // pred_region
        _
      $region40: #{birnn_forward.3} parent=35 // pred_fallthru
        _
    $region36: #{birnn_forward.3} parent=5 // pred_fallthru
      _
    %p1254 = scmp.le.s32.totalorder 2, %s10
    // Predicated region
    $region41: #{birnn_forward.3} parent=5 // pred_check
      %p1255 = pneg %p1254
    $region42: #{birnn_forward.3} parent=5 // pred_check_branch
      %1257 = sbr.rel (%p1255) target = $region44
    $region43: #{birnn_forward.3} parent=5 // pred_region
      %s1258 = ssub.s32 %s10, 2
      // Predicated region
      $region45: #{birnn_forward.3} parent=43 // pred_check
        %p1259 = pneg %p138
      $region46: #{birnn_forward.3} parent=43 // pred_check_branch
        %1261 = sbr.rel (%p1259) target = $region48
      $region47: #{birnn_forward.3} parent=43 // pred_region
        %p1262 = scmp.lt.s32.totalorder %s16, 1
        %s1263 = scalar_select %p1262, %s16, 1
        %s1264 = smul.addr %s1263, 8
        %s1265 = smul.addr %s1264, 8
        %s1266 = scalar_lea.vmem %s4, %s1265
      $region48: #{birnn_forward.3} parent=43 // pred_fallthru
        _
    $region44: #{birnn_forward.3} parent=5 // pred_fallthru
      _
  $region6: #{birnn_forward.3} parent=0 // loop_footer
    %s14 = sadd.s32 1, %s10
  $region7: #{birnn_forward.3} parent=0 // loop_footer_branch
    %9 = sbr.rel target = $region3
  $region8: #{birnn_forward.3} parent=0 // loop_exit
    _

// kernel: birnn_forward.2
$region0: #{birnn_forward.2}
  #allocation0 [shape = 'u32[]', space=smem, size = 0x4, offset = 0x4, fixed_abs, tag = 'smem constant byte address 0x4 - core index']
  #allocation1 [shape = 'u32[144,128]{1,0:T(1,128)}', space=vmem, size = 0x12000, scoped, tag = 'internal scratch']
  #allocation2 [shape = 'f32[8,8,128]{2,1,0:T(8,128)}', space=vmem, size = 0x8000, scoped, tag = 'scratch operand']
  #allocation3 [shape = 'f32[8,32]{1,0:T(8,128)}', space=vmem, size = 0x1000, scoped, tag = 'scratch operand']
  #allocation4 [shape = 'f32[8,32]{1,0:T(8,128)}', space=vmem, size = 0x1000, scoped, tag = 'scratch operand']
  %s0 = inlined_call_operand.vmem [shape: bf16[8,8,32], index: 0, kind: input, shape index: {}]
  %s1 = inlined_call_operand.vmem [shape: bf16[2,32,128], index: 1, kind: input, shape index: {}]
  %s2 = inlined_call_operand.vmem [shape: bf16[2,32,128], index: 2, kind: input, shape index: {}]
  %s3 = inlined_call_operand.vmem [shape: f32[2,1,128], index: 3, kind: input, shape index: {}]
  %s4 = inlined_call_operand.vmem [shape: f32[2,8,8,32], index: 4, kind: output, shape index: {}]
  %s5 = sld [smem:[#allocation0]]
  $region49: #{birnn_forward.2} parent=0
    _
  %s7 = ssub.s32 1, %s5
  %s8 = scalar_select 0, %s7, %s5
  loop: start=0, step=1, limit=4
  $region2: #{birnn_forward.2} parent=0 // loop_pre_header
    _
  $region3: #{birnn_forward.2} parent=0 // loop_header
    %s10 = sphi 0, %s14
    %p11 = scmp.ge.s32.totalorder %s10, 4
    %s18 = sphi 0, %s18
    %s20 = sphi 0, %s18
    %s21 = sphi 0, %s20
    %s35 = sphi 0, %s21
    %s41 = sphi 0, %s43
    %s44 = sphi 0, %s41
    %s45 = sphi 0, %s44
    %s61 = sphi 0, %s45
    %s67 = sphi 0, %s69
    %s70 = sphi 0, %s67
    %s71 = sphi 0, %s70
    %s87 = sphi 0, %s71
    %s93 = sphi 0, %s95
    %s96 = sphi 0, %s93
    %s97 = sphi 0, %s96
    %s113 = sphi 0, %s97
    %s119 = sphi 0, %s121
    %s122 = sphi 0, %s119
    %s123 = sphi 0, %s122
    %s139 = sphi 0, %s123
  $region4: #{birnn_forward.2} parent=0 // loop_header_branch
    %13 = sbr.rel (%p11) target = $region8
  $region5: #{birnn_forward.2} parent=0 // loop_body
    %s15 = ssub.s32 %s10, 1
    %s16 = ssub.s32 %s10, 2
    %s17 = sadd.s32 %s10, 1
    %s19 = sadd.s32 %s18, 1
    %p22 = scmp.eq.s32.totalorder %s10, 1
    %p23 = scmp.ne.s32.totalorder %s18, %s20
    %p24 = scmp.eq.s32.totalorder %s10, 0
    %p25 = por %p23, %p24
    %p26 = scmp.ne.s32.totalorder %s18, %s20
    %p27 = scmp.eq.s32.totalorder %s15, 1
    %p28 = por %p26, %p27
    %p29 = scmp.ne.s32.totalorder %s20, %s21
    %p30 = scmp.eq.s32.totalorder %s15, 0
    %p31 = por %p29, %p30
    %p32 = scmp.ne.s32.totalorder %s20, %s21
    %p33 = scmp.eq.s32.totalorder %s16, 1
    %p34 = por %p32, %p33
    %p36 = scmp.ne.s32.totalorder %s21, %s35
    %p37 = scmp.eq.s32.totalorder %s16, 0
    %p38 = por %p36, %p37
    %s39 = ssub.s32 %s10, %s17
    %p40 = scmp.eq.s32.totalorder %s39, 0
    %s42 = sadd.s32 %s41, 1
    %s43 = scalar_select %p40, %s41, %s42
    %p46 = pneg %p40
    %p47 = scmp.eq.s32.totalorder %s10, 1
    %p48 = por %p46, %p47
    %p49 = scmp.ne.s32.totalorder %s41, %s44
    %p50 = scmp.eq.s32.totalorder %s10, 0
    %p51 = por %p49, %p50
    %p52 = scmp.ne.s32.totalorder %s41, %s44
    %p53 = scmp.eq.s32.totalorder %s15, 1
    %p54 = por %p52, %p53
    %p55 = scmp.ne.s32.totalorder %s44, %s45
    %p56 = scmp.eq.s32.totalorder %s15, 0
    %p57 = por %p55, %p56
    %p58 = scmp.ne.s32.totalorder %s44, %s45
    %p59 = scmp.eq.s32.totalorder %s16, 1
    %p60 = por %p58, %p59
    %p62 = scmp.ne.s32.totalorder %s45, %s61
    %p63 = scmp.eq.s32.totalorder %s16, 0
    %p64 = por %p62, %p63
    %s65 = ssub.s32 %s10, %s17
    %p66 = scmp.eq.s32.totalorder %s65, 0
    %s68 = sadd.s32 %s67, 1
    %s69 = scalar_select %p66, %s67, %s68
    %p72 = pneg %p66
    %p73 = scmp.eq.s32.totalorder %s10, 1
    %p74 = por %p72, %p73
    %p75 = scmp.ne.s32.totalorder %s67, %s70
    %p76 = scmp.eq.s32.totalorder %s10, 0
    %p77 = por %p75, %p76
    %p78 = scmp.ne.s32.totalorder %s67, %s70
    %p79 = scmp.eq.s32.totalorder %s15, 1
    %p80 = por %p78, %p79
    %p81 = scmp.ne.s32.totalorder %s70, %s71
    %p82 = scmp.eq.s32.totalorder %s15, 0
    %p83 = por %p81, %p82
    %p84 = scmp.ne.s32.totalorder %s70, %s71
    %p85 = scmp.eq.s32.totalorder %s16, 1
    %p86 = por %p84, %p85
    %p88 = scmp.ne.s32.totalorder %s71, %s87
    %p89 = scmp.eq.s32.totalorder %s16, 0
    %p90 = por %p88, %p89
    %s91 = ssub.s32 %s10, %s17
    %p92 = scmp.eq.s32.totalorder %s91, 0
    %s94 = sadd.s32 %s93, 1
    %s95 = scalar_select %p92, %s93, %s94
    %p98 = pneg %p92
    %p99 = scmp.eq.s32.totalorder %s10, 1
    %p100 = por %p98, %p99
    %p101 = scmp.ne.s32.totalorder %s93, %s96
    %p102 = scmp.eq.s32.totalorder %s10, 0
    %p103 = por %p101, %p102
    %p104 = scmp.ne.s32.totalorder %s93, %s96
    %p105 = scmp.eq.s32.totalorder %s15, 1
    %p106 = por %p104, %p105
    %p107 = scmp.ne.s32.totalorder %s96, %s97
    %p108 = scmp.eq.s32.totalorder %s15, 0
    %p109 = por %p107, %p108
    %p110 = scmp.ne.s32.totalorder %s96, %s97
    %p111 = scmp.eq.s32.totalorder %s16, 1
    %p112 = por %p110, %p111
    %p114 = scmp.ne.s32.totalorder %s97, %s113
    %p115 = scmp.eq.s32.totalorder %s16, 0
    %p116 = por %p114, %p115
    %s117 = ssub.s32 %s10, %s17
    %p118 = scmp.eq.s32.totalorder %s117, 0
    %s120 = sadd.s32 %s119, 1
    %s121 = scalar_select %p118, %s119, %s120
    %p124 = pneg %p118
    %p125 = scmp.eq.s32.totalorder %s10, 1
    %p126 = por %p124, %p125
    %p127 = scmp.ne.s32.totalorder %s119, %s122
    %p128 = scmp.eq.s32.totalorder %s10, 0
    %p129 = por %p127, %p128
    %p130 = scmp.ne.s32.totalorder %s119, %s122
    %p131 = scmp.eq.s32.totalorder %s15, 1
    %p132 = por %p130, %p131
    %p133 = scmp.ne.s32.totalorder %s122, %s123
    %p134 = scmp.eq.s32.totalorder %s15, 0
    %p135 = por %p133, %p134
    %p136 = scmp.ne.s32.totalorder %s122, %s123
    %p137 = scmp.eq.s32.totalorder %s16, 1
    %p138 = por %p136, %p137
    %p140 = scmp.ne.s32.totalorder %s123, %s139
    %p141 = scmp.eq.s32.totalorder %s16, 0
    %p142 = por %p140, %p141
    %p143 = scmp.le.s32.totalorder 1, %s10
    %p144 = scmp.lt.s32.totalorder %s10, 3
    %p145 = pnand %p143, %p144
    %p146 = pneg %p145
    // Predicated region
    $region9: #{birnn_forward.2} parent=5 // pred_check
      _
    $region10: #{birnn_forward.2} parent=5 // pred_check_branch
      %148 = sbr.rel (%p145) target = $region12
    $region11: #{birnn_forward.2} parent=5 // pred_region
      %s149 = ssub.s32 %s10, 1
      // Predicated region
      $region13: #{birnn_forward.2} parent=11 // pred_check
        %p150 = pneg %p31
      $region14: #{birnn_forward.2} parent=11 // pred_check_branch
        %152 = sbr.rel (%p150) target = $region16
      $region15: #{birnn_forward.2} parent=11 // pred_region
        _
      $region16: #{birnn_forward.2} parent=11 // pred_fallthru
        _
    $region12: #{birnn_forward.2} parent=5 // pred_fallthru
      _
    %p153 = scmp.lt.s32.totalorder %s10, 2
    // Predicated region
    $region17: #{birnn_forward.2} parent=5 // pred_check
      %p154 = pneg %p153
    $region18: #{birnn_forward.2} parent=5 // pred_check_branch
      %156 = sbr.rel (%p154) target = $region20
    $region19: #{birnn_forward.2} parent=5 // pred_region
      // Predicated region
      $region21: #{birnn_forward.2} parent=19 // pred_check
        %p157 = pneg %p51
      $region22: #{birnn_forward.2} parent=19 // pred_check_branch
        %159 = sbr.rel (%p157) target = $region24
      $region23: #{birnn_forward.2} parent=19 // pred_region
        %p160 = scmp.lt.s32.totalorder %s10, 1
        %s161 = scalar_select %p160, %s10, 1
        %s162 = smul.addr %s161, 4
        %s163 = smul.addr %s162, 4
        %s164 = scalar_lea.vmem %s1, %s163
      $region24: #{birnn_forward.2} parent=19 // pred_fallthru
        _
      // Predicated region
      $region25: #{birnn_forward.2} parent=19 // pred_check
        %p165 = pneg %p77
      $region26: #{birnn_forward.2} parent=19 // pred_check_branch
        %167 = sbr.rel (%p165) target = $region28
      $region27: #{birnn_forward.2} parent=19 // pred_region
        %p168 = scmp.lt.s32.totalorder %s10, 1
        %s169 = scalar_select %p168, %s10, 1
        %s170 = smul.addr %s169, 4
        %s171 = smul.addr %s170, 4
        %s172 = scalar_lea.vmem %s2, %s171
      $region28: #{birnn_forward.2} parent=19 // pred_fallthru
        _
      // Predicated region
      $region29: #{birnn_forward.2} parent=19 // pred_check
        %p173 = pneg %p103
      $region30: #{birnn_forward.2} parent=19 // pred_check_branch
        %175 = sbr.rel (%p173) target = $region32
      $region31: #{birnn_forward.2} parent=19 // pred_region
        %p176 = scmp.lt.s32.totalorder %s10, 1
        %s177 = scalar_select %p176, %s10, 1
        %s178 = scalar_lea.vmem %s3, %s177
      $region32: #{birnn_forward.2} parent=19 // pred_fallthru
        _
    $region20: #{birnn_forward.2} parent=5 // pred_fallthru
      _
    %p179 = scmp.le.s32.totalorder 1, %s10
    %p180 = scmp.lt.s32.totalorder %s10, 3
    %p181 = pnand %p179, %p180
    %p182 = pneg %p181
    // Predicated region
    $region33: #{birnn_forward.2} parent=5 // pred_check
      _
    $region34: #{birnn_forward.2} parent=5 // pred_check_branch
      %184 = sbr.rel (%p181) target = $region36
    $region35: #{birnn_forward.2} parent=5 // pred_region
      %s185 = ssub.s32 %s10, 1
      %p186 = pneg %p31
      %p187 = pneg %p28
      %p188 = scmp.lt.s32.totalorder %s15, 1
      %s189 = scalar_select %p188, %s15, 1
      %s190 = smul.addr %s189, 4
      %s191 = smul.addr %s190, 4
      %s192 = scalar_lea.vmem %s1, %s191
      %p193 = pneg %p57
      %p194 = pneg %p54
      %p195 = scmp.lt.s32.totalorder %s15, 1
      %s196 = scalar_select %p195, %s15, 1
      %s197 = smul.addr %s196, 4
      %s198 = smul.addr %s197, 4
      %s199 = scalar_lea.vmem %s2, %s198
      %p200 = pneg %p83
      %p201 = pneg %p80
      %p202 = scmp.lt.s32.totalorder %s15, 1
      %s203 = scalar_select %p202, %s15, 1
      %s204 = scalar_lea.vmem %s3, %s203
      %p205 = pneg %p109
      %p206 = pneg %p106
      %p207 = pneg %p135
      %p208 = pneg %p132
      %p209 = scmp.lt.s32.totalorder %s15, 1
      %s210 = scalar_select %p209, %s15, 1
      %s211 = smul.addr %s210, 8
      %s212 = smul.addr %s211, 8
      %s213 = scalar_lea.vmem %s4, %s212
      %p214 = scmp.lt.s32.totalorder %s15, 1
      %s215 = scalar_select %p214, %s15, 1
      %s216 = smul.addr %s215, 4
      %s217 = smul.addr %s216, 4
      %s218 = scalar_lea.vmem %s1, %s217
      %p219 = scmp.lt.s32.totalorder %s15, 1
      %s220 = scalar_select %p219, %s15, 1
      %s221 = smul.addr %s220, 4
      %s222 = smul.addr %s221, 4
      %s223 = scalar_lea.vmem %s2, %s222
      %p224 = scmp.lt.s32.totalorder %s15, 1
      %s225 = scalar_select %p224, %s15, 1
      %s226 = scalar_lea.vmem %s3, %s225
      %p227 = scmp.lt.s32.totalorder %s15, 1
      %s228 = scalar_select %p227, %s15, 1
      %s229 = smul.addr %s228, 8
      %s230 = smul.addr %s229, 8
      %s231 = scalar_lea.vmem %s4, %s230
      %v233 = vld [vmem:[%s0] sm:$0xf]
      %v234 = vld [vmem:[%s0 + $0x4] sm:$0xf]
      %v235 = vld [vmem:[%s0 + $0x8] sm:$0xf]
      %v236 = vld [vmem:[%s0 + $0xc] sm:$0xf]
      %v237 = vld [vmem:[%s0 + $0x10] sm:$0xf]
      %v238 = vld [vmem:[%s0 + $0x14] sm:$0xf]
      %v239 = vld [vmem:[%s0 + $0x18] sm:$0xf]
      %v240 = vld [vmem:[%s0 + $0x1c] sm:$0xf]
      %v241 = vld [vmem:[%s218] sm:$0xf]
      %v242 = vld [vmem:[%s218 + $0x4] sm:$0xf]
      %v243 = vld [vmem:[%s218 + $0x8] sm:$0xf]
      %v244 = vld [vmem:[%s218 + $0xc] sm:$0xf]
      %v245 = vld [vmem:[%s226] sm:$0x1]
      %v247 = vlaneseq
      %v248 = vshrl.u32 %v247, 7
      %v249 = vsub.s32 0, %v248
      %v250 = vrot.slane %v245, %v249
      %v260 = vunpack.c.l.b16 %v233
      %v261 = vunpack.c.l.b16 %v234
      %v262 = vunpack.c.l.b16 %v235
      %v263 = vunpack.c.l.b16 %v236
      %v264 = vunpack.c.l.b16 %v237
      %v265 = vunpack.c.l.b16 %v238
      %v266 = vunpack.c.l.b16 %v239
      %v267 = vunpack.c.l.b16 %v240
      %v268 = vpack.c.b16 %v261, %v260
      %v269 = vpack.c.b16 %v263, %v262
      %v270 = vpack.c.b16 %v265, %v264
      %v271 = vpack.c.b16 %v267, %v266
      %v276 = vunpack.c.l.b16 %v241
      %v277 = vunpack.c.l.b16 %v242
      %v278 = vunpack.c.l.b16 %v243
      %v279 = vunpack.c.l.b16 %v244
      %v280 = vpack.c.b16 %v277, %v276
      %v281 = vpack.c.b16 %v279, %v278
      %vm284 = vcmask 261120
      %v286 = vsel %vm284, %v268, 0
      %v289 = vsel %vm284, %v269, 0
      %v292 = vsel %vm284, %v270, 0
      %v295 = vsel %vm284, %v271, 0
      %297 = vmatprep.subr.bf16.mxu0 0
      %298 = vmatpush1.bf16.msra.mxu0 0
      %299 = vmatprep.subr.bf16.mxu0 0
      %300 = vmatpush1.bf16.msra.mxu0 0
      %301 = vmatprep.subr.bf16.mxu0 0
      %302 = vmatpush1.bf16.msra.mxu0 0
      %303 = vmatprep.subr.bf16.mxu0 0
      %304 = vmatpush1.bf16.msra.mxu0 0
      %305 = vmatprep.subr.bf16.mxu0 0
      %306 = vmatpush1.bf16.msra.mxu0 0
      %307 = vmatprep.subr.bf16.mxu0 0
      %308 = vmatpush1.bf16.msra.mxu0 0
      %309 = vmatprep.subr.bf16.mxu0 0
      %310 = vmatpush1.bf16.msra.mxu0 %v281
      %311 = vmatprep.subr.bf16.mxu0 0
      %312 = vmatpush1.bf16.msra.mxu0 %v280
      %313 = vmatprep.subr.bf16.mxu0 0
      %314 = vmatpush2.bf16.msra.mxu0 0
      %315 = vmatprep.subr.bf16.mxu0 0
      %316 = vmatpush2.bf16.msra.mxu0 0
      %317 = vmatprep.subr.bf16.mxu0 0
      %318 = vmatpush2.bf16.msra.mxu0 0
      %319 = vmatprep.subr.bf16.mxu0 0
      %320 = vmatpush2.bf16.msra.mxu0 0
      %321 = vmatprep.subr.bf16.mxu0 0
      %322 = vmatpush2.bf16.msra.mxu0 0
      %323 = vmatprep.subr.bf16.mxu0 0
      %324 = vmatpush2.bf16.msra.mxu0 0
      %325 = vmatprep.subr.bf16.mxu0 0
      %326 = vmatpush2.bf16.msra.mxu0 0
      %327 = vmatprep.subr.bf16.mxu0 0
      %328 = vmatpush2.bf16.msra.mxu0 0
      %329 = vmatprep.mubr.bf16.mxu0 0
      %330 = vmatmul.mubr.bf16.gmra.mxu0 %v286
      %v331 = vpop.f32.mrf.mxu0
      %v332 = vadd.f32 %v250, %v331
      %v333 = vpop.f32.mrf.mxu0
      %v334 = vpop.f32.mrf.mxu0
      %v335 = vadd.f32 %v250, %v334
      %v336 = vpop.f32.mrf.mxu0
      %337 = vmatprep.mubr.bf16.mxu0 0
      %338 = vmatmul.mubr.bf16.gmra.mxu0 %v289
      %v339 = vpop.f32.mrf.mxu0
      %v340 = vadd.f32 %v250, %v339
      %v341 = vpop.f32.mrf.mxu0
      %v342 = vpop.f32.mrf.mxu0
      %v343 = vadd.f32 %v250, %v342
      %v344 = vpop.f32.mrf.mxu0
      %345 = vmatprep.mubr.bf16.mxu0 0
      %346 = vmatmul.mubr.bf16.gmra.mxu0 %v292
      %v347 = vpop.f32.mrf.mxu0
      %v348 = vadd.f32 %v250, %v347
      %v349 = vpop.f32.mrf.mxu0
      %v350 = vpop.f32.mrf.mxu0
      %v351 = vadd.f32 %v250, %v350
      %v352 = vpop.f32.mrf.mxu0
      %353 = vmatprep.mubr.bf16.mxu0 0
      %354 = vmatmul.mubr.bf16.gmra.mxu0 %v295
      %v355 = vpop.f32.mrf.mxu0
      %v356 = vadd.f32 %v250, %v355
      %v357 = vpop.f32.mrf.mxu0
      %v358 = vpop.f32.mrf.mxu0
      %v359 = vadd.f32 %v250, %v358
      %v360 = vpop.f32.mrf.mxu0
      %361 = vdwg.mxu0
      %362 = vst [vmem:[#allocation2] sm:$0xff] %v332
      %363 = vst [vmem:[#allocation2 + $0x8] sm:$0xff] %v335
      %364 = vst [vmem:[#allocation2 + $0x10] sm:$0xff] %v340
      %365 = vst [vmem:[#allocation2 + $0x18] sm:$0xff] %v343
      %366 = vst [vmem:[#allocation2 + $0x20] sm:$0xff] %v348
      %367 = vst [vmem:[#allocation2 + $0x28] sm:$0xff] %v351
      %368 = vst [vmem:[#allocation2 + $0x30] sm:$0xff] %v356
      %369 = vst [vmem:[#allocation2 + $0x38] sm:$0xff] %v359
      %370 = vst.msk [vmem:[#allocation3] sm:$0xff] %vm284, 0.0
      %371 = vst.msk [vmem:[#allocation4] sm:$0xff] %vm284, 0.0
      %p372 = scmp.eq.s32.totalorder %s15, 1
      %s373 = scalar_select %p372, 7, 0
      %s374 = smul.u32 %s373, 8
      %s375 = scalar_lea.vmem [#allocation2], %s374
      %v376 = vld [vmem:[%s375] sm:$0xff]
      %v377 = vld [vmem:[#allocation3] sm:$0xff]
      %v378 = vpack.c.bf16 %v377, %v377
      %v379 = vld [vmem:[%s223] sm:$0xf]
      %v380 = vld [vmem:[%s223 + $0x4] sm:$0xf]
      %v381 = vld [vmem:[%s223 + $0x8] sm:$0xf]
      %v382 = vld [vmem:[%s223 + $0xc] sm:$0xf]
      %v387 = vunpack.c.l.b16 %v379
      %v388 = vunpack.c.l.b16 %v380
      %v389 = vunpack.c.l.b16 %v381
      %v390 = vunpack.c.l.b16 %v382
      %v391 = vpack.c.b16 %v388, %v387
      %v392 = vpack.c.b16 %v390, %v389
      %v396 = vsel %vm284, %v378, 0
      %398 = vmatprep.subr.bf16.mxu0 0
      %399 = vmatpush1.bf16.msra.mxu0 0
      %400 = vmatprep.subr.bf16.mxu0 0
      %401 = vmatpush1.bf16.msra.mxu0 0
      %402 = vmatprep.subr.bf16.mxu0 0
      %403 = vmatpush1.bf16.msra.mxu0 0
      %404 = vmatprep.subr.bf16.mxu0 0
      %405 = vmatpush1.bf16.msra.mxu0 0
      %406 = vmatprep.subr.bf16.mxu0 0
      %407 = vmatpush1.bf16.msra.mxu0 0
      %408 = vmatprep.subr.bf16.mxu0 0
      %409 = vmatpush1.bf16.msra.mxu0 0
      %410 = vmatprep.subr.bf16.mxu0 0
      %411 = vmatpush1.bf16.msra.mxu0 %v392
      %412 = vmatprep.subr.bf16.mxu0 0
      %413 = vmatpush1.bf16.msra.mxu0 %v391
      %414 = vmatprep.subr.bf16.mxu0 0
      %415 = vmatpush2.bf16.msra.mxu0 0
      %416 = vmatprep.subr.bf16.mxu0 0
      %417 = vmatpush2.bf16.msra.mxu0 0
      %418 = vmatprep.subr.bf16.mxu0 0
      %419 = vmatpush2.bf16.msra.mxu0 0
      %420 = vmatprep.subr.bf16.mxu0 0
      %421 = vmatpush2.bf16.msra.mxu0 0
      %422 = vmatprep.subr.bf16.mxu0 0
      %423 = vmatpush2.bf16.msra.mxu0 0
      %424 = vmatprep.subr.bf16.mxu0 0
      %425 = vmatpush2.bf16.msra.mxu0 0
      %426 = vmatprep.subr.bf16.mxu0 0
      %427 = vmatpush2.bf16.msra.mxu0 0
      %428 = vmatprep.subr.bf16.mxu0 0
      %429 = vmatpush2.bf16.msra.mxu0 0
      %430 = vmatprep.mubr.bf16.mxu0 0
      %431 = vmatmul.mubr.bf16.gmra.mxu0 %v396
      %v432 = vpop.f32.mrf.mxu0
      %v433 = vadd.f32 0.0, %v432
      %v434 = vpop.f32.mrf.mxu0
      %v435 = vpop.f32.mrf.mxu0
      %v436 = vpop.f32.mrf.mxu0
      %437 = vdwg.mxu0
      %v438 = vadd.f32 %v376, %v433
      %v439 = vxor.u32 %v438, 2147483648
      %v440 = vmul.f32 %v439, 1.442695
      %v441 = vpow.pop %v440
      %v442 = vadd.f32 %v441, 1.0
      %v443 = vrcp.pop %v442
      %v444 = vmul.f32 1.0, %v443
      %v445 = vtanh.pop %v438
      %v446 = vld [vmem:[#allocation4] sm:$0xff]
      %448 = vrot.lane.b32.xlu0 %v446, 32
      %v449 = vpop.permute.xlu0 %448
      %v451 = vmul.f32 %v444, %v449
      %453 = vrot.lane.b32.xlu0 %v445, 64
      %v454 = vpop.permute.xlu0 %453
      %v456 = vmul.f32 %v444, %v454
      %458 = vrot.lane.b32.xlu0 %v456, 32
      %v459 = vpop.permute.xlu0 %458
      %v461 = vadd.f32 %v451, %v459
      %v462 = vtanh.pop %v461
      %464 = vrot.lane.b32.xlu0 %v462, 64
      %v465 = vpop.permute.xlu0 %464
      %v467 = vmul.f32 %v444, %v465
      %469 = vrot.lane.b32.xlu0 %v461, 96
      %v470 = vpop.permute.xlu0 %469
      %472 = vst.msk [vmem:[#allocation4] sm:$0xff] %vm284, %v470
      %474 = vrot.lane.b32.xlu0 %v467, 32
      %v475 = vpop.permute.xlu0 %474
      %477 = vst.msk [vmem:[#allocation3] sm:$0xff] %vm284, %v475
      %s478 = scalar_lea.vmem %s231, %s374
      %479 = vst.msk [vmem:[%s478] sm:$0xff] %vm284, %v475
      %s480 = scalar_select %p372, 6, 1
      %s481 = smul.u32 %s480, 8
      %s482 = scalar_lea.vmem [#allocation2], %s481
      %v483 = vld [vmem:[%s482] sm:$0xff]
      %v484 = vld [vmem:[#allocation3] sm:$0xff]
      %v485 = vpack.c.bf16 %v484, %v484
      %v486 = vld [vmem:[%s223] sm:$0xf]
      %v487 = vld [vmem:[%s223 + $0x4] sm:$0xf]
      %v488 = vld [vmem:[%s223 + $0x8] sm:$0xf]
      %v489 = vld [vmem:[%s223 + $0xc] sm:$0xf]
      %v494 = vunpack.c.l.b16 %v486
      %v495 = vunpack.c.l.b16 %v487
      %v496 = vunpack.c.l.b16 %v488
      %v497 = vunpack.c.l.b16 %v489
      %v498 = vpack.c.b16 %v495, %v494
      %v499 = vpack.c.b16 %v497, %v496
      %v503 = vsel %vm284, %v485, 0
      %505 = vmatprep.subr.bf16.mxu0 0
      %506 = vmatpush1.bf16.msra.mxu0 0
      %507 = vmatprep.subr.bf16.mxu0 0
      %508 = vmatpush1.bf16.msra.mxu0 0
      %509 = vmatprep.subr.bf16.mxu0 0
      %510 = vmatpush1.bf16.msra.mxu0 0
      %511 = vmatprep.subr.bf16.mxu0 0
      %512 = vmatpush1.bf16.msra.mxu0 0
      %513 = vmatprep.subr.bf16.mxu0 0
      %514 = vmatpush1.bf16.msra.mxu0 0
      %515 = vmatprep.subr.bf16.mxu0 0
      %516 = vmatpush1.bf16.msra.mxu0 0
      %517 = vmatprep.subr.bf16.mxu0 0
      %518 = vmatpush1.bf16.msra.mxu0 %v499
      %519 = vmatprep.subr.bf16.mxu0 0
      %520 = vmatpush1.bf16.msra.mxu0 %v498
      %521 = vmatprep.subr.bf16.mxu0 0
      %522 = vmatpush2.bf16.msra.mxu0 0
      %523 = vmatprep.subr.bf16.mxu0 0
      %524 = vmatpush2.bf16.msra.mxu0 0
      %525 = vmatprep.subr.bf16.mxu0 0
      %526 = vmatpush2.bf16.msra.mxu0 0
      %527 = vmatprep.subr.bf16.mxu0 0
      %528 = vmatpush2.bf16.msra.mxu0 0
      %529 = vmatprep.subr.bf16.mxu0 0
      %530 = vmatpush2.bf16.msra.mxu0 0
      %531 = vmatprep.subr.bf16.mxu0 0
      %532 = vmatpush2.bf16.msra.mxu0 0
      %533 = vmatprep.subr.bf16.mxu0 0
      %534 = vmatpush2.bf16.msra.mxu0 0
      %535 = vmatprep.subr.bf16.mxu0 0
      %536 = vmatpush2.bf16.msra.mxu0 0
      %537 = vmatprep.mubr.bf16.mxu0 0
      %538 = vmatmul.mubr.bf16.gmra.mxu0 %v503
      %v539 = vpop.f32.mrf.mxu0
      %v540 = vadd.f32 0.0, %v539
      %v541 = vpop.f32.mrf.mxu0
      %v542 = vpop.f32.mrf.mxu0
      %v543 = vpop.f32.mrf.mxu0
      %544 = vdwg.mxu0
      %v545 = vadd.f32 %v483, %v540
      %v546 = vxor.u32 %v545, 2147483648
      %v547 = vmul.f32 %v546, 1.442695
      %v548 = vpow.pop %v547
      %v549 = vadd.f32 %v548, 1.0
      %v550 = vrcp.pop %v549
      %v551 = vmul.f32 1.0, %v550
      %v552 = vtanh.pop %v545
      %v553 = vld [vmem:[#allocation4] sm:$0xff]
      %555 = vrot.lane.b32.xlu0 %v553, 32
      %v556 = vpop.permute.xlu0 %555
      %v558 = vmul.f32 %v551, %v556
      %560 = vrot.lane.b32.xlu0 %v552, 64
      %v561 = vpop.permute.xlu0 %560
      %v563 = vmul.f32 %v551, %v561
      %565 = vrot.lane.b32.xlu0 %v563, 32
      %v566 = vpop.permute.xlu0 %565
      %v568 = vadd.f32 %v558, %v566
      %v569 = vtanh.pop %v568
      %571 = vrot.lane.b32.xlu0 %v569, 64
      %v572 = vpop.permute.xlu0 %571
      %v574 = vmul.f32 %v551, %v572
      %576 = vrot.lane.b32.xlu0 %v568, 96
      %v577 = vpop.permute.xlu0 %576
      %579 = vst.msk [vmem:[#allocation4] sm:$0xff] %vm284, %v577
      %581 = vrot.lane.b32.xlu0 %v574, 32
      %v582 = vpop.permute.xlu0 %581
      %584 = vst.msk [vmem:[#allocation3] sm:$0xff] %vm284, %v582
      %s585 = scalar_lea.vmem %s231, %s481
      %586 = vst.msk [vmem:[%s585] sm:$0xff] %vm284, %v582
      %s587 = scalar_select %p372, 5, 2
      %s588 = smul.u32 %s587, 8
      %s589 = scalar_lea.vmem [#allocation2], %s588
      %v590 = vld [vmem:[%s589] sm:$0xff]
      %v591 = vld [vmem:[#allocation3] sm:$0xff]
      %v592 = vpack.c.bf16 %v591, %v591
      %v593 = vld [vmem:[%s223] sm:$0xf]
      %v594 = vld [vmem:[%s223 + $0x4] sm:$0xf]
      %v595 = vld [vmem:[%s223 + $0x8] sm:$0xf]
      %v596 = vld [vmem:[%s223 + $0xc] sm:$0xf]
      %v601 = vunpack.c.l.b16 %v593
      %v602 = vunpack.c.l.b16 %v594
      %v603 = vunpack.c.l.b16 %v595
      %v604 = vunpack.c.l.b16 %v596
      %v605 = vpack.c.b16 %v602, %v601
      %v606 = vpack.c.b16 %v604, %v603
      %v610 = vsel %vm284, %v592, 0
      %612 = vmatprep.subr.bf16.mxu0 0
      %613 = vmatpush1.bf16.msra.mxu0 0
      %614 = vmatprep.subr.bf16.mxu0 0
      %615 = vmatpush1.bf16.msra.mxu0 0
      %616 = vmatprep.subr.bf16.mxu0 0
      %617 = vmatpush1.bf16.msra.mxu0 0
      %618 = vmatprep.subr.bf16.mxu0 0
      %619 = vmatpush1.bf16.msra.mxu0 0
      %620 = vmatprep.subr.bf16.mxu0 0
      %621 = vmatpush1.bf16.msra.mxu0 0
      %622 = vmatprep.subr.bf16.mxu0 0
      %623 = vmatpush1.bf16.msra.mxu0 0
      %624 = vmatprep.subr.bf16.mxu0 0
      %625 = vmatpush1.bf16.msra.mxu0 %v606
      %626 = vmatprep.subr.bf16.mxu0 0
      %627 = vmatpush1.bf16.msra.mxu0 %v605
      %628 = vmatprep.subr.bf16.mxu0 0
      %629 = vmatpush2.bf16.msra.mxu0 0
      %630 = vmatprep.subr.bf16.mxu0 0
      %631 = vmatpush2.bf16.msra.mxu0 0
      %632 = vmatprep.subr.bf16.mxu0 0
      %633 = vmatpush2.bf16.msra.mxu0 0
      %634 = vmatprep.subr.bf16.mxu0 0
      %635 = vmatpush2.bf16.msra.mxu0 0
      %636 = vmatprep.subr.bf16.mxu0 0
      %637 = vmatpush2.bf16.msra.mxu0 0
      %638 = vmatprep.subr.bf16.mxu0 0
      %639 = vmatpush2.bf16.msra.mxu0 0
      %640 = vmatprep.subr.bf16.mxu0 0
      %641 = vmatpush2.bf16.msra.mxu0 0
      %642 = vmatprep.subr.bf16.mxu0 0
      %643 = vmatpush2.bf16.msra.mxu0 0
      %644 = vmatprep.mubr.bf16.mxu0 0
      %645 = vmatmul.mubr.bf16.gmra.mxu0 %v610
      %v646 = vpop.f32.mrf.mxu0
      %v647 = vadd.f32 0.0, %v646
      %v648 = vpop.f32.mrf.mxu0
      %v649 = vpop.f32.mrf.mxu0
      %v650 = vpop.f32.mrf.mxu0
      %651 = vdwg.mxu0
      %v652 = vadd.f32 %v590, %v647
      %v653 = vxor.u32 %v652, 2147483648
      %v654 = vmul.f32 %v653, 1.442695
      %v655 = vpow.pop %v654
      %v656 = vadd.f32 %v655, 1.0
      %v657 = vrcp.pop %v656
      %v658 = vmul.f32 1.0, %v657
      %v659 = vtanh.pop %v652
      %v660 = vld [vmem:[#allocation4] sm:$0xff]
      %662 = vrot.lane.b32.xlu0 %v660, 32
      %v663 = vpop.permute.xlu0 %662
      %v665 = vmul.f32 %v658, %v663
      %667 = vrot.lane.b32.xlu0 %v659, 64
      %v668 = vpop.permute.xlu0 %667
      %v670 = vmul.f32 %v658, %v668
      %672 = vrot.lane.b32.xlu0 %v670, 32
      %v673 = vpop.permute.xlu0 %672
      %v675 = vadd.f32 %v665, %v673
      %v676 = vtanh.pop %v675
      %678 = vrot.lane.b32.xlu0 %v676, 64
      %v679 = vpop.permute.xlu0 %678
      %v681 = vmul.f32 %v658, %v679
      %683 = vrot.lane.b32.xlu0 %v675, 96
      %v684 = vpop.permute.xlu0 %683
      %686 = vst.msk [vmem:[#allocation4] sm:$0xff] %vm284, %v684
      %688 = vrot.lane.b32.xlu0 %v681, 32
      %v689 = vpop.permute.xlu0 %688
      %691 = vst.msk [vmem:[#allocation3] sm:$0xff] %vm284, %v689
      %s692 = scalar_lea.vmem %s231, %s588
      %693 = vst.msk [vmem:[%s692] sm:$0xff] %vm284, %v689
      %s694 = scalar_select %p372, 4, 3
      %s695 = smul.u32 %s694, 8
      %s696 = scalar_lea.vmem [#allocation2], %s695
      %v697 = vld [vmem:[%s696] sm:$0xff]
      %v698 = vld [vmem:[#allocation3] sm:$0xff]
      %v699 = vpack.c.bf16 %v698, %v698
      %v700 = vld [vmem:[%s223] sm:$0xf]
      %v701 = vld [vmem:[%s223 + $0x4] sm:$0xf]
      %v702 = vld [vmem:[%s223 + $0x8] sm:$0xf]
      %v703 = vld [vmem:[%s223 + $0xc] sm:$0xf]
      %v708 = vunpack.c.l.b16 %v700
      %v709 = vunpack.c.l.b16 %v701
      %v710 = vunpack.c.l.b16 %v702
      %v711 = vunpack.c.l.b16 %v703
      %v712 = vpack.c.b16 %v709, %v708
      %v713 = vpack.c.b16 %v711, %v710
      %v717 = vsel %vm284, %v699, 0
      %719 = vmatprep.subr.bf16.mxu0 0
      %720 = vmatpush1.bf16.msra.mxu0 0
      %721 = vmatprep.subr.bf16.mxu0 0
      %722 = vmatpush1.bf16.msra.mxu0 0
      %723 = vmatprep.subr.bf16.mxu0 0
      %724 = vmatpush1.bf16.msra.mxu0 0
      %725 = vmatprep.subr.bf16.mxu0 0
      %726 = vmatpush1.bf16.msra.mxu0 0
      %727 = vmatprep.subr.bf16.mxu0 0
      %728 = vmatpush1.bf16.msra.mxu0 0
      %729 = vmatprep.subr.bf16.mxu0 0
      %730 = vmatpush1.bf16.msra.mxu0 0
      %731 = vmatprep.subr.bf16.mxu0 0
      %732 = vmatpush1.bf16.msra.mxu0 %v713
      %733 = vmatprep.subr.bf16.mxu0 0
      %734 = vmatpush1.bf16.msra.mxu0 %v712
      %735 = vmatprep.subr.bf16.mxu0 0
      %736 = vmatpush2.bf16.msra.mxu0 0
      %737 = vmatprep.subr.bf16.mxu0 0
      %738 = vmatpush2.bf16.msra.mxu0 0
      %739 = vmatprep.subr.bf16.mxu0 0
      %740 = vmatpush2.bf16.msra.mxu0 0
      %741 = vmatprep.subr.bf16.mxu0 0
      %742 = vmatpush2.bf16.msra.mxu0 0
      %743 = vmatprep.subr.bf16.mxu0 0
      %744 = vmatpush2.bf16.msra.mxu0 0
      %745 = vmatprep.subr.bf16.mxu0 0
      %746 = vmatpush2.bf16.msra.mxu0 0
      %747 = vmatprep.subr.bf16.mxu0 0
      %748 = vmatpush2.bf16.msra.mxu0 0
      %749 = vmatprep.subr.bf16.mxu0 0
      %750 = vmatpush2.bf16.msra.mxu0 0
      %751 = vmatprep.mubr.bf16.mxu0 0
      %752 = vmatmul.mubr.bf16.gmra.mxu0 %v717
      %v753 = vpop.f32.mrf.mxu0
      %v754 = vadd.f32 0.0, %v753
      %v755 = vpop.f32.mrf.mxu0
      %v756 = vpop.f32.mrf.mxu0
      %v757 = vpop.f32.mrf.mxu0
      %758 = vdwg.mxu0
      %v759 = vadd.f32 %v697, %v754
      %v760 = vxor.u32 %v759, 2147483648
      %v761 = vmul.f32 %v760, 1.442695
      %v762 = vpow.pop %v761
      %v763 = vadd.f32 %v762, 1.0
      %v764 = vrcp.pop %v763
      %v765 = vmul.f32 1.0, %v764
      %v766 = vtanh.pop %v759
      %v767 = vld [vmem:[#allocation4] sm:$0xff]
      %769 = vrot.lane.b32.xlu0 %v767, 32
      %v770 = vpop.permute.xlu0 %769
      %v772 = vmul.f32 %v765, %v770
      %774 = vrot.lane.b32.xlu0 %v766, 64
      %v775 = vpop.permute.xlu0 %774
      %v777 = vmul.f32 %v765, %v775
      %779 = vrot.lane.b32.xlu0 %v777, 32
      %v780 = vpop.permute.xlu0 %779
      %v782 = vadd.f32 %v772, %v780
      %v783 = vtanh.pop %v782
      %785 = vrot.lane.b32.xlu0 %v783, 64
      %v786 = vpop.permute.xlu0 %785
      %v788 = vmul.f32 %v765, %v786
      %790 = vrot.lane.b32.xlu0 %v782, 96
      %v791 = vpop.permute.xlu0 %790
      %793 = vst.msk [vmem:[#allocation4] sm:$0xff] %vm284, %v791
      %795 = vrot.lane.b32.xlu0 %v788, 32
      %v796 = vpop.permute.xlu0 %795
      %798 = vst.msk [vmem:[#allocation3] sm:$0xff] %vm284, %v796
      %s799 = scalar_lea.vmem %s231, %s695
      %800 = vst.msk [vmem:[%s799] sm:$0xff] %vm284, %v796
      %s801 = scalar_select %p372, 3, 4
      %s802 = smul.u32 %s801, 8
      %s803 = scalar_lea.vmem [#allocation2], %s802
      %v804 = vld [vmem:[%s803] sm:$0xff]
      %v805 = vld [vmem:[#allocation3] sm:$0xff]
      %v806 = vpack.c.bf16 %v805, %v805
      %v807 = vld [vmem:[%s223] sm:$0xf]
      %v808 = vld [vmem:[%s223 + $0x4] sm:$0xf]
      %v809 = vld [vmem:[%s223 + $0x8] sm:$0xf]
      %v810 = vld [vmem:[%s223 + $0xc] sm:$0xf]
      %v815 = vunpack.c.l.b16 %v807
      %v816 = vunpack.c.l.b16 %v808
      %v817 = vunpack.c.l.b16 %v809
      %v818 = vunpack.c.l.b16 %v810
      %v819 = vpack.c.b16 %v816, %v815
      %v820 = vpack.c.b16 %v818, %v817
      %v824 = vsel %vm284, %v806, 0
      %826 = vmatprep.subr.bf16.mxu0 0
      %827 = vmatpush1.bf16.msra.mxu0 0
      %828 = vmatprep.subr.bf16.mxu0 0
      %829 = vmatpush1.bf16.msra.mxu0 0
      %830 = vmatprep.subr.bf16.mxu0 0
      %831 = vmatpush1.bf16.msra.mxu0 0
      %832 = vmatprep.subr.bf16.mxu0 0
      %833 = vmatpush1.bf16.msra.mxu0 0
      %834 = vmatprep.subr.bf16.mxu0 0
      %835 = vmatpush1.bf16.msra.mxu0 0
      %836 = vmatprep.subr.bf16.mxu0 0
      %837 = vmatpush1.bf16.msra.mxu0 0
      %838 = vmatprep.subr.bf16.mxu0 0
      %839 = vmatpush1.bf16.msra.mxu0 %v820
      %840 = vmatprep.subr.bf16.mxu0 0
      %841 = vmatpush1.bf16.msra.mxu0 %v819
      %842 = vmatprep.subr.bf16.mxu0 0
      %843 = vmatpush2.bf16.msra.mxu0 0
      %844 = vmatprep.subr.bf16.mxu0 0
      %845 = vmatpush2.bf16.msra.mxu0 0
      %846 = vmatprep.subr.bf16.mxu0 0
      %847 = vmatpush2.bf16.msra.mxu0 0
      %848 = vmatprep.subr.bf16.mxu0 0
      %849 = vmatpush2.bf16.msra.mxu0 0
      %850 = vmatprep.subr.bf16.mxu0 0
      %851 = vmatpush2.bf16.msra.mxu0 0
      %852 = vmatprep.subr.bf16.mxu0 0
      %853 = vmatpush2.bf16.msra.mxu0 0
      %854 = vmatprep.subr.bf16.mxu0 0
      %855 = vmatpush2.bf16.msra.mxu0 0
      %856 = vmatprep.subr.bf16.mxu0 0
      %857 = vmatpush2.bf16.msra.mxu0 0
      %858 = vmatprep.mubr.bf16.mxu0 0
      %859 = vmatmul.mubr.bf16.gmra.mxu0 %v824
      %v860 = vpop.f32.mrf.mxu0
      %v861 = vadd.f32 0.0, %v860
      %v862 = vpop.f32.mrf.mxu0
      %v863 = vpop.f32.mrf.mxu0
      %v864 = vpop.f32.mrf.mxu0
      %865 = vdwg.mxu0
      %v866 = vadd.f32 %v804, %v861
      %v867 = vxor.u32 %v866, 2147483648
      %v868 = vmul.f32 %v867, 1.442695
      %v869 = vpow.pop %v868
      %v870 = vadd.f32 %v869, 1.0
      %v871 = vrcp.pop %v870
      %v872 = vmul.f32 1.0, %v871
      %v873 = vtanh.pop %v866
      %v874 = vld [vmem:[#allocation4] sm:$0xff]
      %876 = vrot.lane.b32.xlu0 %v874, 32
      %v877 = vpop.permute.xlu0 %876
      %v879 = vmul.f32 %v872, %v877
      %881 = vrot.lane.b32.xlu0 %v873, 64
      %v882 = vpop.permute.xlu0 %881
      %v884 = vmul.f32 %v872, %v882
      %886 = vrot.lane.b32.xlu0 %v884, 32
      %v887 = vpop.permute.xlu0 %886
      %v889 = vadd.f32 %v879, %v887
      %v890 = vtanh.pop %v889
      %892 = vrot.lane.b32.xlu0 %v890, 64
      %v893 = vpop.permute.xlu0 %892
      %v895 = vmul.f32 %v872, %v893
      %897 = vrot.lane.b32.xlu0 %v889, 96
      %v898 = vpop.permute.xlu0 %897
      %900 = vst.msk [vmem:[#allocation4] sm:$0xff] %vm284, %v898
      %902 = vrot.lane.b32.xlu0 %v895, 32
      %v903 = vpop.permute.xlu0 %902
      %905 = vst.msk [vmem:[#allocation3] sm:$0xff] %vm284, %v903
      %s906 = scalar_lea.vmem %s231, %s802
      %907 = vst.msk [vmem:[%s906] sm:$0xff] %vm284, %v903
      %s908 = scalar_select %p372, 2, 5
      %s909 = smul.u32 %s908, 8
      %s910 = scalar_lea.vmem [#allocation2], %s909
      %v911 = vld [vmem:[%s910] sm:$0xff]
      %v912 = vld [vmem:[#allocation3] sm:$0xff]
      %v913 = vpack.c.bf16 %v912, %v912
      %v914 = vld [vmem:[%s223] sm:$0xf]
      %v915 = vld [vmem:[%s223 + $0x4] sm:$0xf]
      %v916 = vld [vmem:[%s223 + $0x8] sm:$0xf]
      %v917 = vld [vmem:[%s223 + $0xc] sm:$0xf]
      %v922 = vunpack.c.l.b16 %v914
      %v923 = vunpack.c.l.b16 %v915
      %v924 = vunpack.c.l.b16 %v916
      %v925 = vunpack.c.l.b16 %v917
      %v926 = vpack.c.b16 %v923, %v922
      %v927 = vpack.c.b16 %v925, %v924
      %v931 = vsel %vm284, %v913, 0
      %933 = vmatprep.subr.bf16.mxu0 0
      %934 = vmatpush1.bf16.msra.mxu0 0
      %935 = vmatprep.subr.bf16.mxu0 0
      %936 = vmatpush1.bf16.msra.mxu0 0
      %937 = vmatprep.subr.bf16.mxu0 0
      %938 = vmatpush1.bf16.msra.mxu0 0
      %939 = vmatprep.subr.bf16.mxu0 0
      %940 = vmatpush1.bf16.msra.mxu0 0
      %941 = vmatprep.subr.bf16.mxu0 0
      %942 = vmatpush1.bf16.msra.mxu0 0
      %943 = vmatprep.subr.bf16.mxu0 0
      %944 = vmatpush1.bf16.msra.mxu0 0
      %945 = vmatprep.subr.bf16.mxu0 0
      %946 = vmatpush1.bf16.msra.mxu0 %v927
      %947 = vmatprep.subr.bf16.mxu0 0
      %948 = vmatpush1.bf16.msra.mxu0 %v926
      %949 = vmatprep.subr.bf16.mxu0 0
      %950 = vmatpush2.bf16.msra.mxu0 0
      %951 = vmatprep.subr.bf16.mxu0 0
      %952 = vmatpush2.bf16.msra.mxu0 0
      %953 = vmatprep.subr.bf16.mxu0 0
      %954 = vmatpush2.bf16.msra.mxu0 0
      %955 = vmatprep.subr.bf16.mxu0 0
      %956 = vmatpush2.bf16.msra.mxu0 0
      %957 = vmatprep.subr.bf16.mxu0 0
      %958 = vmatpush2.bf16.msra.mxu0 0
      %959 = vmatprep.subr.bf16.mxu0 0
      %960 = vmatpush2.bf16.msra.mxu0 0
      %961 = vmatprep.subr.bf16.mxu0 0
      %962 = vmatpush2.bf16.msra.mxu0 0
      %963 = vmatprep.subr.bf16.mxu0 0
      %964 = vmatpush2.bf16.msra.mxu0 0
      %965 = vmatprep.mubr.bf16.mxu0 0
      %966 = vmatmul.mubr.bf16.gmra.mxu0 %v931
      %v967 = vpop.f32.mrf.mxu0
      %v968 = vadd.f32 0.0, %v967
      %v969 = vpop.f32.mrf.mxu0
      %v970 = vpop.f32.mrf.mxu0
      %v971 = vpop.f32.mrf.mxu0
      %972 = vdwg.mxu0
      %v973 = vadd.f32 %v911, %v968
      %v974 = vxor.u32 %v973, 2147483648
      %v975 = vmul.f32 %v974, 1.442695
      %v976 = vpow.pop %v975
      %v977 = vadd.f32 %v976, 1.0
      %v978 = vrcp.pop %v977
      %v979 = vmul.f32 1.0, %v978
      %v980 = vtanh.pop %v973
      %v981 = vld [vmem:[#allocation4] sm:$0xff]
      %983 = vrot.lane.b32.xlu0 %v981, 32
      %v984 = vpop.permute.xlu0 %983
      %v986 = vmul.f32 %v979, %v984
      %988 = vrot.lane.b32.xlu0 %v980, 64
      %v989 = vpop.permute.xlu0 %988
      %v991 = vmul.f32 %v979, %v989
      %993 = vrot.lane.b32.xlu0 %v991, 32
      %v994 = vpop.permute.xlu0 %993
      %v996 = vadd.f32 %v986, %v994
      %v997 = vtanh.pop %v996
      %999 = vrot.lane.b32.xlu0 %v997, 64
      %v1000 = vpop.permute.xlu0 %999
      %v1002 = vmul.f32 %v979, %v1000
      %1004 = vrot.lane.b32.xlu0 %v996, 96
      %v1005 = vpop.permute.xlu0 %1004
      %1007 = vst.msk [vmem:[#allocation4] sm:$0xff] %vm284, %v1005
      %1009 = vrot.lane.b32.xlu0 %v1002, 32
      %v1010 = vpop.permute.xlu0 %1009
      %1012 = vst.msk [vmem:[#allocation3] sm:$0xff] %vm284, %v1010
      %s1013 = scalar_lea.vmem %s231, %s909
      %1014 = vst.msk [vmem:[%s1013] sm:$0xff] %vm284, %v1010
      %s1015 = scalar_select %p372, 1, 6
      %s1016 = smul.u32 %s1015, 8
      %s1017 = scalar_lea.vmem [#allocation2], %s1016
      %v1018 = vld [vmem:[%s1017] sm:$0xff]
      %v1019 = vld [vmem:[#allocation3] sm:$0xff]
      %v1020 = vpack.c.bf16 %v1019, %v1019
      %v1021 = vld [vmem:[%s223] sm:$0xf]
      %v1022 = vld [vmem:[%s223 + $0x4] sm:$0xf]
      %v1023 = vld [vmem:[%s223 + $0x8] sm:$0xf]
      %v1024 = vld [vmem:[%s223 + $0xc] sm:$0xf]
      %v1029 = vunpack.c.l.b16 %v1021
      %v1030 = vunpack.c.l.b16 %v1022
      %v1031 = vunpack.c.l.b16 %v1023
      %v1032 = vunpack.c.l.b16 %v1024
      %v1033 = vpack.c.b16 %v1030, %v1029
      %v1034 = vpack.c.b16 %v1032, %v1031
      %v1038 = vsel %vm284, %v1020, 0
      %1040 = vmatprep.subr.bf16.mxu0 0
      %1041 = vmatpush1.bf16.msra.mxu0 0
      %1042 = vmatprep.subr.bf16.mxu0 0
      %1043 = vmatpush1.bf16.msra.mxu0 0
      %1044 = vmatprep.subr.bf16.mxu0 0
      %1045 = vmatpush1.bf16.msra.mxu0 0
      %1046 = vmatprep.subr.bf16.mxu0 0
      %1047 = vmatpush1.bf16.msra.mxu0 0
      %1048 = vmatprep.subr.bf16.mxu0 0
      %1049 = vmatpush1.bf16.msra.mxu0 0
      %1050 = vmatprep.subr.bf16.mxu0 0
      %1051 = vmatpush1.bf16.msra.mxu0 0
      %1052 = vmatprep.subr.bf16.mxu0 0
      %1053 = vmatpush1.bf16.msra.mxu0 %v1034
      %1054 = vmatprep.subr.bf16.mxu0 0
      %1055 = vmatpush1.bf16.msra.mxu0 %v1033
      %1056 = vmatprep.subr.bf16.mxu0 0
      %1057 = vmatpush2.bf16.msra.mxu0 0
      %1058 = vmatprep.subr.bf16.mxu0 0
      %1059 = vmatpush2.bf16.msra.mxu0 0
      %1060 = vmatprep.subr.bf16.mxu0 0
      %1061 = vmatpush2.bf16.msra.mxu0 0
      %1062 = vmatprep.subr.bf16.mxu0 0
      %1063 = vmatpush2.bf16.msra.mxu0 0
      %1064 = vmatprep.subr.bf16.mxu0 0
      %1065 = vmatpush2.bf16.msra.mxu0 0
      %1066 = vmatprep.subr.bf16.mxu0 0
      %1067 = vmatpush2.bf16.msra.mxu0 0
      %1068 = vmatprep.subr.bf16.mxu0 0
      %1069 = vmatpush2.bf16.msra.mxu0 0
      %1070 = vmatprep.subr.bf16.mxu0 0
      %1071 = vmatpush2.bf16.msra.mxu0 0
      %1072 = vmatprep.mubr.bf16.mxu0 0
      %1073 = vmatmul.mubr.bf16.gmra.mxu0 %v1038
      %v1074 = vpop.f32.mrf.mxu0
      %v1075 = vadd.f32 0.0, %v1074
      %v1076 = vpop.f32.mrf.mxu0
      %v1077 = vpop.f32.mrf.mxu0
      %v1078 = vpop.f32.mrf.mxu0
      %1079 = vdwg.mxu0
      %v1080 = vadd.f32 %v1018, %v1075
      %v1081 = vxor.u32 %v1080, 2147483648
      %v1082 = vmul.f32 %v1081, 1.442695
      %v1083 = vpow.pop %v1082
      %v1084 = vadd.f32 %v1083, 1.0
      %v1085 = vrcp.pop %v1084
      %v1086 = vmul.f32 1.0, %v1085
      %v1087 = vtanh.pop %v1080
      %v1088 = vld [vmem:[#allocation4] sm:$0xff]
      %1090 = vrot.lane.b32.xlu0 %v1088, 32
      %v1091 = vpop.permute.xlu0 %1090
      %v1093 = vmul.f32 %v1086, %v1091
      %1095 = vrot.lane.b32.xlu0 %v1087, 64
      %v1096 = vpop.permute.xlu0 %1095
      %v1098 = vmul.f32 %v1086, %v1096
      %1100 = vrot.lane.b32.xlu0 %v1098, 32
      %v1101 = vpop.permute.xlu0 %1100
      %v1103 = vadd.f32 %v1093, %v1101
      %v1104 = vtanh.pop %v1103
      %1106 = vrot.lane.b32.xlu0 %v1104, 64
      %v1107 = vpop.permute.xlu0 %1106
      %v1109 = vmul.f32 %v1086, %v1107
      %1111 = vrot.lane.b32.xlu0 %v1103, 96
      %v1112 = vpop.permute.xlu0 %1111
      %1114 = vst.msk [vmem:[#allocation4] sm:$0xff] %vm284, %v1112
      %1116 = vrot.lane.b32.xlu0 %v1109, 32
      %v1117 = vpop.permute.xlu0 %1116
      %1119 = vst.msk [vmem:[#allocation3] sm:$0xff] %vm284, %v1117
      %s1120 = scalar_lea.vmem %s231, %s1016
      %1121 = vst.msk [vmem:[%s1120] sm:$0xff] %vm284, %v1117
      %s1122 = scalar_select %p372, 0, 7
      %s1123 = smul.u32 %s1122, 8
      %s1124 = scalar_lea.vmem [#allocation2], %s1123
      %v1125 = vld [vmem:[%s1124] sm:$0xff]
      %v1126 = vld [vmem:[#allocation3] sm:$0xff]
      %v1127 = vpack.c.bf16 %v1126, %v1126
      %v1128 = vld [vmem:[%s223] sm:$0xf]
      %v1129 = vld [vmem:[%s223 + $0x4] sm:$0xf]
      %v1130 = vld [vmem:[%s223 + $0x8] sm:$0xf]
      %v1131 = vld [vmem:[%s223 + $0xc] sm:$0xf]
      %v1136 = vunpack.c.l.b16 %v1128
      %v1137 = vunpack.c.l.b16 %v1129
      %v1138 = vunpack.c.l.b16 %v1130
      %v1139 = vunpack.c.l.b16 %v1131
      %v1140 = vpack.c.b16 %v1137, %v1136
      %v1141 = vpack.c.b16 %v1139, %v1138
      %v1145 = vsel %vm284, %v1127, 0
      %1147 = vmatprep.subr.bf16.mxu0 0
      %1148 = vmatpush1.bf16.msra.mxu0 0
      %1149 = vmatprep.subr.bf16.mxu0 0
      %1150 = vmatpush1.bf16.msra.mxu0 0
      %1151 = vmatprep.subr.bf16.mxu0 0
      %1152 = vmatpush1.bf16.msra.mxu0 0
      %1153 = vmatprep.subr.bf16.mxu0 0
      %1154 = vmatpush1.bf16.msra.mxu0 0
      %1155 = vmatprep.subr.bf16.mxu0 0
      %1156 = vmatpush1.bf16.msra.mxu0 0
      %1157 = vmatprep.subr.bf16.mxu0 0
      %1158 = vmatpush1.bf16.msra.mxu0 0
      %1159 = vmatprep.subr.bf16.mxu0 0
      %1160 = vmatpush1.bf16.msra.mxu0 %v1141
      %1161 = vmatprep.subr.bf16.mxu0 0
      %1162 = vmatpush1.bf16.msra.mxu0 %v1140
      %1163 = vmatprep.subr.bf16.mxu0 0
      %1164 = vmatpush2.bf16.msra.mxu0 0
      %1165 = vmatprep.subr.bf16.mxu0 0
      %1166 = vmatpush2.bf16.msra.mxu0 0
      %1167 = vmatprep.subr.bf16.mxu0 0
      %1168 = vmatpush2.bf16.msra.mxu0 0
      %1169 = vmatprep.subr.bf16.mxu0 0
      %1170 = vmatpush2.bf16.msra.mxu0 0
      %1171 = vmatprep.subr.bf16.mxu0 0
      %1172 = vmatpush2.bf16.msra.mxu0 0
      %1173 = vmatprep.subr.bf16.mxu0 0
      %1174 = vmatpush2.bf16.msra.mxu0 0
      %1175 = vmatprep.subr.bf16.mxu0 0
      %1176 = vmatpush2.bf16.msra.mxu0 0
      %1177 = vmatprep.subr.bf16.mxu0 0
      %1178 = vmatpush2.bf16.msra.mxu0 0
      %1179 = vmatprep.mubr.bf16.mxu0 0
      %1180 = vmatmul.mubr.bf16.gmra.mxu0 %v1145
      %v1181 = vpop.f32.mrf.mxu0
      %v1182 = vadd.f32 0.0, %v1181
      %v1183 = vpop.f32.mrf.mxu0
      %v1184 = vpop.f32.mrf.mxu0
      %v1185 = vpop.f32.mrf.mxu0
      %1186 = vdwg.mxu0
      %v1187 = vadd.f32 %v1125, %v1182
      %v1188 = vxor.u32 %v1187, 2147483648
      %v1189 = vmul.f32 %v1188, 1.442695
      %v1190 = vpow.pop %v1189
      %v1191 = vadd.f32 %v1190, 1.0
      %v1192 = vrcp.pop %v1191
      %v1193 = vmul.f32 1.0, %v1192
      %v1194 = vtanh.pop %v1187
      %v1195 = vld [vmem:[#allocation4] sm:$0xff]
      %1197 = vrot.lane.b32.xlu0 %v1195, 32
      %v1198 = vpop.permute.xlu0 %1197
      %v1200 = vmul.f32 %v1193, %v1198
      %1202 = vrot.lane.b32.xlu0 %v1194, 64
      %v1203 = vpop.permute.xlu0 %1202
      %v1205 = vmul.f32 %v1193, %v1203
      %1207 = vrot.lane.b32.xlu0 %v1205, 32
      %v1208 = vpop.permute.xlu0 %1207
      %v1210 = vadd.f32 %v1200, %v1208
      %v1211 = vtanh.pop %v1210
      %1213 = vrot.lane.b32.xlu0 %v1211, 64
      %v1214 = vpop.permute.xlu0 %1213
      %v1216 = vmul.f32 %v1193, %v1214
      %1218 = vrot.lane.b32.xlu0 %v1210, 96
      %v1219 = vpop.permute.xlu0 %1218
      %1221 = vst.msk [vmem:[#allocation4] sm:$0xff] %vm284, %v1219
      %1223 = vrot.lane.b32.xlu0 %v1216, 32
      %v1224 = vpop.permute.xlu0 %1223
      %1226 = vst.msk [vmem:[#allocation3] sm:$0xff] %vm284, %v1224
      %s1227 = scalar_lea.vmem %s231, %s1123
      %1228 = vst.msk [vmem:[%s1227] sm:$0xff] %vm284, %v1224
      %p1229 = scmp.lt.s32.totalorder %s15, 1
      %s1230 = scalar_select %p1229, %s15, 1
      %s1231 = smul.addr %s1230, 8
      %s1232 = smul.addr %s1231, 8
      %s1233 = scalar_lea.vmem %s4, %s1232
      // Predicated region
      $region37: #{birnn_forward.2} parent=35 // pred_check
        %p1234 = pneg %p132
      $region38: #{birnn_forward.2} parent=35 // pred_check_branch
        %1236 = sbr.rel (%p1234) target = $region40
      $region39: #{birnn_forward.2} parent=35 // pred_region
        _
      $region40: #{birnn_forward.2} parent=35 // pred_fallthru
        _
    $region36: #{birnn_forward.2} parent=5 // pred_fallthru
      _
    %p1237 = scmp.le.s32.totalorder 2, %s10
    // Predicated region
    $region41: #{birnn_forward.2} parent=5 // pred_check
      %p1238 = pneg %p1237
    $region42: #{birnn_forward.2} parent=5 // pred_check_branch
      %1240 = sbr.rel (%p1238) target = $region44
    $region43: #{birnn_forward.2} parent=5 // pred_region
      %s1241 = ssub.s32 %s10, 2
      // Predicated region
      $region45: #{birnn_forward.2} parent=43 // pred_check
        %p1242 = pneg %p138
      $region46: #{birnn_forward.2} parent=43 // pred_check_branch
        %1244 = sbr.rel (%p1242) target = $region48
      $region47: #{birnn_forward.2} parent=43 // pred_region
        %p1245 = scmp.lt.s32.totalorder %s16, 1
        %s1246 = scalar_select %p1245, %s16, 1
        %s1247 = smul.addr %s1246, 8
        %s1248 = smul.addr %s1247, 8
        %s1249 = scalar_lea.vmem %s4, %s1248
      $region48: #{birnn_forward.2} parent=43 // pred_fallthru
        _
    $region44: #{birnn_forward.2} parent=5 // pred_fallthru
      _
  $region6: #{birnn_forward.2} parent=0 // loop_footer
    %s14 = sadd.s32 1, %s10
  $region7: #{birnn_forward.2} parent=0 // loop_footer_branch
    %9 = sbr.rel target = $region3
  $region8: #{birnn_forward.2} parent=0 // loop_exit
    _

</llo_original>
